<compile_context>
chip_gen: v7x
topology: tpu7x:2x2x1
jax: 0.10.0
libtpu: 0.0.40
codegen_flags: <defaults>
</compile_context>

<pallas_src>
import functools

import jax
import jax.numpy as jnp
from jax.experimental import pallas as pl
from jax.experimental.pallas import tpu as pltpu

EPS = 1e-5  # PyTorch BatchNorm2d default eps


def _round_up(x, m):
    return ((x + m - 1) // m) * m


def _tpu_budget():
    """(vmem_limit_bytes, stage1_row_tile_cap) derived from the local TPU generation."""
    try:
        vmem_phys = int(pltpu.get_tpu_info().vmem_capacity_bytes)
    except Exception:
        vmem_phys = 64 * 1024 * 1024            # conservative fallback (v7x-sized)
    vmem_limit = int(vmem_phys * 0.75)
    row_cap = 1024 if vmem_phys >= (96 << 20) else 512   # v5e/v6e: 128 MiB, v7x: 64 MiB
    return vmem_limit, row_cap


def _row_tiling(m, cap):
    """Row tile (multiple of 8), tile count, padded row count (tile * n_tiles >= m)."""
    n_tiles = max(1, -(-m // cap))
    tm = _round_up(-(-m // n_tiles), 8)
    return tm, n_tiles, tm * n_tiles


# --------------------------------------------------------------------------- #
# Stage 1: h = relu(x * scale1 + bias1) @ w1   (1x1 conv), tiled over pixels.
# Emits per-tile sum(h) / sum(h*h) (f32, padded rows masked) for exact BN2 stats.
# x / w1 / h are bf16 HBM streams; BN math and matmul accumulation are f32.
# --------------------------------------------------------------------------- #
def _stage1_kernel(x_ref, s1_ref, b1_ref, w1_ref, h_ref, psum_ref, *,
                   tm, m_valid, need_mask):
    x = x_ref[...].astype(jnp.float32)                        # (tm, Cin) bf16 -> f32
    xa = jnp.maximum(x * s1_ref[...] + b1_ref[...], 0.0)      # folded BN1 + ReLU
    h = jnp.dot(xa.astype(jnp.bfloat16), w1_ref[...],         # bf16 MXU operands
                preferred_element_type=jnp.float32)           # (tm, Ch) f32 acc
    h_ref[...] = h.astype(jnp.bfloat16)                       # bf16 h stream to HBM
    if need_mask:                                             # drop padded rows from stats
        row = pl.program_id(0) * tm + jax.lax.broadcasted_iota(jnp.int32, (tm, 1), 0)
        hm = jnp.where(row < m_valid, h, 0.0)
    else:
        hm = h
    psum_ref[0] = jnp.concatenate(
        [jnp.sum(hm, axis=0, keepdims=True),
         jnp.sum(hm * h, axis=0, keepdims=True)], axis=0)     # (2, Ch) f32 partial sums


# --------------------------------------------------------------------------- #
# Stage 2: out = conv3x3(relu(h * scale2 + bias2)), one image per grid step.
# Padded activation lives in a (H+2, W+2, Ch) bf16 VMEM scratch; only the halo
# strips are zeroed.  3x3 conv = 9 accumulating shifted-window MXU matmuls.
# --------------------------------------------------------------------------- #
def _stage2_kernel(h_ref, s2_ref, b2_ref, w2_ref, o_ref, halo_ref):
    _, H, W, Ch = h_ref.shape
    G = o_ref.shape[3]

    # 1-pixel zero halo: only the four strips are written (corners covered twice).
    halo_ref[0:1, :, :] = jnp.zeros((1, W + 2, Ch), jnp.bfloat16)
    halo_ref[H + 1:H + 2, :, :] = jnp.zeros((1, W + 2, Ch), jnp.bfloat16)
    halo_ref[:, 0:1, :] = jnp.zeros((H + 2, 1, Ch), jnp.bfloat16)
    halo_ref[:, W + 1:W + 2, :] = jnp.zeros((H + 2, 1, Ch), jnp.bfloat16)

    # Folded BN2 + ReLU stored straight into the interior (no ha / hp temporaries).
    h = h_ref[0].astype(jnp.float32)                          # (H, W, Ch)
    halo_ref[1:H + 1, 1:W + 1, :] = jnp.maximum(
        h * s2_ref[...] + b2_ref[...], 0.0).astype(jnp.bfloat16)

    # 3x3 conv: 9 accumulating (H*W, Ch) @ (Ch, G) matmuls over shifted windows.
    acc = jnp.zeros((H * W, G), jnp.float32)
    for k in range(9):
        dy, dx = divmod(k, 3)
        win = halo_ref[dy:dy + H, dx:dx + W, :].reshape(H * W, Ch)
        acc = acc + jnp.dot(win, w2_ref[k], preferred_element_type=jnp.float32)

    # TODO(synk): lane-dense (H, W*G) output store (perf review) skipped — it needs a
    # (H*W, G) -> (H, W*G) in-kernel relayout whose Mosaic reshape lowering is unverified;
    # stores are no longer the binding slot after dropping the im2col buffer.
    o_ref[0] = acc.reshape(H, W, G)


def dense_layer_forward(x_nchw, params):
    """x_nchw: (N, Cin, H, W) f32 -> (N, growth + Cin, H, W) f32 (concat done in XLA)."""
    g1, b1, w1_oihw, g2, b2, w2_oihw = params
    N, Cin, H, W = x_nchw.shape
    Ch = w1_oihw.shape[0]                      # bn_size * growth_rate
    G = w2_oihw.shape[0]                       # growth_rate
    M = N * H * W

    vmem_limit, row_cap = _tpu_budget()
    x_f32 = x_nchw.astype(jnp.float32)

    # ---- BN1 batch stats: cheap XLA reduce over f32 x, folded into scale/bias ----
    mean1 = jnp.mean(x_f32, axis=(0, 2, 3))
    var1 = jnp.var(x_f32, axis=(0, 2, 3))                     # biased, like PyTorch norm
    s1 = g1 * jax.lax.rsqrt(var1 + EPS)
    scale1 = s1.reshape(1, Cin)
    bias1 = (b1 - mean1 * s1).reshape(1, Cin)

    # ---- x stream to the kernel is bf16, NHWC flattened over pixels ----
    x2 = jnp.transpose(x_f32, (0, 2, 3, 1)).reshape(M, Cin).astype(jnp.bfloat16)

    tm, n_tiles, m_pad = _row_tiling(M, row_cap)
    if m_pad != M:
        x2 = jnp.pad(x2, ((0, m_pad - M), (0, 0)))

    # ---- weights prepared once, cast to bf16 for the MXU ----
    w1 = jnp.transpose(w1_oihw[:, :, 0, 0], (1, 0)).astype(jnp.bfloat16)       # (Cin, Ch)
    w2 = jnp.transpose(w2_oihw, (2, 3, 1, 0)).reshape(9, Ch, G).astype(jnp.bfloat16)

    # ---------------- Stage 1: tiled over flattened pixels --------------------
    stage1 = functools.partial(_stage1_kernel, tm=tm, m_valid=M,
                               need_mask=(m_pad != M))
    h, psums = pl.pallas_call(
        stage1,
        out_shape=(jax.ShapeDtypeStruct((m_pad, Ch), jnp.bfloat16),
                   jax.ShapeDtypeStruct((n_tiles, 2, Ch), jnp.float32)),
        grid=(n_tiles,),
        in_specs=[pl.BlockSpec((tm, Cin), lambda i: (i, 0)),
                  pl.BlockSpec((1, Cin), lambda i: (0, 0)),     # resident scale1
                  pl.BlockSpec((1, Cin), lambda i: (0, 0)),     # resident bias1
                  pl.BlockSpec((Cin, Ch), lambda i: (0, 0))],   # resident weight
        out_specs=(pl.BlockSpec((tm, Ch), lambda i: (i, 0)),
                   pl.BlockSpec((1, 2, Ch), lambda i: (i, 0, 0))),
        compiler_params=pltpu.CompilerParams(
            dimension_semantics=("parallel",), vmem_limit_bytes=vmem_limit),
    )(x2, scale1, bias1, w1)

    # ---- BN2 batch stats from the per-tile f32 partial sums (global, exact) ----
    tot = jnp.sum(psums, axis=0)                                # (2, Ch)
    mean2 = tot[0] / M
    var2 = tot[1] / M - mean2 * mean2
    s2v = g2 * jax.lax.rsqrt(var2 + EPS)
    scale2 = s2v.reshape(1, Ch)
    bias2 = (b2 - mean2 * s2v).reshape(1, Ch)

    h4 = h[:M].reshape(N, H, W, Ch)        # slice is a no-op when m_pad == M

    # ---------------- Stage 2: one image per grid step -------------------------
    # TODO(synk): for small N on v7x (2 TensorCores) additionally tile stage 2 over
    # H-row groups (halo'd h blocks) so both cores get work; grid=(N,) kept here.
    out_nhwc = pl.pallas_call(
        _stage2_kernel,
        out_shape=jax.ShapeDtypeStruct((N, H, W, G), jnp.float32),
        grid=(N,),
        in_specs=[pl.BlockSpec((1, H, W, Ch), lambda n: (n, 0, 0, 0)),
                  pl.BlockSpec((1, Ch), lambda n: (0, 0)),        # resident scale2
                  pl.BlockSpec((1, Ch), lambda n: (0, 0)),        # resident bias2
                  pl.BlockSpec((9, Ch, G), lambda n: (0, 0, 0))], # resident weight
        out_specs=pl.BlockSpec((1, H, W, G), lambda n: (n, 0, 0, 0)),
        scratch_shapes=[pltpu.VMEM((H + 2, W + 2, Ch), jnp.bfloat16)],
        compiler_params=pltpu.CompilerParams(
            dimension_semantics=("parallel",), vmem_limit_bytes=vmem_limit),
    )(h4, scale2, bias2, w2)

    # concat([out, x]) done lane-dense OUTSIDE the kernel.
    out_nchw = jnp.transpose(out_nhwc, (0, 3, 1, 2))
    return jnp.concatenate([out_nchw, x_f32], axis=1)


def reference(x, params):
    """Pure-JAX NCHW reference mirroring the PyTorch forward (ReLU, train-mode BN)."""
    g1, b1, w1, g2, b2, w2 = params

    def bn(y, g, b):
        m = jnp.mean(y, axis=(0, 2, 3), keepdims=True)
        v = jnp.var(y, axis=(0, 2, 3), keepdims=True)
        return (y - m) * jax.lax.rsqrt(v + EPS) * g.reshape(1, -1, 1, 1) \
            + b.reshape(1, -1, 1, 1)

    y = jnp.maximum(bn(x, g1, b1), 0.0)
    y = jax.lax.conv_general_dilated(
        y, w1, (1, 1), 'VALID', dimension_numbers=('NCHW', 'OIHW', 'NCHW'))
    y = jnp.maximum(bn(y, g2, b2), 0.0)
    y = jax.lax.conv_general_dilated(
        y, w2, (1, 1), ((1, 1), (1, 1)),
        dimension_numbers=('NCHW', 'OIHW', 'NCHW'))
    return jnp.concatenate([y, x], axis=1)


if __name__ == "__main__":
    key = jax.random.PRNGKey(0)
    N, Cin, H, W = 2, 4, 16, 16
    bn_size, growth = 2, 4
    Ch = bn_size * growth

    kx, kg1, kb1, kw1, kg2, kb2, kw2 = jax.random.split(key, 7)
    x = jax.random.normal(kx, (N, Cin, H, W), jnp.float32)
    params = (
        1.0 + 0.1 * jax.random.normal(kg1, (Cin,), jnp.float32),       # BN1 gamma
        0.1 * jax.random.normal(kb1, (Cin,), jnp.float32),             # BN1 beta
        0.1 * jax.random.normal(kw1, (Ch, Cin, 1, 1), jnp.float32),    # 1x1 conv w
        1.0 + 0.1 * jax.random.normal(kg2, (Ch,), jnp.float32),        # BN2 gamma
        0.1 * jax.random.normal(kb2, (Ch,), jnp.float32),              # BN2 beta
        0.1 * jax.random.normal(kw2, (growth, Ch, 3, 3), jnp.float32), # 3x3 conv w
    )

    fwd = jax.jit(dense_layer_forward)
    out = jax.block_until_ready(fwd(x, params))
    ref = reference(x, params)

    assert out.shape == (N, growth + Cin, H, W), out.shape
    err = float(jnp.max(jnp.abs(out - ref)))
    # Tolerance covers bf16 MXU operands plus the new bf16 x / h HBM streams
    # (accumulation and BN statistics remain f32).
    assert jnp.allclose(out, ref, atol=1e-1, rtol=1e-1), f"max abs err = {err}"
    print("KERNEL_OK")
</pallas_src>

<mosaic_0001>
module attributes {stable_mosaic.version = 11 : i64} {
  func.func @_stage1_kernel(%arg0: i32, %arg1: memref<512x4xbf16, #tpu.memory_space<vmem>>, %arg2: memref<1x4xf32, #tpu.memory_space<vmem>>, %arg3: memref<1x4xf32, #tpu.memory_space<vmem>>, %arg4: memref<4x8xbf16, #tpu.memory_space<vmem>>, %arg5: memref<512x8xbf16, #tpu.memory_space<vmem>>, %arg6: memref<1x2x8xf32, #tpu.memory_space<vmem>>) attributes {dimension_semantics = [#tpu.dimension_semantics<parallel>], iteration_bounds = array<i64: 1>, scalar_prefetch = 0 : i64, scratch_operands = 0 : i64, tpu.core_type = #tpu.core_type<tc>, window_params = [{transform_indices = @transform_0, window_bounds = array<i64: 512, 4>}, {pipeline_mode = #tpu.pipeline_mode<synchronous>, transform_indices = @transform_1, window_bounds = array<i64: 1, 4>}, {pipeline_mode = #tpu.pipeline_mode<synchronous>, transform_indices = @transform_2, window_bounds = array<i64: 1, 4>}, {pipeline_mode = #tpu.pipeline_mode<synchronous>, transform_indices = @transform_3, window_bounds = array<i64: 4, 8>}, {transform_indices = @transform_4, window_bounds = array<i64: 512, 8>}, {transform_indices = @transform_5, window_bounds = array<i64: 1, 2, 8>}]} {
    %c0 = arith.constant 0 : index
    %c0_0 = arith.constant 0 : index
    %0 = vector.load %arg1[%c0, %c0_0] : memref<512x4xbf16, #tpu.memory_space<vmem>>, vector<512x4xbf16>
    %1 = arith.extf %0 : vector<512x4xbf16> to vector<512x4xf32>
    %c0_1 = arith.constant 0 : index
    %c0_2 = arith.constant 0 : index
    %2 = vector.load %arg2[%c0_1, %c0_2] : memref<1x4xf32, #tpu.memory_space<vmem>>, vector<1x4xf32>
    %3 = vector.broadcast %2 : vector<1x4xf32> to vector<512x4xf32>
    %4 = arith.mulf %1, %3 : vector<512x4xf32>
    %c0_3 = arith.constant 0 : index
    %c0_4 = arith.constant 0 : index
    %5 = vector.load %arg3[%c0_3, %c0_4] : memref<1x4xf32, #tpu.memory_space<vmem>>, vector<1x4xf32>
    %6 = vector.broadcast %5 : vector<1x4xf32> to vector<512x4xf32>
    %7 = arith.addf %4, %6 : vector<512x4xf32>
    %cst = arith.constant 0.000000e+00 : f32
    %8 = vector.broadcast %cst : f32 to vector<512x4xf32>
    %9 = arith.maximumf %7, %8 : vector<512x4xf32>
    %10 = arith.truncf %9 : vector<512x4xf32> to vector<512x4xbf16>
    %c0_5 = arith.constant 0 : index
    %c0_6 = arith.constant 0 : index
    %11 = vector.load %arg4[%c0_5, %c0_6] : memref<4x8xbf16, #tpu.memory_space<vmem>>, vector<4x8xbf16>
    %cst_7 = arith.constant dense<0.000000e+00> : vector<512x8xf32>
    %12 = tpu.matmul %10, %11, %cst_7 {dimension_numbers = #tpu.dot_dimension_numbers<[1], [0], [0], [1], [0, 0, 1, 1], [], []>} : vector<512x4xbf16>, vector<4x8xbf16>, vector<512x8xf32> -> vector<512x8xf32>
    %13 = arith.truncf %12 : vector<512x8xf32> to vector<512x8xbf16>
    %c0_8 = arith.constant 0 : index
    %c0_9 = arith.constant 0 : index
    %14 = vector.load %arg5[%c0_8, %c0_9] : memref<512x8xbf16, #tpu.memory_space<vmem>>, vector<512x8xbf16>
    tpu.vector_store %arg5[%c0_8, %c0_9], %13 {strides = array<i32>} : memref<512x8xbf16, #tpu.memory_space<vmem>>, vector<512x8xbf16>,
    %cst_10 = arith.constant dense<0.000000e+00> : vector<8xf32>
    %15 = vector.multi_reduction <add>, %12, %cst_10 [0] : vector<512x8xf32> to vector<8xf32>
    %16 = vector.shape_cast %15 : vector<8xf32> to vector<1x8xf32>
    %17 = arith.mulf %12, %12 : vector<512x8xf32>
    %cst_11 = arith.constant dense<0.000000e+00> : vector<8xf32>
    %18 = vector.multi_reduction <add>, %17, %cst_11 [0] : vector<512x8xf32> to vector<8xf32>
    %19 = vector.shape_cast %18 : vector<8xf32> to vector<1x8xf32>
    %20 = tpu.concatenate %16, %19 in 0 : vector<1x8xf32>, vector<1x8xf32> -> vector<2x8xf32>
    %c0_12 = arith.constant 0 : index
    %c0_13 = arith.constant 0 : index
    %c0_14 = arith.constant 0 : index
    %21 = vector.load %arg6[%c0_12, %c0_13, %c0_14] : memref<1x2x8xf32, #tpu.memory_space<vmem>>, vector<1x2x8xf32>
    %22 = vector.shape_cast %21 : vector<1x2x8xf32> to vector<2x8xf32>
    %23 = vector.shape_cast %20 : vector<2x8xf32> to vector<1x2x8xf32>
    tpu.vector_store %arg6[%c0_12, %c0_13, %c0_14], %23 {strides = array<i32>} : memref<1x2x8xf32, #tpu.memory_space<vmem>>, vector<1x2x8xf32>,
    return
  }
  func.func @transform_0(%arg0: i32) -> (i32, i32) {
    %c0_i32 = arith.constant 0 : i32
    %c0_i32_0 = arith.constant 0 : i32
    return %arg0, %c0_i32 : i32, i32
  }
  func.func @transform_1(%arg0: i32) -> (i32, i32) {
    %c0_i32 = arith.constant 0 : i32
    %c0_i32_0 = arith.constant 0 : i32
    %c0_i32_1 = arith.constant 0 : i32
    return %c0_i32, %c0_i32_0 : i32, i32
  }
  func.func @transform_2(%arg0: i32) -> (i32, i32) {
    %c0_i32 = arith.constant 0 : i32
    %c0_i32_0 = arith.constant 0 : i32
    %c0_i32_1 = arith.constant 0 : i32
    return %c0_i32, %c0_i32_0 : i32, i32
  }
  func.func @transform_3(%arg0: i32) -> (i32, i32) {
    %c0_i32 = arith.constant 0 : i32
    %c0_i32_0 = arith.constant 0 : i32
    %c0_i32_1 = arith.constant 0 : i32
    return %c0_i32, %c0_i32_0 : i32, i32
  }
  func.func @transform_4(%arg0: i32) -> (i32, i32) {
    %c0_i32 = arith.constant 0 : i32
    %c0_i32_0 = arith.constant 0 : i32
    return %arg0, %c0_i32 : i32, i32
  }
  func.func @transform_5(%arg0: i32) -> (i32, i32, i32) {
    %c0_i32 = arith.constant 0 : i32
    %c0_i32_0 = arith.constant 0 : i32
    %c0_i32_1 = arith.constant 0 : i32
    return %arg0, %c0_i32, %c0_i32_0 : i32, i32, i32
  }
}

module attributes {stable_mosaic.version = 11 : i64} {
  func.func @_stage2_kernel(%arg0: i32, %arg1: memref<1x16x16x8xbf16, #tpu.memory_space<vmem>>, %arg2: memref<1x8xf32, #tpu.memory_space<vmem>>, %arg3: memref<1x8xf32, #tpu.memory_space<vmem>>, %arg4: memref<9x8x4xbf16, #tpu.memory_space<vmem>>, %arg5: memref<1x16x16x4xf32, #tpu.memory_space<vmem>>, %arg6: memref<18x18x8xbf16, #tpu.memory_space<vmem>>) attributes {dimension_semantics = [#tpu.dimension_semantics<parallel>], iteration_bounds = array<i64: 2>, scalar_prefetch = 0 : i64, scratch_operands = 1 : i64, tpu.core_type = #tpu.core_type<tc>, window_params = [{transform_indices = @transform_0, window_bounds = array<i64: 1, 16, 16, 8>}, {pipeline_mode = #tpu.pipeline_mode<synchronous>, transform_indices = @transform_1, window_bounds = array<i64: 1, 8>}, {pipeline_mode = #tpu.pipeline_mode<synchronous>, transform_indices = @transform_2, window_bounds = array<i64: 1, 8>}, {pipeline_mode = #tpu.pipeline_mode<synchronous>, transform_indices = @transform_3, window_bounds = array<i64: 9, 8, 4>}, {transform_indices = @transform_4, window_bounds = array<i64: 1, 16, 16, 4>}]} {
    %cst = arith.constant 0.000000e+00 : bf16
    %0 = vector.broadcast %cst : bf16 to vector<1x18x8xbf16>
    %c0 = arith.constant 0 : index
    %c0_0 = arith.constant 0 : index
    %c0_1 = arith.constant 0 : index
    %1 = vector.load %arg6[%c0, %c0_0, %c0_1] : memref<18x18x8xbf16, #tpu.memory_space<vmem>>, vector<1x18x8xbf16>
    tpu.vector_store %arg6[%c0, %c0_0, %c0_1], %0 {strides = array<i32>} : memref<18x18x8xbf16, #tpu.memory_space<vmem>>, vector<1x18x8xbf16>,
    %cst_2 = arith.constant 0.000000e+00 : bf16
    %2 = vector.broadcast %cst_2 : bf16 to vector<1x18x8xbf16>
    %c17 = arith.constant 17 : index
    %c0_3 = arith.constant 0 : index
    %c0_4 = arith.constant 0 : index
    %3 = vector.load %arg6[%c17, %c0_3, %c0_4] : memref<18x18x8xbf16, #tpu.memory_space<vmem>>, vector<1x18x8xbf16>
    tpu.vector_store %arg6[%c17, %c0_3, %c0_4], %2 {strides = array<i32>} : memref<18x18x8xbf16, #tpu.memory_space<vmem>>, vector<1x18x8xbf16>,
    %cst_5 = arith.constant 0.000000e+00 : bf16
    %4 = vector.broadcast %cst_5 : bf16 to vector<18x1x8xbf16>
    %c0_6 = arith.constant 0 : index
    %c0_7 = arith.constant 0 : index
    %c0_8 = arith.constant 0 : index
    %5 = vector.load %arg6[%c0_6, %c0_7, %c0_8] : memref<18x18x8xbf16, #tpu.memory_space<vmem>>, vector<18x1x8xbf16>
    tpu.vector_store %arg6[%c0_6, %c0_7, %c0_8], %4 {strides = array<i32>} : memref<18x18x8xbf16, #tpu.memory_space<vmem>>, vector<18x1x8xbf16>,
    %cst_9 = arith.constant 0.000000e+00 : bf16
    %6 = vector.broadcast %cst_9 : bf16 to vector<18x1x8xbf16>
    %c0_10 = arith.constant 0 : index
    %c17_11 = arith.constant 17 : index
    %c0_12 = arith.constant 0 : index
    %7 = vector.load %arg6[%c0_10, %c17_11, %c0_12] : memref<18x18x8xbf16, #tpu.memory_space<vmem>>, vector<18x1x8xbf16>
    tpu.vector_store %arg6[%c0_10, %c17_11, %c0_12], %6 {strides = array<i32>} : memref<18x18x8xbf16, #tpu.memory_space<vmem>>, vector<18x1x8xbf16>,
    %c0_13 = arith.constant 0 : index
    %c0_14 = arith.constant 0 : index
    %c0_15 = arith.constant 0 : index
    %c0_16 = arith.constant 0 : index
    %8 = vector.load %arg1[%c0_13, %c0_14, %c0_15, %c0_16] : memref<1x16x16x8xbf16, #tpu.memory_space<vmem>>, vector<1x16x16x8xbf16>
    %9 = vector.shape_cast %8 : vector<1x16x16x8xbf16> to vector<16x16x8xbf16>
    %10 = arith.extf %9 : vector<16x16x8xbf16> to vector<16x16x8xf32>
    %c0_17 = arith.constant 0 : index
    %c0_18 = arith.constant 0 : index
    %11 = vector.load %arg2[%c0_17, %c0_18] : memref<1x8xf32, #tpu.memory_space<vmem>>, vector<1x8xf32>
    %12 = vector.shape_cast %11 : vector<1x8xf32> to vector<1x1x8xf32>
    %13 = vector.broadcast %12 : vector<1x1x8xf32> to vector<16x16x8xf32>
    %14 = arith.mulf %10, %13 : vector<16x16x8xf32>
    %c0_19 = arith.constant 0 : index
    %c0_20 = arith.constant 0 : index
    %15 = vector.load %arg3[%c0_19, %c0_20] : memref<1x8xf32, #tpu.memory_space<vmem>>, vector<1x8xf32>
    %16 = vector.shape_cast %15 : vector<1x8xf32> to vector<1x1x8xf32>
    %17 = vector.broadcast %16 : vector<1x1x8xf32> to vector<16x16x8xf32>
    %18 = arith.addf %14, %17 : vector<16x16x8xf32>
    %cst_21 = arith.constant 0.000000e+00 : f32
    %19 = vector.broadcast %cst_21 : f32 to vector<16x16x8xf32>
    %20 = arith.maximumf %18, %19 : vector<16x16x8xf32>
    %21 = arith.truncf %20 : vector<16x16x8xf32> to vector<16x16x8xbf16>
    %c1 = arith.constant 1 : index
    %c1_22 = arith.constant 1 : index
    %c0_23 = arith.constant 0 : index
    %22 = vector.load %arg6[%c1, %c1_22, %c0_23] : memref<18x18x8xbf16, #tpu.memory_space<vmem>>, vector<16x16x8xbf16>
    tpu.vector_store %arg6[%c1, %c1_22, %c0_23], %21 {strides = array<i32>} : memref<18x18x8xbf16, #tpu.memory_space<vmem>>, vector<16x16x8xbf16>,
    %cst_24 = arith.constant 0.000000e+00 : f32
    %23 = vector.broadcast %cst_24 : f32 to vector<256x4xf32>
    %c0_25 = arith.constant 0 : index
    %c0_26 = arith.constant 0 : index
    %c0_27 = arith.constant 0 : index
    %24 = vector.load %arg6[%c0_25, %c0_26, %c0_27] : memref<18x18x8xbf16, #tpu.memory_space<vmem>>, vector<16x16x8xbf16>
    %25 = vector.shape_cast %24 : vector<16x16x8xbf16> to vector<256x8xbf16>
    %c0_28 = arith.constant 0 : index
    %c0_29 = arith.constant 0 : index
    %c0_30 = arith.constant 0 : index
    %26 = vector.load %arg4[%c0_28, %c0_29, %c0_30] : memref<9x8x4xbf16, #tpu.memory_space<vmem>>, vector<1x8x4xbf16>
    %27 = vector.shape_cast %26 : vector<1x8x4xbf16> to vector<8x4xbf16>
    %cst_31 = arith.constant dense<0.000000e+00> : vector<256x4xf32>
    %28 = tpu.matmul %25, %27, %cst_31 {dimension_numbers = #tpu.dot_dimension_numbers<[1], [0], [0], [1], [0, 0, 1, 1], [], []>} : vector<256x8xbf16>, vector<8x4xbf16>, vector<256x4xf32> -> vector<256x4xf32>
    %29 = arith.addf %23, %28 : vector<256x4xf32>
    %c0_32 = arith.constant 0 : index
    %c1_33 = arith.constant 1 : index
    %c0_34 = arith.constant 0 : index
    %30 = vector.load %arg6[%c0_32, %c1_33, %c0_34] : memref<18x18x8xbf16, #tpu.memory_space<vmem>>, vector<16x16x8xbf16>
    %31 = vector.shape_cast %30 : vector<16x16x8xbf16> to vector<256x8xbf16>
    %c1_35 = arith.constant 1 : index
    %c0_36 = arith.constant 0 : index
    %c0_37 = arith.constant 0 : index
    %32 = vector.load %arg4[%c1_35, %c0_36, %c0_37] : memref<9x8x4xbf16, #tpu.memory_space<vmem>>, vector<1x8x4xbf16>
    %33 = vector.shape_cast %32 : vector<1x8x4xbf16> to vector<8x4xbf16>
    %cst_38 = arith.constant dense<0.000000e+00> : vector<256x4xf32>
    %34 = tpu.matmul %31, %33, %cst_38 {dimension_numbers = #tpu.dot_dimension_numbers<[1], [0], [0], [1], [0, 0, 1, 1], [], []>} : vector<256x8xbf16>, vector<8x4xbf16>, vector<256x4xf32> -> vector<256x4xf32>
    %35 = arith.addf %29, %34 : vector<256x4xf32>
    %c0_39 = arith.constant 0 : index
    %c2 = arith.constant 2 : index
    %c0_40 = arith.constant 0 : index
    %36 = vector.load %arg6[%c0_39, %c2, %c0_40] : memref<18x18x8xbf16, #tpu.memory_space<vmem>>, vector<16x16x8xbf16>
    %37 = vector.shape_cast %36 : vector<16x16x8xbf16> to vector<256x8xbf16>
    %c2_41 = arith.constant 2 : index
    %c0_42 = arith.constant 0 : index
    %c0_43 = arith.constant 0 : index
    %38 = vector.load %arg4[%c2_41, %c0_42, %c0_43] : memref<9x8x4xbf16, #tpu.memory_space<vmem>>, vector<1x8x4xbf16>
    %39 = vector.shape_cast %38 : vector<1x8x4xbf16> to vector<8x4xbf16>
    %cst_44 = arith.constant dense<0.000000e+00> : vector<256x4xf32>
    %40 = tpu.matmul %37, %39, %cst_44 {dimension_numbers = #tpu.dot_dimension_numbers<[1], [0], [0], [1], [0, 0, 1, 1], [], []>} : vector<256x8xbf16>, vector<8x4xbf16>, vector<256x4xf32> -> vector<256x4xf32>
    %41 = arith.addf %35, %40 : vector<256x4xf32>
    %c1_45 = arith.constant 1 : index
    %c0_46 = arith.constant 0 : index
    %c0_47 = arith.constant 0 : index
    %42 = vector.load %arg6[%c1_45, %c0_46, %c0_47] : memref<18x18x8xbf16, #tpu.memory_space<vmem>>, vector<16x16x8xbf16>
    %43 = vector.shape_cast %42 : vector<16x16x8xbf16> to vector<256x8xbf16>
    %c3 = arith.constant 3 : index
    %c0_48 = arith.constant 0 : index
    %c0_49 = arith.constant 0 : index
    %44 = vector.load %arg4[%c3, %c0_48, %c0_49] : memref<9x8x4xbf16, #tpu.memory_space<vmem>>, vector<1x8x4xbf16>
    %45 = vector.shape_cast %44 : vector<1x8x4xbf16> to vector<8x4xbf16>
    %cst_50 = arith.constant dense<0.000000e+00> : vector<256x4xf32>
    %46 = tpu.matmul %43, %45, %cst_50 {dimension_numbers = #tpu.dot_dimension_numbers<[1], [0], [0], [1], [0, 0, 1, 1], [], []>} : vector<256x8xbf16>, vector<8x4xbf16>, vector<256x4xf32> -> vector<256x4xf32>
    %47 = arith.addf %41, %46 : vector<256x4xf32>
    %c1_51 = arith.constant 1 : index
    %c1_52 = arith.constant 1 : index
    %c0_53 = arith.constant 0 : index
    %48 = vector.load %arg6[%c1_51, %c1_52, %c0_53] : memref<18x18x8xbf16, #tpu.memory_space<vmem>>, vector<16x16x8xbf16>
    %49 = vector.shape_cast %48 : vector<16x16x8xbf16> to vector<256x8xbf16>
    %c4 = arith.constant 4 : index
    %c0_54 = arith.constant 0 : index
    %c0_55 = arith.constant 0 : index
    %50 = vector.load %arg4[%c4, %c0_54, %c0_55] : memref<9x8x4xbf16, #tpu.memory_space<vmem>>, vector<1x8x4xbf16>
    %51 = vector.shape_cast %50 : vector<1x8x4xbf16> to vector<8x4xbf16>
    %cst_56 = arith.constant dense<0.000000e+00> : vector<256x4xf32>
    %52 = tpu.matmul %49, %51, %cst_56 {dimension_numbers = #tpu.dot_dimension_numbers<[1], [0], [0], [1], [0, 0, 1, 1], [], []>} : vector<256x8xbf16>, vector<8x4xbf16>, vector<256x4xf32> -> vector<256x4xf32>
    %53 = arith.addf %47, %52 : vector<256x4xf32>
    %c1_57 = arith.constant 1 : index
    %c2_58 = arith.constant 2 : index
    %c0_59 = arith.constant 0 : index
    %54 = vector.load %arg6[%c1_57, %c2_58, %c0_59] : memref<18x18x8xbf16, #tpu.memory_space<vmem>>, vector<16x16x8xbf16>
    %55 = vector.shape_cast %54 : vector<16x16x8xbf16> to vector<256x8xbf16>
    %c5 = arith.constant 5 : index
    %c0_60 = arith.constant 0 : index
    %c0_61 = arith.constant 0 : index
    %56 = vector.load %arg4[%c5, %c0_60, %c0_61] : memref<9x8x4xbf16, #tpu.memory_space<vmem>>, vector<1x8x4xbf16>
    %57 = vector.shape_cast %56 : vector<1x8x4xbf16> to vector<8x4xbf16>
    %cst_62 = arith.constant dense<0.000000e+00> : vector<256x4xf32>
    %58 = tpu.matmul %55, %57, %cst_62 {dimension_numbers = #tpu.dot_dimension_numbers<[1], [0], [0], [1], [0, 0, 1, 1], [], []>} : vector<256x8xbf16>, vector<8x4xbf16>, vector<256x4xf32> -> vector<256x4xf32>
    %59 = arith.addf %53, %58 : vector<256x4xf32>
    %c2_63 = arith.constant 2 : index
    %c0_64 = arith.constant 0 : index
    %c0_65 = arith.constant 0 : index
    %60 = vector.load %arg6[%c2_63, %c0_64, %c0_65] : memref<18x18x8xbf16, #tpu.memory_space<vmem>>, vector<16x16x8xbf16>
    %61 = vector.shape_cast %60 : vector<16x16x8xbf16> to vector<256x8xbf16>
    %c6 = arith.constant 6 : index
    %c0_66 = arith.constant 0 : index
    %c0_67 = arith.constant 0 : index
    %62 = vector.load %arg4[%c6, %c0_66, %c0_67] : memref<9x8x4xbf16, #tpu.memory_space<vmem>>, vector<1x8x4xbf16>
    %63 = vector.shape_cast %62 : vector<1x8x4xbf16> to vector<8x4xbf16>
    %cst_68 = arith.constant dense<0.000000e+00> : vector<256x4xf32>
    %64 = tpu.matmul %61, %63, %cst_68 {dimension_numbers = #tpu.dot_dimension_numbers<[1], [0], [0], [1], [0, 0, 1, 1], [], []>} : vector<256x8xbf16>, vector<8x4xbf16>, vector<256x4xf32> -> vector<256x4xf32>
    %65 = arith.addf %59, %64 : vector<256x4xf32>
    %c2_69 = arith.constant 2 : index
    %c1_70 = arith.constant 1 : index
    %c0_71 = arith.constant 0 : index
    %66 = vector.load %arg6[%c2_69, %c1_70, %c0_71] : memref<18x18x8xbf16, #tpu.memory_space<vmem>>, vector<16x16x8xbf16>
    %67 = vector.shape_cast %66 : vector<16x16x8xbf16> to vector<256x8xbf16>
    %c7 = arith.constant 7 : index
    %c0_72 = arith.constant 0 : index
    %c0_73 = arith.constant 0 : index
    %68 = vector.load %arg4[%c7, %c0_72, %c0_73] : memref<9x8x4xbf16, #tpu.memory_space<vmem>>, vector<1x8x4xbf16>
    %69 = vector.shape_cast %68 : vector<1x8x4xbf16> to vector<8x4xbf16>
    %cst_74 = arith.constant dense<0.000000e+00> : vector<256x4xf32>
    %70 = tpu.matmul %67, %69, %cst_74 {dimension_numbers = #tpu.dot_dimension_numbers<[1], [0], [0], [1], [0, 0, 1, 1], [], []>} : vector<256x8xbf16>, vector<8x4xbf16>, vector<256x4xf32> -> vector<256x4xf32>
    %71 = arith.addf %65, %70 : vector<256x4xf32>
    %c2_75 = arith.constant 2 : index
    %c2_76 = arith.constant 2 : index
    %c0_77 = arith.constant 0 : index
    %72 = vector.load %arg6[%c2_75, %c2_76, %c0_77] : memref<18x18x8xbf16, #tpu.memory_space<vmem>>, vector<16x16x8xbf16>
    %73 = vector.shape_cast %72 : vector<16x16x8xbf16> to vector<256x8xbf16>
    %c8 = arith.constant 8 : index
    %c0_78 = arith.constant 0 : index
    %c0_79 = arith.constant 0 : index
    %74 = vector.load %arg4[%c8, %c0_78, %c0_79] : memref<9x8x4xbf16, #tpu.memory_space<vmem>>, vector<1x8x4xbf16>
    %75 = vector.shape_cast %74 : vector<1x8x4xbf16> to vector<8x4xbf16>
    %cst_80 = arith.constant dense<0.000000e+00> : vector<256x4xf32>
    %76 = tpu.matmul %73, %75, %cst_80 {dimension_numbers = #tpu.dot_dimension_numbers<[1], [0], [0], [1], [0, 0, 1, 1], [], []>} : vector<256x8xbf16>, vector<8x4xbf16>, vector<256x4xf32> -> vector<256x4xf32>
    %77 = arith.addf %71, %76 : vector<256x4xf32>
    %78 = vector.shape_cast %77 : vector<256x4xf32> to vector<16x16x4xf32>
    %c0_81 = arith.constant 0 : index
    %c0_82 = arith.constant 0 : index
    %c0_83 = arith.constant 0 : index
    %c0_84 = arith.constant 0 : index
    %79 = vector.load %arg5[%c0_81, %c0_82, %c0_83, %c0_84] : memref<1x16x16x4xf32, #tpu.memory_space<vmem>>, vector<1x16x16x4xf32>
    %80 = vector.shape_cast %79 : vector<1x16x16x4xf32> to vector<16x16x4xf32>
    %81 = vector.shape_cast %78 : vector<16x16x4xf32> to vector<1x16x16x4xf32>
    tpu.vector_store %arg5[%c0_81, %c0_82, %c0_83, %c0_84], %81 {strides = array<i32>} : memref<1x16x16x4xf32, #tpu.memory_space<vmem>>, vector<1x16x16x4xf32>,
    return
  }
  func.func @transform_0(%arg0: i32) -> (i32, i32, i32, i32) {
    %c0_i32 = arith.constant 0 : i32
    %c0_i32_0 = arith.constant 0 : i32
    %c0_i32_1 = arith.constant 0 : i32
    %c0_i32_2 = arith.constant 0 : i32
    return %arg0, %c0_i32, %c0_i32_0, %c0_i32_1 : i32, i32, i32, i32
  }
  func.func @transform_1(%arg0: i32) -> (i32, i32) {
    %c0_i32 = arith.constant 0 : i32
    %c0_i32_0 = arith.constant 0 : i32
    %c0_i32_1 = arith.constant 0 : i32
    return %c0_i32, %c0_i32_0 : i32, i32
  }
  func.func @transform_2(%arg0: i32) -> (i32, i32) {
    %c0_i32 = arith.constant 0 : i32
    %c0_i32_0 = arith.constant 0 : i32
    %c0_i32_1 = arith.constant 0 : i32
    return %c0_i32, %c0_i32_0 : i32, i32
  }
  func.func @transform_3(%arg0: i32) -> (i32, i32, i32) {
    %c0_i32 = arith.constant 0 : i32
    %c0_i32_0 = arith.constant 0 : i32
    %c0_i32_1 = arith.constant 0 : i32
    %c0_i32_2 = arith.constant 0 : i32
    return %c0_i32, %c0_i32_0, %c0_i32_1 : i32, i32, i32
  }
  func.func @transform_4(%arg0: i32) -> (i32, i32, i32, i32) {
    %c0_i32 = arith.constant 0 : i32
    %c0_i32_0 = arith.constant 0 : i32
    %c0_i32_1 = arith.constant 0 : i32
    %c0_i32_2 = arith.constant 0 : i32
    return %arg0, %c0_i32, %c0_i32_0, %c0_i32_1 : i32, i32, i32, i32
  }
}

</mosaic_0001>

<llo_original>
// kernel: dense_layer_forward.2
$region0: #{dense_layer_forward.2}
  #allocation0 [shape = 'u32[]', space=smem, size = 0x4, offset = 0x4, fixed_abs, tag = 'smem constant byte address 0x4 - core index']
  #allocation1 [shape = 'u32[144,128]{1,0:T(1,128)}', space=vmem, size = 0x12000, scoped, tag = 'internal scratch']
  %s0 = inlined_call_operand.vmem [shape: bf16[512,4], index: 0, kind: input, shape index: {}]
  %s1 = inlined_call_operand.vmem [shape: f32[1,4], index: 1, kind: input, shape index: {}]
  %s2 = inlined_call_operand.vmem [shape: f32[1,4], index: 2, kind: input, shape index: {}]
  %s3 = inlined_call_operand.vmem [shape: bf16[4,8], index: 3, kind: input, shape index: {}]
  %s4 = inlined_call_operand.vmem [shape: bf16[512,8], index: 4, kind: output, shape index: {0}]
  %s5 = inlined_call_operand.vmem [shape: f32[1,2,8], index: 5, kind: output, shape index: {1}]
  %6 = xla_tuple %s4, %s5
  %s7 = sld [smem:[#allocation0]]
  $region34: #{dense_layer_forward.2} parent=0
    _
  %s9 = ssub.s32 1, %s7
  %s10 = scalar_select 0, %s9, %s7
  // Predicated region
  $region2: #{dense_layer_forward.2} parent=0 // pred_check
    _
  $region3: #{dense_layer_forward.2} parent=0 // pred_check_branch
    %12 = sbr.rel (0) target = $region5
  $region4: #{dense_layer_forward.2} parent=0 // pred_region
    _
  $region5: #{dense_layer_forward.2} parent=0 // pred_fallthru
    _
  // Predicated region
  $region6: #{dense_layer_forward.2} parent=0 // pred_check
    _
  $region7: #{dense_layer_forward.2} parent=0 // pred_check_branch
    %14 = sbr.rel (0) target = $region9
  $region8: #{dense_layer_forward.2} parent=0 // pred_region
    _
  $region9: #{dense_layer_forward.2} parent=0 // pred_fallthru
    _
  // Predicated region
  $region10: #{dense_layer_forward.2} parent=0 // pred_check
    _
  $region11: #{dense_layer_forward.2} parent=0 // pred_check_branch
    %16 = sbr.rel (0) target = $region13
  $region12: #{dense_layer_forward.2} parent=0 // pred_region
    _
  $region13: #{dense_layer_forward.2} parent=0 // pred_fallthru
    _
  // Predicated region
  $region14: #{dense_layer_forward.2} parent=0 // pred_check
    _
  $region15: #{dense_layer_forward.2} parent=0 // pred_check_branch
    %18 = sbr.rel (0) target = $region17
  $region16: #{dense_layer_forward.2} parent=0 // pred_region
    _
  $region17: #{dense_layer_forward.2} parent=0 // pred_fallthru
    _
  %v20 = vld [vmem:[%s0] sm:$0xf]
  %v21 = vld [vmem:[%s0 + $0x4] sm:$0xf]
  %v22 = vld [vmem:[%s0 + $0x8] sm:$0xf]
  %v23 = vld [vmem:[%s0 + $0xc] sm:$0xf]
  %v24 = vld [vmem:[%s0 + $0x10] sm:$0xf]
  %v25 = vld [vmem:[%s0 + $0x14] sm:$0xf]
  %v26 = vld [vmem:[%s0 + $0x18] sm:$0xf]
  %v27 = vld [vmem:[%s0 + $0x1c] sm:$0xf]
  %v28 = vld [vmem:[%s0 + $0x20] sm:$0xf]
  %v29 = vld [vmem:[%s0 + $0x24] sm:$0xf]
  %v30 = vld [vmem:[%s0 + $0x28] sm:$0xf]
  %v31 = vld [vmem:[%s0 + $0x2c] sm:$0xf]
  %v32 = vld [vmem:[%s0 + $0x30] sm:$0xf]
  %v33 = vld [vmem:[%s0 + $0x34] sm:$0xf]
  %v34 = vld [vmem:[%s0 + $0x38] sm:$0xf]
  %v35 = vld [vmem:[%s0 + $0x3c] sm:$0xf]
  %v36 = vld [vmem:[%s0 + $0x40] sm:$0xf]
  %v37 = vld [vmem:[%s0 + $0x44] sm:$0xf]
  %v38 = vld [vmem:[%s0 + $0x48] sm:$0xf]
  %v39 = vld [vmem:[%s0 + $0x4c] sm:$0xf]
  %v40 = vld [vmem:[%s0 + $0x50] sm:$0xf]
  %v41 = vld [vmem:[%s0 + $0x54] sm:$0xf]
  %v42 = vld [vmem:[%s0 + $0x58] sm:$0xf]
  %v43 = vld [vmem:[%s0 + $0x5c] sm:$0xf]
  %v44 = vld [vmem:[%s0 + $0x60] sm:$0xf]
  %v45 = vld [vmem:[%s0 + $0x64] sm:$0xf]
  %v46 = vld [vmem:[%s0 + $0x68] sm:$0xf]
  %v47 = vld [vmem:[%s0 + $0x6c] sm:$0xf]
  %v48 = vld [vmem:[%s0 + $0x70] sm:$0xf]
  %v49 = vld [vmem:[%s0 + $0x74] sm:$0xf]
  %v50 = vld [vmem:[%s0 + $0x78] sm:$0xf]
  %v51 = vld [vmem:[%s0 + $0x7c] sm:$0xf]
  %v52 = vld [vmem:[%s0 + $0x80] sm:$0xf]
  %v53 = vld [vmem:[%s0 + $0x84] sm:$0xf]
  %v54 = vld [vmem:[%s0 + $0x88] sm:$0xf]
  %v55 = vld [vmem:[%s0 + $0x8c] sm:$0xf]
  %v56 = vld [vmem:[%s0 + $0x90] sm:$0xf]
  %v57 = vld [vmem:[%s0 + $0x94] sm:$0xf]
  %v58 = vld [vmem:[%s0 + $0x98] sm:$0xf]
  %v59 = vld [vmem:[%s0 + $0x9c] sm:$0xf]
  %v60 = vld [vmem:[%s0 + $0xa0] sm:$0xf]
  %v61 = vld [vmem:[%s0 + $0xa4] sm:$0xf]
  %v62 = vld [vmem:[%s0 + $0xa8] sm:$0xf]
  %v63 = vld [vmem:[%s0 + $0xac] sm:$0xf]
  %v64 = vld [vmem:[%s0 + $0xb0] sm:$0xf]
  %v65 = vld [vmem:[%s0 + $0xb4] sm:$0xf]
  %v66 = vld [vmem:[%s0 + $0xb8] sm:$0xf]
  %v67 = vld [vmem:[%s0 + $0xbc] sm:$0xf]
  %v68 = vld [vmem:[%s0 + $0xc0] sm:$0xf]
  %v69 = vld [vmem:[%s0 + $0xc4] sm:$0xf]
  %v70 = vld [vmem:[%s0 + $0xc8] sm:$0xf]
  %v71 = vld [vmem:[%s0 + $0xcc] sm:$0xf]
  %v72 = vld [vmem:[%s0 + $0xd0] sm:$0xf]
  %v73 = vld [vmem:[%s0 + $0xd4] sm:$0xf]
  %v74 = vld [vmem:[%s0 + $0xd8] sm:$0xf]
  %v75 = vld [vmem:[%s0 + $0xdc] sm:$0xf]
  %v76 = vld [vmem:[%s0 + $0xe0] sm:$0xf]
  %v77 = vld [vmem:[%s0 + $0xe4] sm:$0xf]
  %v78 = vld [vmem:[%s0 + $0xe8] sm:$0xf]
  %v79 = vld [vmem:[%s0 + $0xec] sm:$0xf]
  %v80 = vld [vmem:[%s0 + $0xf0] sm:$0xf]
  %v81 = vld [vmem:[%s0 + $0xf4] sm:$0xf]
  %v82 = vld [vmem:[%s0 + $0xf8] sm:$0xf]
  %v83 = vld [vmem:[%s0 + $0xfc] sm:$0xf]
  %v84 = vunpack.c.l.bf16 %v20
  %v85 = vunpack.c.l.bf16 %v21
  %v86 = vunpack.c.l.bf16 %v22
  %v87 = vunpack.c.l.bf16 %v23
  %v88 = vunpack.c.l.bf16 %v24
  %v89 = vunpack.c.l.bf16 %v25
  %v90 = vunpack.c.l.bf16 %v26
  %v91 = vunpack.c.l.bf16 %v27
  %v92 = vunpack.c.l.bf16 %v28
  %v93 = vunpack.c.l.bf16 %v29
  %v94 = vunpack.c.l.bf16 %v30
  %v95 = vunpack.c.l.bf16 %v31
  %v96 = vunpack.c.l.bf16 %v32
  %v97 = vunpack.c.l.bf16 %v33
  %v98 = vunpack.c.l.bf16 %v34
  %v99 = vunpack.c.l.bf16 %v35
  %v100 = vunpack.c.l.bf16 %v36
  %v101 = vunpack.c.l.bf16 %v37
  %v102 = vunpack.c.l.bf16 %v38
  %v103 = vunpack.c.l.bf16 %v39
  %v104 = vunpack.c.l.bf16 %v40
  %v105 = vunpack.c.l.bf16 %v41
  %v106 = vunpack.c.l.bf16 %v42
  %v107 = vunpack.c.l.bf16 %v43
  %v108 = vunpack.c.l.bf16 %v44
  %v109 = vunpack.c.l.bf16 %v45
  %v110 = vunpack.c.l.bf16 %v46
  %v111 = vunpack.c.l.bf16 %v47
  %v112 = vunpack.c.l.bf16 %v48
  %v113 = vunpack.c.l.bf16 %v49
  %v114 = vunpack.c.l.bf16 %v50
  %v115 = vunpack.c.l.bf16 %v51
  %v116 = vunpack.c.l.bf16 %v52
  %v117 = vunpack.c.l.bf16 %v53
  %v118 = vunpack.c.l.bf16 %v54
  %v119 = vunpack.c.l.bf16 %v55
  %v120 = vunpack.c.l.bf16 %v56
  %v121 = vunpack.c.l.bf16 %v57
  %v122 = vunpack.c.l.bf16 %v58
  %v123 = vunpack.c.l.bf16 %v59
  %v124 = vunpack.c.l.bf16 %v60
  %v125 = vunpack.c.l.bf16 %v61
  %v126 = vunpack.c.l.bf16 %v62
  %v127 = vunpack.c.l.bf16 %v63
  %v128 = vunpack.c.l.bf16 %v64
  %v129 = vunpack.c.l.bf16 %v65
  %v130 = vunpack.c.l.bf16 %v66
  %v131 = vunpack.c.l.bf16 %v67
  %v132 = vunpack.c.l.bf16 %v68
  %v133 = vunpack.c.l.bf16 %v69
  %v134 = vunpack.c.l.bf16 %v70
  %v135 = vunpack.c.l.bf16 %v71
  %v136 = vunpack.c.l.bf16 %v72
  %v137 = vunpack.c.l.bf16 %v73
  %v138 = vunpack.c.l.bf16 %v74
  %v139 = vunpack.c.l.bf16 %v75
  %v140 = vunpack.c.l.bf16 %v76
  %v141 = vunpack.c.l.bf16 %v77
  %v142 = vunpack.c.l.bf16 %v78
  %v143 = vunpack.c.l.bf16 %v79
  %v144 = vunpack.c.l.bf16 %v80
  %v145 = vunpack.c.l.bf16 %v81
  %v146 = vunpack.c.l.bf16 %v82
  %v147 = vunpack.c.l.bf16 %v83
  %v148 = vld [vmem:[%s1] sm:$0x1]
  %v150 = vlaneseq
  %v151 = vshrl.u32 %v150, 7
  %v152 = vsub.s32 0, %v151
  %v153 = vrot.slane %v148, %v152
  %v155 = vmul.f32 %v84, %v153
  %v156 = vmul.f32 %v85, %v153
  %v157 = vmul.f32 %v86, %v153
  %v158 = vmul.f32 %v87, %v153
  %v159 = vmul.f32 %v88, %v153
  %v160 = vmul.f32 %v89, %v153
  %v161 = vmul.f32 %v90, %v153
  %v162 = vmul.f32 %v91, %v153
  %v163 = vmul.f32 %v92, %v153
  %v164 = vmul.f32 %v93, %v153
  %v165 = vmul.f32 %v94, %v153
  %v166 = vmul.f32 %v95, %v153
  %v167 = vmul.f32 %v96, %v153
  %v168 = vmul.f32 %v97, %v153
  %v169 = vmul.f32 %v98, %v153
  %v170 = vmul.f32 %v99, %v153
  %v171 = vmul.f32 %v100, %v153
  %v172 = vmul.f32 %v101, %v153
  %v173 = vmul.f32 %v102, %v153
  %v174 = vmul.f32 %v103, %v153
  %v175 = vmul.f32 %v104, %v153
  %v176 = vmul.f32 %v105, %v153
  %v177 = vmul.f32 %v106, %v153
  %v178 = vmul.f32 %v107, %v153
  %v179 = vmul.f32 %v108, %v153
  %v180 = vmul.f32 %v109, %v153
  %v181 = vmul.f32 %v110, %v153
  %v182 = vmul.f32 %v111, %v153
  %v183 = vmul.f32 %v112, %v153
  %v184 = vmul.f32 %v113, %v153
  %v185 = vmul.f32 %v114, %v153
  %v186 = vmul.f32 %v115, %v153
  %v187 = vmul.f32 %v116, %v153
  %v188 = vmul.f32 %v117, %v153
  %v189 = vmul.f32 %v118, %v153
  %v190 = vmul.f32 %v119, %v153
  %v191 = vmul.f32 %v120, %v153
  %v192 = vmul.f32 %v121, %v153
  %v193 = vmul.f32 %v122, %v153
  %v194 = vmul.f32 %v123, %v153
  %v195 = vmul.f32 %v124, %v153
  %v196 = vmul.f32 %v125, %v153
  %v197 = vmul.f32 %v126, %v153
  %v198 = vmul.f32 %v127, %v153
  %v199 = vmul.f32 %v128, %v153
  %v200 = vmul.f32 %v129, %v153
  %v201 = vmul.f32 %v130, %v153
  %v202 = vmul.f32 %v131, %v153
  %v203 = vmul.f32 %v132, %v153
  %v204 = vmul.f32 %v133, %v153
  %v205 = vmul.f32 %v134, %v153
  %v206 = vmul.f32 %v135, %v153
  %v207 = vmul.f32 %v136, %v153
  %v208 = vmul.f32 %v137, %v153
  %v209 = vmul.f32 %v138, %v153
  %v210 = vmul.f32 %v139, %v153
  %v211 = vmul.f32 %v140, %v153
  %v212 = vmul.f32 %v141, %v153
  %v213 = vmul.f32 %v142, %v153
  %v214 = vmul.f32 %v143, %v153
  %v215 = vmul.f32 %v144, %v153
  %v216 = vmul.f32 %v145, %v153
  %v217 = vmul.f32 %v146, %v153
  %v218 = vmul.f32 %v147, %v153
  %v219 = vld [vmem:[%s2] sm:$0x1]
  %v221 = vlaneseq
  %v222 = vshrl.u32 %v221, 7
  %v223 = vsub.s32 0, %v222
  %v224 = vrot.slane %v219, %v223
  %v226 = vadd.f32 %v155, %v224
  %v227 = vadd.f32 %v156, %v224
  %v228 = vadd.f32 %v157, %v224
  %v229 = vadd.f32 %v158, %v224
  %v230 = vadd.f32 %v159, %v224
  %v231 = vadd.f32 %v160, %v224
  %v232 = vadd.f32 %v161, %v224
  %v233 = vadd.f32 %v162, %v224
  %v234 = vadd.f32 %v163, %v224
  %v235 = vadd.f32 %v164, %v224
  %v236 = vadd.f32 %v165, %v224
  %v237 = vadd.f32 %v166, %v224
  %v238 = vadd.f32 %v167, %v224
  %v239 = vadd.f32 %v168, %v224
  %v240 = vadd.f32 %v169, %v224
  %v241 = vadd.f32 %v170, %v224
  %v242 = vadd.f32 %v171, %v224
  %v243 = vadd.f32 %v172, %v224
  %v244 = vadd.f32 %v173, %v224
  %v245 = vadd.f32 %v174, %v224
  %v246 = vadd.f32 %v175, %v224
  %v247 = vadd.f32 %v176, %v224
  %v248 = vadd.f32 %v177, %v224
  %v249 = vadd.f32 %v178, %v224
  %v250 = vadd.f32 %v179, %v224
  %v251 = vadd.f32 %v180, %v224
  %v252 = vadd.f32 %v181, %v224
  %v253 = vadd.f32 %v182, %v224
  %v254 = vadd.f32 %v183, %v224
  %v255 = vadd.f32 %v184, %v224
  %v256 = vadd.f32 %v185, %v224
  %v257 = vadd.f32 %v186, %v224
  %v258 = vadd.f32 %v187, %v224
  %v259 = vadd.f32 %v188, %v224
  %v260 = vadd.f32 %v189, %v224
  %v261 = vadd.f32 %v190, %v224
  %v262 = vadd.f32 %v191, %v224
  %v263 = vadd.f32 %v192, %v224
  %v264 = vadd.f32 %v193, %v224
  %v265 = vadd.f32 %v194, %v224
  %v266 = vadd.f32 %v195, %v224
  %v267 = vadd.f32 %v196, %v224
  %v268 = vadd.f32 %v197, %v224
  %v269 = vadd.f32 %v198, %v224
  %v270 = vadd.f32 %v199, %v224
  %v271 = vadd.f32 %v200, %v224
  %v272 = vadd.f32 %v201, %v224
  %v273 = vadd.f32 %v202, %v224
  %v274 = vadd.f32 %v203, %v224
  %v275 = vadd.f32 %v204, %v224
  %v276 = vadd.f32 %v205, %v224
  %v277 = vadd.f32 %v206, %v224
  %v278 = vadd.f32 %v207, %v224
  %v279 = vadd.f32 %v208, %v224
  %v280 = vadd.f32 %v209, %v224
  %v281 = vadd.f32 %v210, %v224
  %v282 = vadd.f32 %v211, %v224
  %v283 = vadd.f32 %v212, %v224
  %v284 = vadd.f32 %v213, %v224
  %v285 = vadd.f32 %v214, %v224
  %v286 = vadd.f32 %v215, %v224
  %v287 = vadd.f32 %v216, %v224
  %v288 = vadd.f32 %v217, %v224
  %v289 = vadd.f32 %v218, %v224
  %v290 = vmax.f32 %v226, 0.0
  %v291 = vmax.f32 %v227, 0.0
  %v292 = vmax.f32 %v228, 0.0
  %v293 = vmax.f32 %v229, 0.0
  %v294 = vmax.f32 %v230, 0.0
  %v295 = vmax.f32 %v231, 0.0
  %v296 = vmax.f32 %v232, 0.0
  %v297 = vmax.f32 %v233, 0.0
  %v298 = vmax.f32 %v234, 0.0
  %v299 = vmax.f32 %v235, 0.0
  %v300 = vmax.f32 %v236, 0.0
  %v301 = vmax.f32 %v237, 0.0
  %v302 = vmax.f32 %v238, 0.0
  %v303 = vmax.f32 %v239, 0.0
  %v304 = vmax.f32 %v240, 0.0
  %v305 = vmax.f32 %v241, 0.0
  %v306 = vmax.f32 %v242, 0.0
  %v307 = vmax.f32 %v243, 0.0
  %v308 = vmax.f32 %v244, 0.0
  %v309 = vmax.f32 %v245, 0.0
  %v310 = vmax.f32 %v246, 0.0
  %v311 = vmax.f32 %v247, 0.0
  %v312 = vmax.f32 %v248, 0.0
  %v313 = vmax.f32 %v249, 0.0
  %v314 = vmax.f32 %v250, 0.0
  %v315 = vmax.f32 %v251, 0.0
  %v316 = vmax.f32 %v252, 0.0
  %v317 = vmax.f32 %v253, 0.0
  %v318 = vmax.f32 %v254, 0.0
  %v319 = vmax.f32 %v255, 0.0
  %v320 = vmax.f32 %v256, 0.0
  %v321 = vmax.f32 %v257, 0.0
  %v322 = vmax.f32 %v258, 0.0
  %v323 = vmax.f32 %v259, 0.0
  %v324 = vmax.f32 %v260, 0.0
  %v325 = vmax.f32 %v261, 0.0
  %v326 = vmax.f32 %v262, 0.0
  %v327 = vmax.f32 %v263, 0.0
  %v328 = vmax.f32 %v264, 0.0
  %v329 = vmax.f32 %v265, 0.0
  %v330 = vmax.f32 %v266, 0.0
  %v331 = vmax.f32 %v267, 0.0
  %v332 = vmax.f32 %v268, 0.0
  %v333 = vmax.f32 %v269, 0.0
  %v334 = vmax.f32 %v270, 0.0
  %v335 = vmax.f32 %v271, 0.0
  %v336 = vmax.f32 %v272, 0.0
  %v337 = vmax.f32 %v273, 0.0
  %v338 = vmax.f32 %v274, 0.0
  %v339 = vmax.f32 %v275, 0.0
  %v340 = vmax.f32 %v276, 0.0
  %v341 = vmax.f32 %v277, 0.0
  %v342 = vmax.f32 %v278, 0.0
  %v343 = vmax.f32 %v279, 0.0
  %v344 = vmax.f32 %v280, 0.0
  %v345 = vmax.f32 %v281, 0.0
  %v346 = vmax.f32 %v282, 0.0
  %v347 = vmax.f32 %v283, 0.0
  %v348 = vmax.f32 %v284, 0.0
  %v349 = vmax.f32 %v285, 0.0
  %v350 = vmax.f32 %v286, 0.0
  %v351 = vmax.f32 %v287, 0.0
  %v352 = vmax.f32 %v288, 0.0
  %v353 = vmax.f32 %v289, 0.0
  %v354 = vpack.c.bf16 %v291, %v290
  %v355 = vpack.c.bf16 %v293, %v292
  %v356 = vpack.c.bf16 %v295, %v294
  %v357 = vpack.c.bf16 %v297, %v296
  %v358 = vpack.c.bf16 %v299, %v298
  %v359 = vpack.c.bf16 %v301, %v300
  %v360 = vpack.c.bf16 %v303, %v302
  %v361 = vpack.c.bf16 %v305, %v304
  %v362 = vpack.c.bf16 %v307, %v306
  %v363 = vpack.c.bf16 %v309, %v308
  %v364 = vpack.c.bf16 %v311, %v310
  %v365 = vpack.c.bf16 %v313, %v312
  %v366 = vpack.c.bf16 %v315, %v314
  %v367 = vpack.c.bf16 %v317, %v316
  %v368 = vpack.c.bf16 %v319, %v318
  %v369 = vpack.c.bf16 %v321, %v320
  %v370 = vpack.c.bf16 %v323, %v322
  %v371 = vpack.c.bf16 %v325, %v324
  %v372 = vpack.c.bf16 %v327, %v326
  %v373 = vpack.c.bf16 %v329, %v328
  %v374 = vpack.c.bf16 %v331, %v330
  %v375 = vpack.c.bf16 %v333, %v332
  %v376 = vpack.c.bf16 %v335, %v334
  %v377 = vpack.c.bf16 %v337, %v336
  %v378 = vpack.c.bf16 %v339, %v338
  %v379 = vpack.c.bf16 %v341, %v340
  %v380 = vpack.c.bf16 %v343, %v342
  %v381 = vpack.c.bf16 %v345, %v344
  %v382 = vpack.c.bf16 %v347, %v346
  %v383 = vpack.c.bf16 %v349, %v348
  %v384 = vpack.c.bf16 %v351, %v350
  %v385 = vpack.c.bf16 %v353, %v352
  %v386 = vld [vmem:[%s3] sm:$0x3]
  %vm387 = vcmask 31744
  %v389 = vsel %vm387, %v354, 0
  %v392 = vsel %vm387, %v355, 0
  %v395 = vsel %vm387, %v356, 0
  %v398 = vsel %vm387, %v357, 0
  %v401 = vsel %vm387, %v358, 0
  %v404 = vsel %vm387, %v359, 0
  %v407 = vsel %vm387, %v360, 0
  %v410 = vsel %vm387, %v361, 0
  %v413 = vsel %vm387, %v362, 0
  %v416 = vsel %vm387, %v363, 0
  %v419 = vsel %vm387, %v364, 0
  %v422 = vsel %vm387, %v365, 0
  %v425 = vsel %vm387, %v366, 0
  %v428 = vsel %vm387, %v367, 0
  %v431 = vsel %vm387, %v368, 0
  %v434 = vsel %vm387, %v369, 0
  %v437 = vsel %vm387, %v370, 0
  %v440 = vsel %vm387, %v371, 0
  %v443 = vsel %vm387, %v372, 0
  %v446 = vsel %vm387, %v373, 0
  %v449 = vsel %vm387, %v374, 0
  %v452 = vsel %vm387, %v375, 0
  %v455 = vsel %vm387, %v376, 0
  %v458 = vsel %vm387, %v377, 0
  %v461 = vsel %vm387, %v378, 0
  %v464 = vsel %vm387, %v379, 0
  %v467 = vsel %vm387, %v380, 0
  %v470 = vsel %vm387, %v381, 0
  %v473 = vsel %vm387, %v382, 0
  %v476 = vsel %vm387, %v383, 0
  %v479 = vsel %vm387, %v384, 0
  %v482 = vsel %vm387, %v385, 0
  %vm484 = vcmask 1041408
  %v486 = vsel %vm484, %v386, 0
  %488 = vmatprep.subr.bf16.mxu0 0
  %489 = vmatpush1.bf16.msra.mxu0 %v486
  %490 = vmatprep.subr.bf16.mxu0 0
  %491 = vmatpush1.bf16.msra.mxu0 0
  %492 = vmatprep.subr.bf16.mxu0 0
  %493 = vmatpush1.bf16.msra.mxu0 0
  %494 = vmatprep.subr.bf16.mxu0 0
  %495 = vmatpush1.bf16.msra.mxu0 0
  %496 = vmatprep.subr.bf16.mxu0 0
  %497 = vmatpush1.bf16.msra.mxu0 0
  %498 = vmatprep.subr.bf16.mxu0 0
  %499 = vmatpush1.bf16.msra.mxu0 0
  %500 = vmatprep.subr.bf16.mxu0 0
  %501 = vmatpush1.bf16.msra.mxu0 0
  %502 = vmatprep.subr.bf16.mxu0 0
  %503 = vmatpush1.bf16.msra.mxu0 0
  %504 = vmatprep.subr.bf16.mxu0 0
  %505 = vmatpush1.bf16.msra.mxu0 0
  %506 = vmatprep.subr.bf16.mxu0 0
  %507 = vmatpush1.bf16.msra.mxu0 0
  %508 = vmatprep.subr.bf16.mxu0 0
  %509 = vmatpush1.bf16.msra.mxu0 0
  %510 = vmatprep.subr.bf16.mxu0 0
  %511 = vmatpush1.bf16.msra.mxu0 0
  %512 = vmatprep.subr.bf16.mxu0 0
  %513 = vmatpush1.bf16.msra.mxu0 0
  %514 = vmatprep.subr.bf16.mxu0 0
  %515 = vmatpush1.bf16.msra.mxu0 0
  %516 = vmatprep.subr.bf16.mxu0 0
  %517 = vmatpush1.bf16.msra.mxu0 0
  %518 = vmatprep.subr.bf16.mxu0 0
  %519 = vmatpush1.bf16.msra.mxu0 0
  %520 = vmatprep.mubr.bf16.mxu0 0
  %521 = vmatmul.mubr.bf16.gmra.mrb[0].mxu0 %v389
  %v522 = vpop.f32.mrb[0].mxu0
  %v523 = vadd.f32 0.0, %v522
  %v524 = vpop.f32.mrb[0].mxu0
  %v525 = vpop.f32.mrb[0].mxu0
  %v526 = vadd.f32 0.0, %v525
  %v527 = vpop.f32.mrb[0].mxu0
  %528 = vmatprep.mubr.bf16.mxu0 0
  %529 = vmatmul.mubr.bf16.gmra.mrb[0].mxu0 %v392
  %v530 = vpop.f32.mrb[0].mxu0
  %v531 = vadd.f32 0.0, %v530
  %v532 = vpop.f32.mrb[0].mxu0
  %v533 = vpop.f32.mrb[0].mxu0
  %v534 = vadd.f32 0.0, %v533
  %v535 = vpop.f32.mrb[0].mxu0
  %536 = vmatprep.mubr.bf16.mxu0 0
  %537 = vmatmul.mubr.bf16.gmra.mrb[0].mxu0 %v395
  %v538 = vpop.f32.mrb[0].mxu0
  %v539 = vadd.f32 0.0, %v538
  %v540 = vpop.f32.mrb[0].mxu0
  %v541 = vpop.f32.mrb[0].mxu0
  %v542 = vadd.f32 0.0, %v541
  %v543 = vpop.f32.mrb[0].mxu0
  %544 = vmatprep.mubr.bf16.mxu0 0
  %545 = vmatmul.mubr.bf16.gmra.mrb[0].mxu0 %v398
  %v546 = vpop.f32.mrb[0].mxu0
  %v547 = vadd.f32 0.0, %v546
  %v548 = vpop.f32.mrb[0].mxu0
  %v549 = vpop.f32.mrb[0].mxu0
  %v550 = vadd.f32 0.0, %v549
  %v551 = vpop.f32.mrb[0].mxu0
  %552 = vmatprep.mubr.bf16.mxu0 0
  %553 = vmatmul.mubr.bf16.gmra.mrb[0].mxu0 %v401
  %v554 = vpop.f32.mrb[0].mxu0
  %v555 = vadd.f32 0.0, %v554
  %v556 = vpop.f32.mrb[0].mxu0
  %v557 = vpop.f32.mrb[0].mxu0
  %v558 = vadd.f32 0.0, %v557
  %v559 = vpop.f32.mrb[0].mxu0
  %560 = vmatprep.mubr.bf16.mxu0 0
  %561 = vmatmul.mubr.bf16.gmra.mrb[0].mxu0 %v404
  %v562 = vpop.f32.mrb[0].mxu0
  %v563 = vadd.f32 0.0, %v562
  %v564 = vpop.f32.mrb[0].mxu0
  %v565 = vpop.f32.mrb[0].mxu0
  %v566 = vadd.f32 0.0, %v565
  %v567 = vpop.f32.mrb[0].mxu0
  %568 = vmatprep.mubr.bf16.mxu0 0
  %569 = vmatmul.mubr.bf16.gmra.mrb[0].mxu0 %v407
  %v570 = vpop.f32.mrb[0].mxu0
  %v571 = vadd.f32 0.0, %v570
  %v572 = vpop.f32.mrb[0].mxu0
  %v573 = vpop.f32.mrb[0].mxu0
  %v574 = vadd.f32 0.0, %v573
  %v575 = vpop.f32.mrb[0].mxu0
  %576 = vmatprep.mubr.bf16.mxu0 0
  %577 = vmatmul.mubr.bf16.gmra.mrb[0].mxu0 %v410
  %v578 = vpop.f32.mrb[0].mxu0
  %v579 = vadd.f32 0.0, %v578
  %v580 = vpop.f32.mrb[0].mxu0
  %v581 = vpop.f32.mrb[0].mxu0
  %v582 = vadd.f32 0.0, %v581
  %v583 = vpop.f32.mrb[0].mxu0
  %584 = vmatprep.mubr.bf16.mxu0 0
  %585 = vmatmul.mubr.bf16.gmra.mrb[0].mxu0 %v413
  %v586 = vpop.f32.mrb[0].mxu0
  %v587 = vadd.f32 0.0, %v586
  %v588 = vpop.f32.mrb[0].mxu0
  %v589 = vpop.f32.mrb[0].mxu0
  %v590 = vadd.f32 0.0, %v589
  %v591 = vpop.f32.mrb[0].mxu0
  %592 = vmatprep.mubr.bf16.mxu0 0
  %593 = vmatmul.mubr.bf16.gmra.mrb[0].mxu0 %v416
  %v594 = vpop.f32.mrb[0].mxu0
  %v595 = vadd.f32 0.0, %v594
  %v596 = vpop.f32.mrb[0].mxu0
  %v597 = vpop.f32.mrb[0].mxu0
  %v598 = vadd.f32 0.0, %v597
  %v599 = vpop.f32.mrb[0].mxu0
  %600 = vmatprep.mubr.bf16.mxu0 0
  %601 = vmatmul.mubr.bf16.gmra.mrb[0].mxu0 %v419
  %v602 = vpop.f32.mrb[0].mxu0
  %v603 = vadd.f32 0.0, %v602
  %v604 = vpop.f32.mrb[0].mxu0
  %v605 = vpop.f32.mrb[0].mxu0
  %v606 = vadd.f32 0.0, %v605
  %v607 = vpop.f32.mrb[0].mxu0
  %608 = vmatprep.mubr.bf16.mxu0 0
  %609 = vmatmul.mubr.bf16.gmra.mrb[0].mxu0 %v422
  %v610 = vpop.f32.mrb[0].mxu0
  %v611 = vadd.f32 0.0, %v610
  %v612 = vpop.f32.mrb[0].mxu0
  %v613 = vpop.f32.mrb[0].mxu0
  %v614 = vadd.f32 0.0, %v613
  %v615 = vpop.f32.mrb[0].mxu0
  %616 = vmatprep.mubr.bf16.mxu0 0
  %617 = vmatmul.mubr.bf16.gmra.mrb[0].mxu0 %v425
  %v618 = vpop.f32.mrb[0].mxu0
  %v619 = vadd.f32 0.0, %v618
  %v620 = vpop.f32.mrb[0].mxu0
  %v621 = vpop.f32.mrb[0].mxu0
  %v622 = vadd.f32 0.0, %v621
  %v623 = vpop.f32.mrb[0].mxu0
  %624 = vmatprep.mubr.bf16.mxu0 0
  %625 = vmatmul.mubr.bf16.gmra.mrb[0].mxu0 %v428
  %v626 = vpop.f32.mrb[0].mxu0
  %v627 = vadd.f32 0.0, %v626
  %v628 = vpop.f32.mrb[0].mxu0
  %v629 = vpop.f32.mrb[0].mxu0
  %v630 = vadd.f32 0.0, %v629
  %v631 = vpop.f32.mrb[0].mxu0
  %632 = vmatprep.mubr.bf16.mxu0 0
  %633 = vmatmul.mubr.bf16.gmra.mrb[0].mxu0 %v431
  %v634 = vpop.f32.mrb[0].mxu0
  %v635 = vadd.f32 0.0, %v634
  %v636 = vpop.f32.mrb[0].mxu0
  %v637 = vpop.f32.mrb[0].mxu0
  %v638 = vadd.f32 0.0, %v637
  %v639 = vpop.f32.mrb[0].mxu0
  %640 = vmatprep.mubr.bf16.mxu0 0
  %641 = vmatmul.mubr.bf16.gmra.mrb[0].mxu0 %v434
  %v642 = vpop.f32.mrb[0].mxu0
  %v643 = vadd.f32 0.0, %v642
  %v644 = vpop.f32.mrb[0].mxu0
  %v645 = vpop.f32.mrb[0].mxu0
  %v646 = vadd.f32 0.0, %v645
  %v647 = vpop.f32.mrb[0].mxu0
  %648 = vmatprep.mubr.bf16.mxu0 0
  %649 = vmatmul.mubr.bf16.gmra.mrb[0].mxu0 %v437
  %v650 = vpop.f32.mrb[0].mxu0
  %v651 = vadd.f32 0.0, %v650
  %v652 = vpop.f32.mrb[0].mxu0
  %v653 = vpop.f32.mrb[0].mxu0
  %v654 = vadd.f32 0.0, %v653
  %v655 = vpop.f32.mrb[0].mxu0
  %656 = vmatprep.mubr.bf16.mxu0 0
  %657 = vmatmul.mubr.bf16.gmra.mrb[0].mxu0 %v440
  %v658 = vpop.f32.mrb[0].mxu0
  %v659 = vadd.f32 0.0, %v658
  %v660 = vpop.f32.mrb[0].mxu0
  %v661 = vpop.f32.mrb[0].mxu0
  %v662 = vadd.f32 0.0, %v661
  %v663 = vpop.f32.mrb[0].mxu0
  %664 = vmatprep.mubr.bf16.mxu0 0
  %665 = vmatmul.mubr.bf16.gmra.mrb[0].mxu0 %v443
  %v666 = vpop.f32.mrb[0].mxu0
  %v667 = vadd.f32 0.0, %v666
  %v668 = vpop.f32.mrb[0].mxu0
  %v669 = vpop.f32.mrb[0].mxu0
  %v670 = vadd.f32 0.0, %v669
  %v671 = vpop.f32.mrb[0].mxu0
  %672 = vmatprep.mubr.bf16.mxu0 0
  %673 = vmatmul.mubr.bf16.gmra.mrb[0].mxu0 %v446
  %v674 = vpop.f32.mrb[0].mxu0
  %v675 = vadd.f32 0.0, %v674
  %v676 = vpop.f32.mrb[0].mxu0
  %v677 = vpop.f32.mrb[0].mxu0
  %v678 = vadd.f32 0.0, %v677
  %v679 = vpop.f32.mrb[0].mxu0
  %680 = vmatprep.mubr.bf16.mxu0 0
  %681 = vmatmul.mubr.bf16.gmra.mrb[0].mxu0 %v449
  %v682 = vpop.f32.mrb[0].mxu0
  %v683 = vadd.f32 0.0, %v682
  %v684 = vpop.f32.mrb[0].mxu0
  %v685 = vpop.f32.mrb[0].mxu0
  %v686 = vadd.f32 0.0, %v685
  %v687 = vpop.f32.mrb[0].mxu0
  %688 = vmatprep.mubr.bf16.mxu0 0
  %689 = vmatmul.mubr.bf16.gmra.mrb[0].mxu0 %v452
  %v690 = vpop.f32.mrb[0].mxu0
  %v691 = vadd.f32 0.0, %v690
  %v692 = vpop.f32.mrb[0].mxu0
  %v693 = vpop.f32.mrb[0].mxu0
  %v694 = vadd.f32 0.0, %v693
  %v695 = vpop.f32.mrb[0].mxu0
  %696 = vmatprep.mubr.bf16.mxu0 0
  %697 = vmatmul.mubr.bf16.gmra.mrb[0].mxu0 %v455
  %v698 = vpop.f32.mrb[0].mxu0
  %v699 = vadd.f32 0.0, %v698
  %v700 = vpop.f32.mrb[0].mxu0
  %v701 = vpop.f32.mrb[0].mxu0
  %v702 = vadd.f32 0.0, %v701
  %v703 = vpop.f32.mrb[0].mxu0
  %704 = vmatprep.mubr.bf16.mxu0 0
  %705 = vmatmul.mubr.bf16.gmra.mrb[0].mxu0 %v458
  %v706 = vpop.f32.mrb[0].mxu0
  %v707 = vadd.f32 0.0, %v706
  %v708 = vpop.f32.mrb[0].mxu0
  %v709 = vpop.f32.mrb[0].mxu0
  %v710 = vadd.f32 0.0, %v709
  %v711 = vpop.f32.mrb[0].mxu0
  %712 = vmatprep.mubr.bf16.mxu0 0
  %713 = vmatmul.mubr.bf16.gmra.mrb[0].mxu0 %v461
  %v714 = vpop.f32.mrb[0].mxu0
  %v715 = vadd.f32 0.0, %v714
  %v716 = vpop.f32.mrb[0].mxu0
  %v717 = vpop.f32.mrb[0].mxu0
  %v718 = vadd.f32 0.0, %v717
  %v719 = vpop.f32.mrb[0].mxu0
  %720 = vmatprep.mubr.bf16.mxu0 0
  %721 = vmatmul.mubr.bf16.gmra.mrb[0].mxu0 %v464
  %v722 = vpop.f32.mrb[0].mxu0
  %v723 = vadd.f32 0.0, %v722
  %v724 = vpop.f32.mrb[0].mxu0
  %v725 = vpop.f32.mrb[0].mxu0
  %v726 = vadd.f32 0.0, %v725
  %v727 = vpop.f32.mrb[0].mxu0
  %728 = vmatprep.mubr.bf16.mxu0 0
  %729 = vmatmul.mubr.bf16.gmra.mrb[0].mxu0 %v467
  %v730 = vpop.f32.mrb[0].mxu0
  %v731 = vadd.f32 0.0, %v730
  %v732 = vpop.f32.mrb[0].mxu0
  %v733 = vpop.f32.mrb[0].mxu0
  %v734 = vadd.f32 0.0, %v733
  %v735 = vpop.f32.mrb[0].mxu0
  %736 = vmatprep.mubr.bf16.mxu0 0
  %737 = vmatmul.mubr.bf16.gmra.mrb[0].mxu0 %v470
  %v738 = vpop.f32.mrb[0].mxu0
  %v739 = vadd.f32 0.0, %v738
  %v740 = vpop.f32.mrb[0].mxu0
  %v741 = vpop.f32.mrb[0].mxu0
  %v742 = vadd.f32 0.0, %v741
  %v743 = vpop.f32.mrb[0].mxu0
  %744 = vmatprep.mubr.bf16.mxu0 0
  %745 = vmatmul.mubr.bf16.gmra.mrb[0].mxu0 %v473
  %v746 = vpop.f32.mrb[0].mxu0
  %v747 = vadd.f32 0.0, %v746
  %v748 = vpop.f32.mrb[0].mxu0
  %v749 = vpop.f32.mrb[0].mxu0
  %v750 = vadd.f32 0.0, %v749
  %v751 = vpop.f32.mrb[0].mxu0
  %752 = vmatprep.mubr.bf16.mxu0 0
  %753 = vmatmul.mubr.bf16.gmra.mrb[0].mxu0 %v476
  %v754 = vpop.f32.mrb[0].mxu0
  %v755 = vadd.f32 0.0, %v754
  %v756 = vpop.f32.mrb[0].mxu0
  %v757 = vpop.f32.mrb[0].mxu0
  %v758 = vadd.f32 0.0, %v757
  %v759 = vpop.f32.mrb[0].mxu0
  %760 = vmatprep.mubr.bf16.mxu0 0
  %761 = vmatmul.mubr.bf16.gmra.mrb[0].mxu0 %v479
  %v762 = vpop.f32.mrb[0].mxu0
  %v763 = vadd.f32 0.0, %v762
  %v764 = vpop.f32.mrb[0].mxu0
  %v765 = vpop.f32.mrb[0].mxu0
  %v766 = vadd.f32 0.0, %v765
  %v767 = vpop.f32.mrb[0].mxu0
  %768 = vmatprep.mubr.bf16.mxu0 0
  %769 = vmatmul.mubr.bf16.gmra.mrb[0].mxu0 %v482
  %v770 = vpop.f32.mrb[0].mxu0
  %v771 = vadd.f32 0.0, %v770
  %v772 = vpop.f32.mrb[0].mxu0
  %v773 = vpop.f32.mrb[0].mxu0
  %v774 = vadd.f32 0.0, %v773
  %v775 = vpop.f32.mrb[0].mxu0
  %776 = vdwg.mxu0
  %v777 = vpack.c.bf16 %v526, %v523
  %v778 = vpack.c.bf16 %v534, %v531
  %v779 = vpack.c.bf16 %v542, %v539
  %v780 = vpack.c.bf16 %v550, %v547
  %v781 = vpack.c.bf16 %v558, %v555
  %v782 = vpack.c.bf16 %v566, %v563
  %v783 = vpack.c.bf16 %v574, %v571
  %v784 = vpack.c.bf16 %v582, %v579
  %v785 = vpack.c.bf16 %v590, %v587
  %v786 = vpack.c.bf16 %v598, %v595
  %v787 = vpack.c.bf16 %v606, %v603
  %v788 = vpack.c.bf16 %v614, %v611
  %v789 = vpack.c.bf16 %v622, %v619
  %v790 = vpack.c.bf16 %v630, %v627
  %v791 = vpack.c.bf16 %v638, %v635
  %v792 = vpack.c.bf16 %v646, %v643
  %v793 = vpack.c.bf16 %v654, %v651
  %v794 = vpack.c.bf16 %v662, %v659
  %v795 = vpack.c.bf16 %v670, %v667
  %v796 = vpack.c.bf16 %v678, %v675
  %v797 = vpack.c.bf16 %v686, %v683
  %v798 = vpack.c.bf16 %v694, %v691
  %v799 = vpack.c.bf16 %v702, %v699
  %v800 = vpack.c.bf16 %v710, %v707
  %v801 = vpack.c.bf16 %v718, %v715
  %v802 = vpack.c.bf16 %v726, %v723
  %v803 = vpack.c.bf16 %v734, %v731
  %v804 = vpack.c.bf16 %v742, %v739
  %v805 = vpack.c.bf16 %v750, %v747
  %v806 = vpack.c.bf16 %v758, %v755
  %v807 = vpack.c.bf16 %v766, %v763
  %v808 = vpack.c.bf16 %v774, %v771
  %v841 = vunpack.c.l.b16 %v777
  %v842 = vunpack.c.h.b16 %v777
  %v843 = vunpack.c.l.b16 %v778
  %v844 = vunpack.c.h.b16 %v778
  %v845 = vunpack.c.l.b16 %v779
  %v846 = vunpack.c.h.b16 %v779
  %v847 = vunpack.c.l.b16 %v780
  %v848 = vunpack.c.h.b16 %v780
  %v849 = vunpack.c.l.b16 %v781
  %v850 = vunpack.c.h.b16 %v781
  %v851 = vunpack.c.l.b16 %v782
  %v852 = vunpack.c.h.b16 %v782
  %v853 = vunpack.c.l.b16 %v783
  %v854 = vunpack.c.h.b16 %v783
  %v855 = vunpack.c.l.b16 %v784
  %v856 = vunpack.c.h.b16 %v784
  %v857 = vunpack.c.l.b16 %v785
  %v858 = vunpack.c.h.b16 %v785
  %v859 = vunpack.c.l.b16 %v786
  %v860 = vunpack.c.h.b16 %v786
  %v861 = vunpack.c.l.b16 %v787
  %v862 = vunpack.c.h.b16 %v787
  %v863 = vunpack.c.l.b16 %v788
  %v864 = vunpack.c.h.b16 %v788
  %v865 = vunpack.c.l.b16 %v789
  %v866 = vunpack.c.h.b16 %v789
  %v867 = vunpack.c.l.b16 %v790
  %v868 = vunpack.c.h.b16 %v790
  %v869 = vunpack.c.l.b16 %v791
  %v870 = vunpack.c.h.b16 %v791
  %v871 = vunpack.c.l.b16 %v792
  %v872 = vunpack.c.h.b16 %v792
  %v873 = vunpack.c.l.b16 %v793
  %v874 = vunpack.c.h.b16 %v793
  %v875 = vunpack.c.l.b16 %v794
  %v876 = vunpack.c.h.b16 %v794
  %v877 = vunpack.c.l.b16 %v795
  %v878 = vunpack.c.h.b16 %v795
  %v879 = vunpack.c.l.b16 %v796
  %v880 = vunpack.c.h.b16 %v796
  %v881 = vunpack.c.l.b16 %v797
  %v882 = vunpack.c.h.b16 %v797
  %v883 = vunpack.c.l.b16 %v798
  %v884 = vunpack.c.h.b16 %v798
  %v885 = vunpack.c.l.b16 %v799
  %v886 = vunpack.c.h.b16 %v799
  %v887 = vunpack.c.l.b16 %v800
  %v888 = vunpack.c.h.b16 %v800
  %v889 = vunpack.c.l.b16 %v801
  %v890 = vunpack.c.h.b16 %v801
  %v891 = vunpack.c.l.b16 %v802
  %v892 = vunpack.c.h.b16 %v802
  %v893 = vunpack.c.l.b16 %v803
  %v894 = vunpack.c.h.b16 %v803
  %v895 = vunpack.c.l.b16 %v804
  %v896 = vunpack.c.h.b16 %v804
  %v897 = vunpack.c.l.b16 %v805
  %v898 = vunpack.c.h.b16 %v805
  %v899 = vunpack.c.l.b16 %v806
  %v900 = vunpack.c.h.b16 %v806
  %v901 = vunpack.c.l.b16 %v807
  %v902 = vunpack.c.h.b16 %v807
  %v903 = vunpack.c.l.b16 %v808
  %v904 = vunpack.c.h.b16 %v808
  %v905 = vpack.c.b16 %v841, %v841
  %v906 = vpack.c.b16 %v842, %v842
  %v907 = vpack.c.b16 %v843, %v843
  %v908 = vpack.c.b16 %v844, %v844
  %v909 = vpack.c.b16 %v845, %v845
  %v910 = vpack.c.b16 %v846, %v846
  %v911 = vpack.c.b16 %v847, %v847
  %v912 = vpack.c.b16 %v848, %v848
  %v913 = vpack.c.b16 %v849, %v849
  %v914 = vpack.c.b16 %v850, %v850
  %v915 = vpack.c.b16 %v851, %v851
  %v916 = vpack.c.b16 %v852, %v852
  %v917 = vpack.c.b16 %v853, %v853
  %v918 = vpack.c.b16 %v854, %v854
  %v919 = vpack.c.b16 %v855, %v855
  %v920 = vpack.c.b16 %v856, %v856
  %v921 = vpack.c.b16 %v857, %v857
  %v922 = vpack.c.b16 %v858, %v858
  %v923 = vpack.c.b16 %v859, %v859
  %v924 = vpack.c.b16 %v860, %v860
  %v925 = vpack.c.b16 %v861, %v861
  %v926 = vpack.c.b16 %v862, %v862
  %v927 = vpack.c.b16 %v863, %v863
  %v928 = vpack.c.b16 %v864, %v864
  %v929 = vpack.c.b16 %v865, %v865
  %v930 = vpack.c.b16 %v866, %v866
  %v931 = vpack.c.b16 %v867, %v867
  %v932 = vpack.c.b16 %v868, %v868
  %v933 = vpack.c.b16 %v869, %v869
  %v934 = vpack.c.b16 %v870, %v870
  %v935 = vpack.c.b16 %v871, %v871
  %v936 = vpack.c.b16 %v872, %v872
  %v937 = vpack.c.b16 %v873, %v873
  %v938 = vpack.c.b16 %v874, %v874
  %v939 = vpack.c.b16 %v875, %v875
  %v940 = vpack.c.b16 %v876, %v876
  %v941 = vpack.c.b16 %v877, %v877
  %v942 = vpack.c.b16 %v878, %v878
  %v943 = vpack.c.b16 %v879, %v879
  %v944 = vpack.c.b16 %v880, %v880
  %v945 = vpack.c.b16 %v881, %v881
  %v946 = vpack.c.b16 %v882, %v882
  %v947 = vpack.c.b16 %v883, %v883
  %v948 = vpack.c.b16 %v884, %v884
  %v949 = vpack.c.b16 %v885, %v885
  %v950 = vpack.c.b16 %v886, %v886
  %v951 = vpack.c.b16 %v887, %v887
  %v952 = vpack.c.b16 %v888, %v888
  %v953 = vpack.c.b16 %v889, %v889
  %v954 = vpack.c.b16 %v890, %v890
  %v955 = vpack.c.b16 %v891, %v891
  %v956 = vpack.c.b16 %v892, %v892
  %v957 = vpack.c.b16 %v893, %v893
  %v958 = vpack.c.b16 %v894, %v894
  %v959 = vpack.c.b16 %v895, %v895
  %v960 = vpack.c.b16 %v896, %v896
  %v961 = vpack.c.b16 %v897, %v897
  %v962 = vpack.c.b16 %v898, %v898
  %v963 = vpack.c.b16 %v899, %v899
  %v964 = vpack.c.b16 %v900, %v900
  %v965 = vpack.c.b16 %v901, %v901
  %v966 = vpack.c.b16 %v902, %v902
  %v967 = vpack.c.b16 %v903, %v903
  %v968 = vpack.c.b16 %v904, %v904
  %vm1033 = vcmask 60416
  %1034 = vst.msk [vmem:[%s4] sm:$0xf] %vm1033, %v905
  %1035 = vst.msk [vmem:[%s4 + $0x4] sm:$0xf] %vm1033, %v906
  %1036 = vst.msk [vmem:[%s4 + $0x8] sm:$0xf] %vm1033, %v907
  %1037 = vst.msk [vmem:[%s4 + $0xc] sm:$0xf] %vm1033, %v908
  %1038 = vst.msk [vmem:[%s4 + $0x10] sm:$0xf] %vm1033, %v909
  %1039 = vst.msk [vmem:[%s4 + $0x14] sm:$0xf] %vm1033, %v910
  %1040 = vst.msk [vmem:[%s4 + $0x18] sm:$0xf] %vm1033, %v911
  %1041 = vst.msk [vmem:[%s4 + $0x1c] sm:$0xf] %vm1033, %v912
  %1042 = vst.msk [vmem:[%s4 + $0x20] sm:$0xf] %vm1033, %v913
  %1043 = vst.msk [vmem:[%s4 + $0x24] sm:$0xf] %vm1033, %v914
  %1044 = vst.msk [vmem:[%s4 + $0x28] sm:$0xf] %vm1033, %v915
  %1045 = vst.msk [vmem:[%s4 + $0x2c] sm:$0xf] %vm1033, %v916
  %1046 = vst.msk [vmem:[%s4 + $0x30] sm:$0xf] %vm1033, %v917
  %1047 = vst.msk [vmem:[%s4 + $0x34] sm:$0xf] %vm1033, %v918
  %1048 = vst.msk [vmem:[%s4 + $0x38] sm:$0xf] %vm1033, %v919
  %1049 = vst.msk [vmem:[%s4 + $0x3c] sm:$0xf] %vm1033, %v920
  %1050 = vst.msk [vmem:[%s4 + $0x40] sm:$0xf] %vm1033, %v921
  %1051 = vst.msk [vmem:[%s4 + $0x44] sm:$0xf] %vm1033, %v922
  %1052 = vst.msk [vmem:[%s4 + $0x48] sm:$0xf] %vm1033, %v923
  %1053 = vst.msk [vmem:[%s4 + $0x4c] sm:$0xf] %vm1033, %v924
  %1054 = vst.msk [vmem:[%s4 + $0x50] sm:$0xf] %vm1033, %v925
  %1055 = vst.msk [vmem:[%s4 + $0x54] sm:$0xf] %vm1033, %v926
  %1056 = vst.msk [vmem:[%s4 + $0x58] sm:$0xf] %vm1033, %v927
  %1057 = vst.msk [vmem:[%s4 + $0x5c] sm:$0xf] %vm1033, %v928
  %1058 = vst.msk [vmem:[%s4 + $0x60] sm:$0xf] %vm1033, %v929
  %1059 = vst.msk [vmem:[%s4 + $0x64] sm:$0xf] %vm1033, %v930
  %1060 = vst.msk [vmem:[%s4 + $0x68] sm:$0xf] %vm1033, %v931
  %1061 = vst.msk [vmem:[%s4 + $0x6c] sm:$0xf] %vm1033, %v932
  %1062 = vst.msk [vmem:[%s4 + $0x70] sm:$0xf] %vm1033, %v933
  %1063 = vst.msk [vmem:[%s4 + $0x74] sm:$0xf] %vm1033, %v934
  %1064 = vst.msk [vmem:[%s4 + $0x78] sm:$0xf] %vm1033, %v935
  %1065 = vst.msk [vmem:[%s4 + $0x7c] sm:$0xf] %vm1033, %v936
  %1066 = vst.msk [vmem:[%s4 + $0x80] sm:$0xf] %vm1033, %v937
  %1067 = vst.msk [vmem:[%s4 + $0x84] sm:$0xf] %vm1033, %v938
  %1068 = vst.msk [vmem:[%s4 + $0x88] sm:$0xf] %vm1033, %v939
  %1069 = vst.msk [vmem:[%s4 + $0x8c] sm:$0xf] %vm1033, %v940
  %1070 = vst.msk [vmem:[%s4 + $0x90] sm:$0xf] %vm1033, %v941
  %1071 = vst.msk [vmem:[%s4 + $0x94] sm:$0xf] %vm1033, %v942
  %1072 = vst.msk [vmem:[%s4 + $0x98] sm:$0xf] %vm1033, %v943
  %1073 = vst.msk [vmem:[%s4 + $0x9c] sm:$0xf] %vm1033, %v944
  %1074 = vst.msk [vmem:[%s4 + $0xa0] sm:$0xf] %vm1033, %v945
  %1075 = vst.msk [vmem:[%s4 + $0xa4] sm:$0xf] %vm1033, %v946
  %1076 = vst.msk [vmem:[%s4 + $0xa8] sm:$0xf] %vm1033, %v947
  %1077 = vst.msk [vmem:[%s4 + $0xac] sm:$0xf] %vm1033, %v948
  %1078 = vst.msk [vmem:[%s4 + $0xb0] sm:$0xf] %vm1033, %v949
  %1079 = vst.msk [vmem:[%s4 + $0xb4] sm:$0xf] %vm1033, %v950
  %1080 = vst.msk [vmem:[%s4 + $0xb8] sm:$0xf] %vm1033, %v951
  %1081 = vst.msk [vmem:[%s4 + $0xbc] sm:$0xf] %vm1033, %v952
  %1082 = vst.msk [vmem:[%s4 + $0xc0] sm:$0xf] %vm1033, %v953
  %1083 = vst.msk [vmem:[%s4 + $0xc4] sm:$0xf] %vm1033, %v954
  %1084 = vst.msk [vmem:[%s4 + $0xc8] sm:$0xf] %vm1033, %v955
  %1085 = vst.msk [vmem:[%s4 + $0xcc] sm:$0xf] %vm1033, %v956
  %1086 = vst.msk [vmem:[%s4 + $0xd0] sm:$0xf] %vm1033, %v957
  %1087 = vst.msk [vmem:[%s4 + $0xd4] sm:$0xf] %vm1033, %v958
  %1088 = vst.msk [vmem:[%s4 + $0xd8] sm:$0xf] %vm1033, %v959
  %1089 = vst.msk [vmem:[%s4 + $0xdc] sm:$0xf] %vm1033, %v960
  %1090 = vst.msk [vmem:[%s4 + $0xe0] sm:$0xf] %vm1033, %v961
  %1091 = vst.msk [vmem:[%s4 + $0xe4] sm:$0xf] %vm1033, %v962
  %1092 = vst.msk [vmem:[%s4 + $0xe8] sm:$0xf] %vm1033, %v963
  %1093 = vst.msk [vmem:[%s4 + $0xec] sm:$0xf] %vm1033, %v964
  %1094 = vst.msk [vmem:[%s4 + $0xf0] sm:$0xf] %vm1033, %v965
  %1095 = vst.msk [vmem:[%s4 + $0xf4] sm:$0xf] %vm1033, %v966
  %1096 = vst.msk [vmem:[%s4 + $0xf8] sm:$0xf] %vm1033, %v967
  %1097 = vst.msk [vmem:[%s4 + $0xfc] sm:$0xf] %vm1033, %v968
  %vm1098 = vcmask 64512
  %v1099 = vsel %vm1098, %v523, 0.0
  %v1100 = vsel %vm1098, %v526, 0.0
  %v1101 = vadd.f32 %v1099, %v1100
  %v1102 = vsel %vm1098, %v531, 0.0
  %v1103 = vadd.f32 %v1101, %v1102
  %v1104 = vsel %vm1098, %v534, 0.0
  %v1105 = vadd.f32 %v1103, %v1104
  %v1106 = vsel %vm1098, %v539, 0.0
  %v1107 = vadd.f32 %v1105, %v1106
  %v1108 = vsel %vm1098, %v542, 0.0
  %v1109 = vadd.f32 %v1107, %v1108
  %v1110 = vsel %vm1098, %v547, 0.0
  %v1111 = vadd.f32 %v1109, %v1110
  %v1112 = vsel %vm1098, %v550, 0.0
  %v1113 = vadd.f32 %v1111, %v1112
  %v1114 = vsel %vm1098, %v555, 0.0
  %v1115 = vadd.f32 %v1113, %v1114
  %v1116 = vsel %vm1098, %v558, 0.0
  %v1117 = vadd.f32 %v1115, %v1116
  %v1118 = vsel %vm1098, %v563, 0.0
  %v1119 = vadd.f32 %v1117, %v1118
  %v1120 = vsel %vm1098, %v566, 0.0
  %v1121 = vadd.f32 %v1119, %v1120
  %v1122 = vsel %vm1098, %v571, 0.0
  %v1123 = vadd.f32 %v1121, %v1122
  %v1124 = vsel %vm1098, %v574, 0.0
  %v1125 = vadd.f32 %v1123, %v1124
  %v1126 = vsel %vm1098, %v579, 0.0
  %v1127 = vadd.f32 %v1125, %v1126
  %v1128 = vsel %vm1098, %v582, 0.0
  %v1129 = vadd.f32 %v1127, %v1128
  %v1130 = vsel %vm1098, %v587, 0.0
  %v1131 = vadd.f32 %v1129, %v1130
  %v1132 = vsel %vm1098, %v590, 0.0
  %v1133 = vadd.f32 %v1131, %v1132
  %v1134 = vsel %vm1098, %v595, 0.0
  %v1135 = vadd.f32 %v1133, %v1134
  %v1136 = vsel %vm1098, %v598, 0.0
  %v1137 = vadd.f32 %v1135, %v1136
  %v1138 = vsel %vm1098, %v603, 0.0
  %v1139 = vadd.f32 %v1137, %v1138
  %v1140 = vsel %vm1098, %v606, 0.0
  %v1141 = vadd.f32 %v1139, %v1140
  %v1142 = vsel %vm1098, %v611, 0.0
  %v1143 = vadd.f32 %v1141, %v1142
  %v1144 = vsel %vm1098, %v614, 0.0
  %v1145 = vadd.f32 %v1143, %v1144
  %v1146 = vsel %vm1098, %v619, 0.0
  %v1147 = vadd.f32 %v1145, %v1146
  %v1148 = vsel %vm1098, %v622, 0.0
  %v1149 = vadd.f32 %v1147, %v1148
  %v1150 = vsel %vm1098, %v627, 0.0
  %v1151 = vadd.f32 %v1149, %v1150
  %v1152 = vsel %vm1098, %v630, 0.0
  %v1153 = vadd.f32 %v1151, %v1152
  %v1154 = vsel %vm1098, %v635, 0.0
  %v1155 = vadd.f32 %v1153, %v1154
  %v1156 = vsel %vm1098, %v638, 0.0
  %v1157 = vadd.f32 %v1155, %v1156
  %v1158 = vsel %vm1098, %v643, 0.0
  %v1159 = vadd.f32 %v1157, %v1158
  %v1160 = vsel %vm1098, %v646, 0.0
  %v1161 = vadd.f32 %v1159, %v1160
  %v1162 = vsel %vm1098, %v651, 0.0
  %v1163 = vadd.f32 %v1161, %v1162
  %v1164 = vsel %vm1098, %v654, 0.0
  %v1165 = vadd.f32 %v1163, %v1164
  %v1166 = vsel %vm1098, %v659, 0.0
  %v1167 = vadd.f32 %v1165, %v1166
  %v1168 = vsel %vm1098, %v662, 0.0
  %v1169 = vadd.f32 %v1167, %v1168
  %v1170 = vsel %vm1098, %v667, 0.0
  %v1171 = vadd.f32 %v1169, %v1170
  %v1172 = vsel %vm1098, %v670, 0.0
  %v1173 = vadd.f32 %v1171, %v1172
  %v1174 = vsel %vm1098, %v675, 0.0
  %v1175 = vadd.f32 %v1173, %v1174
  %v1176 = vsel %vm1098, %v678, 0.0
  %v1177 = vadd.f32 %v1175, %v1176
  %v1178 = vsel %vm1098, %v683, 0.0
  %v1179 = vadd.f32 %v1177, %v1178
  %v1180 = vsel %vm1098, %v686, 0.0
  %v1181 = vadd.f32 %v1179, %v1180
  %v1182 = vsel %vm1098, %v691, 0.0
  %v1183 = vadd.f32 %v1181, %v1182
  %v1184 = vsel %vm1098, %v694, 0.0
  %v1185 = vadd.f32 %v1183, %v1184
  %v1186 = vsel %vm1098, %v699, 0.0
  %v1187 = vadd.f32 %v1185, %v1186
  %v1188 = vsel %vm1098, %v702, 0.0
  %v1189 = vadd.f32 %v1187, %v1188
  %v1190 = vsel %vm1098, %v707, 0.0
  %v1191 = vadd.f32 %v1189, %v1190
  %v1192 = vsel %vm1098, %v710, 0.0
  %v1193 = vadd.f32 %v1191, %v1192
  %v1194 = vsel %vm1098, %v715, 0.0
  %v1195 = vadd.f32 %v1193, %v1194
  %v1196 = vsel %vm1098, %v718, 0.0
  %v1197 = vadd.f32 %v1195, %v1196
  %v1198 = vsel %vm1098, %v723, 0.0
  %v1199 = vadd.f32 %v1197, %v1198
  %v1200 = vsel %vm1098, %v726, 0.0
  %v1201 = vadd.f32 %v1199, %v1200
  %v1202 = vsel %vm1098, %v731, 0.0
  %v1203 = vadd.f32 %v1201, %v1202
  %v1204 = vsel %vm1098, %v734, 0.0
  %v1205 = vadd.f32 %v1203, %v1204
  %v1206 = vsel %vm1098, %v739, 0.0
  %v1207 = vadd.f32 %v1205, %v1206
  %v1208 = vsel %vm1098, %v742, 0.0
  %v1209 = vadd.f32 %v1207, %v1208
  %v1210 = vsel %vm1098, %v747, 0.0
  %v1211 = vadd.f32 %v1209, %v1210
  %v1212 = vsel %vm1098, %v750, 0.0
  %v1213 = vadd.f32 %v1211, %v1212
  %v1214 = vsel %vm1098, %v755, 0.0
  %v1215 = vadd.f32 %v1213, %v1214
  %v1216 = vsel %vm1098, %v758, 0.0
  %v1217 = vadd.f32 %v1215, %v1216
  %v1218 = vsel %vm1098, %v763, 0.0
  %v1219 = vadd.f32 %v1217, %v1218
  %v1220 = vsel %vm1098, %v766, 0.0
  %v1221 = vadd.f32 %v1219, %v1220
  %v1222 = vsel %vm1098, %v771, 0.0
  %v1223 = vadd.f32 %v1221, %v1222
  %v1224 = vsel %vm1098, %v774, 0.0
  %v1225 = vadd.f32 %v1223, %v1224
  %v1226 = vrot.slane %v1225, 4
  %v1227 = vadd.f32 %v1225, %v1226
  %v1228 = vrot.slane %v1227, 2
  %v1229 = vadd.f32 %v1227, %v1228
  %v1230 = vrot.slane %v1229, 1
  %v1231 = vadd.f32 %v1229, %v1230
  %v1232 = vmul.f32 %v523, %v523
  %v1233 = vmul.f32 %v526, %v526
  %v1234 = vmul.f32 %v531, %v531
  %v1235 = vmul.f32 %v534, %v534
  %v1236 = vmul.f32 %v539, %v539
  %v1237 = vmul.f32 %v542, %v542
  %v1238 = vmul.f32 %v547, %v547
  %v1239 = vmul.f32 %v550, %v550
  %v1240 = vmul.f32 %v555, %v555
  %v1241 = vmul.f32 %v558, %v558
  %v1242 = vmul.f32 %v563, %v563
  %v1243 = vmul.f32 %v566, %v566
  %v1244 = vmul.f32 %v571, %v571
  %v1245 = vmul.f32 %v574, %v574
  %v1246 = vmul.f32 %v579, %v579
  %v1247 = vmul.f32 %v582, %v582
  %v1248 = vmul.f32 %v587, %v587
  %v1249 = vmul.f32 %v590, %v590
  %v1250 = vmul.f32 %v595, %v595
  %v1251 = vmul.f32 %v598, %v598
  %v1252 = vmul.f32 %v603, %v603
  %v1253 = vmul.f32 %v606, %v606
  %v1254 = vmul.f32 %v611, %v611
  %v1255 = vmul.f32 %v614, %v614
  %v1256 = vmul.f32 %v619, %v619
  %v1257 = vmul.f32 %v622, %v622
  %v1258 = vmul.f32 %v627, %v627
  %v1259 = vmul.f32 %v630, %v630
  %v1260 = vmul.f32 %v635, %v635
  %v1261 = vmul.f32 %v638, %v638
  %v1262 = vmul.f32 %v643, %v643
  %v1263 = vmul.f32 %v646, %v646
  %v1264 = vmul.f32 %v651, %v651
  %v1265 = vmul.f32 %v654, %v654
  %v1266 = vmul.f32 %v659, %v659
  %v1267 = vmul.f32 %v662, %v662
  %v1268 = vmul.f32 %v667, %v667
  %v1269 = vmul.f32 %v670, %v670
  %v1270 = vmul.f32 %v675, %v675
  %v1271 = vmul.f32 %v678, %v678
  %v1272 = vmul.f32 %v683, %v683
  %v1273 = vmul.f32 %v686, %v686
  %v1274 = vmul.f32 %v691, %v691
  %v1275 = vmul.f32 %v694, %v694
  %v1276 = vmul.f32 %v699, %v699
  %v1277 = vmul.f32 %v702, %v702
  %v1278 = vmul.f32 %v707, %v707
  %v1279 = vmul.f32 %v710, %v710
  %v1280 = vmul.f32 %v715, %v715
  %v1281 = vmul.f32 %v718, %v718
  %v1282 = vmul.f32 %v723, %v723
  %v1283 = vmul.f32 %v726, %v726
  %v1284 = vmul.f32 %v731, %v731
  %v1285 = vmul.f32 %v734, %v734
  %v1286 = vmul.f32 %v739, %v739
  %v1287 = vmul.f32 %v742, %v742
  %v1288 = vmul.f32 %v747, %v747
  %v1289 = vmul.f32 %v750, %v750
  %v1290 = vmul.f32 %v755, %v755
  %v1291 = vmul.f32 %v758, %v758
  %v1292 = vmul.f32 %v763, %v763
  %v1293 = vmul.f32 %v766, %v766
  %v1294 = vmul.f32 %v771, %v771
  %v1295 = vmul.f32 %v774, %v774
  %v1296 = vsel %vm1098, %v1232, 0.0
  %v1297 = vsel %vm1098, %v1233, 0.0
  %v1298 = vadd.f32 %v1296, %v1297
  %v1299 = vsel %vm1098, %v1234, 0.0
  %v1300 = vadd.f32 %v1298, %v1299
  %v1301 = vsel %vm1098, %v1235, 0.0
  %v1302 = vadd.f32 %v1300, %v1301
  %v1303 = vsel %vm1098, %v1236, 0.0
  %v1304 = vadd.f32 %v1302, %v1303
  %v1305 = vsel %vm1098, %v1237, 0.0
  %v1306 = vadd.f32 %v1304, %v1305
  %v1307 = vsel %vm1098, %v1238, 0.0
  %v1308 = vadd.f32 %v1306, %v1307
  %v1309 = vsel %vm1098, %v1239, 0.0
  %v1310 = vadd.f32 %v1308, %v1309
  %v1311 = vsel %vm1098, %v1240, 0.0
  %v1312 = vadd.f32 %v1310, %v1311
  %v1313 = vsel %vm1098, %v1241, 0.0
  %v1314 = vadd.f32 %v1312, %v1313
  %v1315 = vsel %vm1098, %v1242, 0.0
  %v1316 = vadd.f32 %v1314, %v1315
  %v1317 = vsel %vm1098, %v1243, 0.0
  %v1318 = vadd.f32 %v1316, %v1317
  %v1319 = vsel %vm1098, %v1244, 0.0
  %v1320 = vadd.f32 %v1318, %v1319
  %v1321 = vsel %vm1098, %v1245, 0.0
  %v1322 = vadd.f32 %v1320, %v1321
  %v1323 = vsel %vm1098, %v1246, 0.0
  %v1324 = vadd.f32 %v1322, %v1323
  %v1325 = vsel %vm1098, %v1247, 0.0
  %v1326 = vadd.f32 %v1324, %v1325
  %v1327 = vsel %vm1098, %v1248, 0.0
  %v1328 = vadd.f32 %v1326, %v1327
  %v1329 = vsel %vm1098, %v1249, 0.0
  %v1330 = vadd.f32 %v1328, %v1329
  %v1331 = vsel %vm1098, %v1250, 0.0
  %v1332 = vadd.f32 %v1330, %v1331
  %v1333 = vsel %vm1098, %v1251, 0.0
  %v1334 = vadd.f32 %v1332, %v1333
  %v1335 = vsel %vm1098, %v1252, 0.0
  %v1336 = vadd.f32 %v1334, %v1335
  %v1337 = vsel %vm1098, %v1253, 0.0
  %v1338 = vadd.f32 %v1336, %v1337
  %v1339 = vsel %vm1098, %v1254, 0.0
  %v1340 = vadd.f32 %v1338, %v1339
  %v1341 = vsel %vm1098, %v1255, 0.0
  %v1342 = vadd.f32 %v1340, %v1341
  %v1343 = vsel %vm1098, %v1256, 0.0
  %v1344 = vadd.f32 %v1342, %v1343
  %v1345 = vsel %vm1098, %v1257, 0.0
  %v1346 = vadd.f32 %v1344, %v1345
  %v1347 = vsel %vm1098, %v1258, 0.0
  %v1348 = vadd.f32 %v1346, %v1347
  %v1349 = vsel %vm1098, %v1259, 0.0
  %v1350 = vadd.f32 %v1348, %v1349
  %v1351 = vsel %vm1098, %v1260, 0.0
  %v1352 = vadd.f32 %v1350, %v1351
  %v1353 = vsel %vm1098, %v1261, 0.0
  %v1354 = vadd.f32 %v1352, %v1353
  %v1355 = vsel %vm1098, %v1262, 0.0
  %v1356 = vadd.f32 %v1354, %v1355
  %v1357 = vsel %vm1098, %v1263, 0.0
  %v1358 = vadd.f32 %v1356, %v1357
  %v1359 = vsel %vm1098, %v1264, 0.0
  %v1360 = vadd.f32 %v1358, %v1359
  %v1361 = vsel %vm1098, %v1265, 0.0
  %v1362 = vadd.f32 %v1360, %v1361
  %v1363 = vsel %vm1098, %v1266, 0.0
  %v1364 = vadd.f32 %v1362, %v1363
  %v1365 = vsel %vm1098, %v1267, 0.0
  %v1366 = vadd.f32 %v1364, %v1365
  %v1367 = vsel %vm1098, %v1268, 0.0
  %v1368 = vadd.f32 %v1366, %v1367
  %v1369 = vsel %vm1098, %v1269, 0.0
  %v1370 = vadd.f32 %v1368, %v1369
  %v1371 = vsel %vm1098, %v1270, 0.0
  %v1372 = vadd.f32 %v1370, %v1371
  %v1373 = vsel %vm1098, %v1271, 0.0
  %v1374 = vadd.f32 %v1372, %v1373
  %v1375 = vsel %vm1098, %v1272, 0.0
  %v1376 = vadd.f32 %v1374, %v1375
  %v1377 = vsel %vm1098, %v1273, 0.0
  %v1378 = vadd.f32 %v1376, %v1377
  %v1379 = vsel %vm1098, %v1274, 0.0
  %v1380 = vadd.f32 %v1378, %v1379
  %v1381 = vsel %vm1098, %v1275, 0.0
  %v1382 = vadd.f32 %v1380, %v1381
  %v1383 = vsel %vm1098, %v1276, 0.0
  %v1384 = vadd.f32 %v1382, %v1383
  %v1385 = vsel %vm1098, %v1277, 0.0
  %v1386 = vadd.f32 %v1384, %v1385
  %v1387 = vsel %vm1098, %v1278, 0.0
  %v1388 = vadd.f32 %v1386, %v1387
  %v1389 = vsel %vm1098, %v1279, 0.0
  %v1390 = vadd.f32 %v1388, %v1389
  %v1391 = vsel %vm1098, %v1280, 0.0
  %v1392 = vadd.f32 %v1390, %v1391
  %v1393 = vsel %vm1098, %v1281, 0.0
  %v1394 = vadd.f32 %v1392, %v1393
  %v1395 = vsel %vm1098, %v1282, 0.0
  %v1396 = vadd.f32 %v1394, %v1395
  %v1397 = vsel %vm1098, %v1283, 0.0
  %v1398 = vadd.f32 %v1396, %v1397
  %v1399 = vsel %vm1098, %v1284, 0.0
  %v1400 = vadd.f32 %v1398, %v1399
  %v1401 = vsel %vm1098, %v1285, 0.0
  %v1402 = vadd.f32 %v1400, %v1401
  %v1403 = vsel %vm1098, %v1286, 0.0
  %v1404 = vadd.f32 %v1402, %v1403
  %v1405 = vsel %vm1098, %v1287, 0.0
  %v1406 = vadd.f32 %v1404, %v1405
  %v1407 = vsel %vm1098, %v1288, 0.0
  %v1408 = vadd.f32 %v1406, %v1407
  %v1409 = vsel %vm1098, %v1289, 0.0
  %v1410 = vadd.f32 %v1408, %v1409
  %v1411 = vsel %vm1098, %v1290, 0.0
  %v1412 = vadd.f32 %v1410, %v1411
  %v1413 = vsel %vm1098, %v1291, 0.0
  %v1414 = vadd.f32 %v1412, %v1413
  %v1415 = vsel %vm1098, %v1292, 0.0
  %v1416 = vadd.f32 %v1414, %v1415
  %v1417 = vsel %vm1098, %v1293, 0.0
  %v1418 = vadd.f32 %v1416, %v1417
  %v1419 = vsel %vm1098, %v1294, 0.0
  %v1420 = vadd.f32 %v1418, %v1419
  %v1421 = vsel %vm1098, %v1295, 0.0
  %v1422 = vadd.f32 %v1420, %v1421
  %v1423 = vrot.slane %v1422, 4
  %v1424 = vadd.f32 %v1422, %v1423
  %v1425 = vrot.slane %v1424, 2
  %v1426 = vadd.f32 %v1424, %v1425
  %v1427 = vrot.slane %v1426, 1
  %v1428 = vadd.f32 %v1426, %v1427
  %vm1429 = vcmask 1040384
  %v1430 = vsel %vm1429, %v1231, %v1428
  %vm1431 = vcmask 58368
  %1432 = vst.msk [vmem:[%s5] sm:$0x3] %vm1431, %v1430
  // Predicated region
  $region18: #{dense_layer_forward.2} parent=0 // pred_check
    _
  $region19: #{dense_layer_forward.2} parent=0 // pred_check_branch
    %1434 = sbr.rel (0) target = $region21
  $region20: #{dense_layer_forward.2} parent=0 // pred_region
    _
  $region21: #{dense_layer_forward.2} parent=0 // pred_fallthru
    _
  // Predicated region
  $region22: #{dense_layer_forward.2} parent=0 // pred_check
    _
  $region23: #{dense_layer_forward.2} parent=0 // pred_check_branch
    %1436 = sbr.rel (0) target = $region25
  $region24: #{dense_layer_forward.2} parent=0 // pred_region
    _
  $region25: #{dense_layer_forward.2} parent=0 // pred_fallthru
    _
  // Predicated region
  $region26: #{dense_layer_forward.2} parent=0 // pred_check
    _
  $region27: #{dense_layer_forward.2} parent=0 // pred_check_branch
    %1438 = sbr.rel (0) target = $region29
  $region28: #{dense_layer_forward.2} parent=0 // pred_region
    _
  $region29: #{dense_layer_forward.2} parent=0 // pred_fallthru
    _
  // Predicated region
  $region30: #{dense_layer_forward.2} parent=0 // pred_check
    _
  $region31: #{dense_layer_forward.2} parent=0 // pred_check_branch
    %1440 = sbr.rel (0) target = $region33
  $region32: #{dense_layer_forward.2} parent=0 // pred_region
    _
  $region33: #{dense_layer_forward.2} parent=0 // pred_fallthru
    _

// kernel: dense_layer_forward.3
$region0: #{dense_layer_forward.3}
  #allocation0 [shape = 'u32[]', space=smem, size = 0x4, offset = 0x4, fixed_abs, tag = 'smem constant byte address 0x4 - core index']
  #allocation1 [shape = 'u32[144,128]{1,0:T(1,128)}', space=vmem, size = 0x12000, scoped, tag = 'internal scratch']
  #allocation2 [shape = 'bf16[18,18,8]{2,1,0:T(8,128)(2,1)}', space=vmem, size = 0x1b000, scoped, tag = 'scratch operand']
  %s0 = inlined_call_operand.vmem [shape: bf16[2,16,16,8], index: 0, kind: input, shape index: {}]
  %s1 = inlined_call_operand.vmem [shape: f32[1,8], index: 1, kind: input, shape index: {}]
  %s2 = inlined_call_operand.vmem [shape: f32[1,8], index: 2, kind: input, shape index: {}]
  %s3 = inlined_call_operand.vmem [shape: bf16[9,8,4], index: 3, kind: input, shape index: {}]
  %s4 = inlined_call_operand.vmem [shape: f32[2,16,16,4], index: 4, kind: output, shape index: {}]
  %s5 = sld [smem:[#allocation0]]
  $region49: #{dense_layer_forward.3} parent=0
    _
  %s7 = ssub.s32 1, %s5
  %s8 = scalar_select 0, %s7, %s5
  loop: start=0, step=1, limit=4
  $region2: #{dense_layer_forward.3} parent=0 // loop_pre_header
    _
  $region3: #{dense_layer_forward.3} parent=0 // loop_header
    %s10 = sphi 0, %s14
    %p11 = scmp.ge.s32.totalorder %s10, 4
    %s20 = sphi 0, %s22
    %s23 = sphi 0, %s20
    %s24 = sphi 0, %s23
    %s40 = sphi 0, %s24
    %s44 = sphi 0, %s44
    %s46 = sphi 0, %s44
    %s47 = sphi 0, %s46
    %s61 = sphi 0, %s47
    %s65 = sphi 0, %s65
    %s67 = sphi 0, %s65
    %s68 = sphi 0, %s67
    %s82 = sphi 0, %s68
    %s86 = sphi 0, %s86
    %s88 = sphi 0, %s86
    %s89 = sphi 0, %s88
    %s103 = sphi 0, %s89
    %s109 = sphi 0, %s111
    %s112 = sphi 0, %s109
    %s113 = sphi 0, %s112
    %s129 = sphi 0, %s113
  $region4: #{dense_layer_forward.3} parent=0 // loop_header_branch
    %13 = sbr.rel (%p11) target = $region8
  $region5: #{dense_layer_forward.3} parent=0 // loop_body
    %s15 = ssub.s32 %s10, 1
    %s16 = ssub.s32 %s10, 2
    %s17 = sadd.s32 %s10, 1
    %s18 = ssub.s32 %s10, %s17
    %p19 = scmp.eq.s32.totalorder %s18, 0
    %s21 = sadd.s32 %s20, 1
    %s22 = scalar_select %p19, %s20, %s21
    %p25 = pneg %p19
    %p26 = scmp.eq.s32.totalorder %s10, 1
    %p27 = por %p25, %p26
    %p28 = scmp.ne.s32.totalorder %s20, %s23
    %p29 = scmp.eq.s32.totalorder %s10, 0
    %p30 = por %p28, %p29
    %p31 = scmp.ne.s32.totalorder %s20, %s23
    %p32 = scmp.eq.s32.totalorder %s15, 1
    %p33 = por %p31, %p32
    %p34 = scmp.ne.s32.totalorder %s23, %s24
    %p35 = scmp.eq.s32.totalorder %s15, 0
    %p36 = por %p34, %p35
    %p37 = scmp.ne.s32.totalorder %s23, %s24
    %p38 = scmp.eq.s32.totalorder %s16, 1
    %p39 = por %p37, %p38
    %p41 = scmp.ne.s32.totalorder %s24, %s40
    %p42 = scmp.eq.s32.totalorder %s16, 0
    %p43 = por %p41, %p42
    %s45 = sadd.s32 %s44, 1
    %p48 = scmp.eq.s32.totalorder %s10, 1
    %p49 = scmp.ne.s32.totalorder %s44, %s46
    %p50 = scmp.eq.s32.totalorder %s10, 0
    %p51 = por %p49, %p50
    %p52 = scmp.ne.s32.totalorder %s44, %s46
    %p53 = scmp.eq.s32.totalorder %s15, 1
    %p54 = por %p52, %p53
    %p55 = scmp.ne.s32.totalorder %s46, %s47
    %p56 = scmp.eq.s32.totalorder %s15, 0
    %p57 = por %p55, %p56
    %p58 = scmp.ne.s32.totalorder %s46, %s47
    %p59 = scmp.eq.s32.totalorder %s16, 1
    %p60 = por %p58, %p59
    %p62 = scmp.ne.s32.totalorder %s47, %s61
    %p63 = scmp.eq.s32.totalorder %s16, 0
    %p64 = por %p62, %p63
    %s66 = sadd.s32 %s65, 1
    %p69 = scmp.eq.s32.totalorder %s10, 1
    %p70 = scmp.ne.s32.totalorder %s65, %s67
    %p71 = scmp.eq.s32.totalorder %s10, 0
    %p72 = por %p70, %p71
    %p73 = scmp.ne.s32.totalorder %s65, %s67
    %p74 = scmp.eq.s32.totalorder %s15, 1
    %p75 = por %p73, %p74
    %p76 = scmp.ne.s32.totalorder %s67, %s68
    %p77 = scmp.eq.s32.totalorder %s15, 0
    %p78 = por %p76, %p77
    %p79 = scmp.ne.s32.totalorder %s67, %s68
    %p80 = scmp.eq.s32.totalorder %s16, 1
    %p81 = por %p79, %p80
    %p83 = scmp.ne.s32.totalorder %s68, %s82
    %p84 = scmp.eq.s32.totalorder %s16, 0
    %p85 = por %p83, %p84
    %s87 = sadd.s32 %s86, 1
    %p90 = scmp.eq.s32.totalorder %s10, 1
    %p91 = scmp.ne.s32.totalorder %s86, %s88
    %p92 = scmp.eq.s32.totalorder %s10, 0
    %p93 = por %p91, %p92
    %p94 = scmp.ne.s32.totalorder %s86, %s88
    %p95 = scmp.eq.s32.totalorder %s15, 1
    %p96 = por %p94, %p95
    %p97 = scmp.ne.s32.totalorder %s88, %s89
    %p98 = scmp.eq.s32.totalorder %s15, 0
    %p99 = por %p97, %p98
    %p100 = scmp.ne.s32.totalorder %s88, %s89
    %p101 = scmp.eq.s32.totalorder %s16, 1
    %p102 = por %p100, %p101
    %p104 = scmp.ne.s32.totalorder %s89, %s103
    %p105 = scmp.eq.s32.totalorder %s16, 0
    %p106 = por %p104, %p105
    %s107 = ssub.s32 %s10, %s17
    %p108 = scmp.eq.s32.totalorder %s107, 0
    %s110 = sadd.s32 %s109, 1
    %s111 = scalar_select %p108, %s109, %s110
    %p114 = pneg %p108
    %p115 = scmp.eq.s32.totalorder %s10, 1
    %p116 = por %p114, %p115
    %p117 = scmp.ne.s32.totalorder %s109, %s112
    %p118 = scmp.eq.s32.totalorder %s10, 0
    %p119 = por %p117, %p118
    %p120 = scmp.ne.s32.totalorder %s109, %s112
    %p121 = scmp.eq.s32.totalorder %s15, 1
    %p122 = por %p120, %p121
    %p123 = scmp.ne.s32.totalorder %s112, %s113
    %p124 = scmp.eq.s32.totalorder %s15, 0
    %p125 = por %p123, %p124
    %p126 = scmp.ne.s32.totalorder %s112, %s113
    %p127 = scmp.eq.s32.totalorder %s16, 1
    %p128 = por %p126, %p127
    %p130 = scmp.ne.s32.totalorder %s113, %s129
    %p131 = scmp.eq.s32.totalorder %s16, 0
    %p132 = por %p130, %p131
    %p133 = scmp.le.s32.totalorder 1, %s10
    %p134 = scmp.lt.s32.totalorder %s10, 3
    %p135 = pnand %p133, %p134
    %p136 = pneg %p135
    // Predicated region
    $region9: #{dense_layer_forward.3} parent=5 // pred_check
      _
    $region10: #{dense_layer_forward.3} parent=5 // pred_check_branch
      %138 = sbr.rel (%p135) target = $region12
    $region11: #{dense_layer_forward.3} parent=5 // pred_region
      %s139 = ssub.s32 %s10, 1
      // Predicated region
      $region13: #{dense_layer_forward.3} parent=11 // pred_check
        %p140 = pneg %p57
      $region14: #{dense_layer_forward.3} parent=11 // pred_check_branch
        %142 = sbr.rel (%p140) target = $region16
      $region15: #{dense_layer_forward.3} parent=11 // pred_region
        _
      $region16: #{dense_layer_forward.3} parent=11 // pred_fallthru
        _
      // Predicated region
      $region17: #{dense_layer_forward.3} parent=11 // pred_check
        %p143 = pneg %p78
      $region18: #{dense_layer_forward.3} parent=11 // pred_check_branch
        %145 = sbr.rel (%p143) target = $region20
      $region19: #{dense_layer_forward.3} parent=11 // pred_region
        _
      $region20: #{dense_layer_forward.3} parent=11 // pred_fallthru
        _
      // Predicated region
      $region21: #{dense_layer_forward.3} parent=11 // pred_check
        %p146 = pneg %p99
      $region22: #{dense_layer_forward.3} parent=11 // pred_check_branch
        %148 = sbr.rel (%p146) target = $region24
      $region23: #{dense_layer_forward.3} parent=11 // pred_region
        _
      $region24: #{dense_layer_forward.3} parent=11 // pred_fallthru
        _
    $region12: #{dense_layer_forward.3} parent=5 // pred_fallthru
      _
    %p149 = scmp.lt.s32.totalorder %s10, 2
    // Predicated region
    $region25: #{dense_layer_forward.3} parent=5 // pred_check
      %p150 = pneg %p149
    $region26: #{dense_layer_forward.3} parent=5 // pred_check_branch
      %152 = sbr.rel (%p150) target = $region28
    $region27: #{dense_layer_forward.3} parent=5 // pred_region
      // Predicated region
      $region29: #{dense_layer_forward.3} parent=27 // pred_check
        %p153 = pneg %p30
      $region30: #{dense_layer_forward.3} parent=27 // pred_check_branch
        %155 = sbr.rel (%p153) target = $region32
      $region31: #{dense_layer_forward.3} parent=27 // pred_region
        %p156 = scmp.lt.s32.totalorder %s10, 1
        %s157 = scalar_select %p156, %s10, 1
        %s158 = smul.addr %s157, 32
        %s159 = smul.addr %s158, 4
        %s160 = scalar_lea.vmem %s0, %s159
      $region32: #{dense_layer_forward.3} parent=27 // pred_fallthru
        _
    $region28: #{dense_layer_forward.3} parent=5 // pred_fallthru
      _
    %p161 = scmp.le.s32.totalorder 1, %s10
    %p162 = scmp.lt.s32.totalorder %s10, 3
    %p163 = pnand %p161, %p162
    %p164 = pneg %p163
    // Predicated region
    $region33: #{dense_layer_forward.3} parent=5 // pred_check
      _
    $region34: #{dense_layer_forward.3} parent=5 // pred_check_branch
      %166 = sbr.rel (%p163) target = $region36
    $region35: #{dense_layer_forward.3} parent=5 // pred_region
      %s167 = ssub.s32 %s10, 1
      %p168 = scmp.lt.s32.totalorder %s15, 1
      %s169 = scalar_select %p168, %s15, 1
      %s170 = smul.addr %s169, 32
      %s171 = smul.addr %s170, 4
      %s172 = scalar_lea.vmem %s0, %s171
      %p173 = pneg %p36
      %p174 = pneg %p33
      %p175 = pneg %p57
      %p176 = pneg %p54
      %p177 = pneg %p78
      %p178 = pneg %p75
      %p179 = pneg %p99
      %p180 = pneg %p96
      %p181 = pneg %p125
      %p182 = pneg %p122
      %p183 = scmp.lt.s32.totalorder %s15, 1
      %s184 = scalar_select %p183, %s15, 1
      %s185 = smul.addr %s184, 32
      %s186 = smul.addr %s185, 8
      %s187 = scalar_lea.vmem %s4, %s186
      %p188 = scmp.lt.s32.totalorder %s15, 1
      %s189 = scalar_select %p188, %s15, 1
      %s190 = smul.addr %s189, 32
      %s191 = smul.addr %s190, 4
      %s192 = scalar_lea.vmem %s0, %s191
      %p193 = scmp.lt.s32.totalorder %s15, 1
      %s194 = scalar_select %p193, %s15, 1
      %s195 = smul.addr %s194, 32
      %s196 = smul.addr %s195, 8
      %s197 = scalar_lea.vmem %s4, %s196
      %vm199 = vcmask 60416
      %200 = vst.msk [vmem:[#allocation2] sm:$0xf] %vm199, 0
      %201 = vst.msk [vmem:[#allocation2 + $0x4] sm:$0xf] %vm199, 0
      %vm202 = vcmask 57344
      %203 = vst.msk [vmem:[#allocation2 + $0x8] sm:$0x1] %vm202, 0
      %s204 = scalar_lea.vmem [#allocation2], 204
      %205 = vst.msk [vmem:[%s204] sm:$0xf] %vm199, 0
      %206 = vst.msk [vmem:[%s204 + $0x4] sm:$0xf] %vm199, 0
      %207 = vst.msk [vmem:[%s204 + $0x8] sm:$0x1] %vm202, 0
      %vm208 = vcmask 57344
      %vm209 = vsmask.f32 256
      %vm210 = vmand %vm208, %vm209
      %v211 = vld [vmem:[#allocation2] sm:$0x1]
      %v212 = vsel %vm210, 0, %v211
      %213 = vst [vmem:[#allocation2] sm:$0x1] %v212
      %v214 = vld [vmem:[#allocation2 + $0xc] sm:$0x1]
      %v215 = vsel %vm210, 0, %v214
      %216 = vst [vmem:[#allocation2 + $0xc] sm:$0x1] %v215
      %v217 = vld [vmem:[#allocation2 + $0x18] sm:$0x1]
      %v218 = vsel %vm210, 0, %v217
      %219 = vst [vmem:[#allocation2 + $0x18] sm:$0x1] %v218
      %v220 = vld [vmem:[#allocation2 + $0x24] sm:$0x1]
      %v221 = vsel %vm210, 0, %v220
      %222 = vst [vmem:[#allocation2 + $0x24] sm:$0x1] %v221
      %v223 = vld [vmem:[#allocation2 + $0x30] sm:$0x1]
      %v224 = vsel %vm210, 0, %v223
      %225 = vst [vmem:[#allocation2 + $0x30] sm:$0x1] %v224
      %v226 = vld [vmem:[#allocation2 + $0x3c] sm:$0x1]
      %v227 = vsel %vm210, 0, %v226
      %228 = vst [vmem:[#allocation2 + $0x3c] sm:$0x1] %v227
      %v229 = vld [vmem:[#allocation2 + $0x48] sm:$0x1]
      %v230 = vsel %vm210, 0, %v229
      %231 = vst [vmem:[#allocation2 + $0x48] sm:$0x1] %v230
      %v232 = vld [vmem:[#allocation2 + $0x54] sm:$0x1]
      %v233 = vsel %vm210, 0, %v232
      %234 = vst [vmem:[#allocation2 + $0x54] sm:$0x1] %v233
      %v235 = vld [vmem:[#allocation2 + $0x60] sm:$0x1]
      %v236 = vsel %vm210, 0, %v235
      %237 = vst [vmem:[#allocation2 + $0x60] sm:$0x1] %v236
      %v238 = vld [vmem:[#allocation2 + $0x6c] sm:$0x1]
      %v239 = vsel %vm210, 0, %v238
      %240 = vst [vmem:[#allocation2 + $0x6c] sm:$0x1] %v239
      %v241 = vld [vmem:[#allocation2 + $0x78] sm:$0x1]
      %v242 = vsel %vm210, 0, %v241
      %243 = vst [vmem:[#allocation2 + $0x78] sm:$0x1] %v242
      %v244 = vld [vmem:[#allocation2 + $0x84] sm:$0x1]
      %v245 = vsel %vm210, 0, %v244
      %246 = vst [vmem:[#allocation2 + $0x84] sm:$0x1] %v245
      %v247 = vld [vmem:[#allocation2 + $0x90] sm:$0x1]
      %v248 = vsel %vm210, 0, %v247
      %249 = vst [vmem:[#allocation2 + $0x90] sm:$0x1] %v248
      %v250 = vld [vmem:[#allocation2 + $0x9c] sm:$0x1]
      %v251 = vsel %vm210, 0, %v250
      %252 = vst [vmem:[#allocation2 + $0x9c] sm:$0x1] %v251
      %v253 = vld [vmem:[#allocation2 + $0xa8] sm:$0x1]
      %v254 = vsel %vm210, 0, %v253
      %255 = vst [vmem:[#allocation2 + $0xa8] sm:$0x1] %v254
      %v256 = vld [vmem:[#allocation2 + $0xb4] sm:$0x1]
      %v257 = vsel %vm210, 0, %v256
      %258 = vst [vmem:[#allocation2 + $0xb4] sm:$0x1] %v257
      %v259 = vld [vmem:[#allocation2 + $0xc0] sm:$0x1]
      %v260 = vsel %vm210, 0, %v259
      %261 = vst [vmem:[#allocation2 + $0xc0] sm:$0x1] %v260
      %v262 = vld [vmem:[#allocation2 + $0xcc] sm:$0x1]
      %v263 = vsel %vm210, 0, %v262
      %264 = vst [vmem:[#allocation2 + $0xcc] sm:$0x1] %v263
      %vm265 = vsmask.f32 7938
      %vm266 = vmand %vm208, %vm265
      %v267 = vld [vmem:[#allocation2 + $0x8] sm:$0x1]
      %v268 = vsel %vm266, 0, %v267
      %269 = vst [vmem:[#allocation2 + $0x8] sm:$0x1] %v268
      %v270 = vld [vmem:[#allocation2 + $0x14] sm:$0x1]
      %v271 = vsel %vm266, 0, %v270
      %272 = vst [vmem:[#allocation2 + $0x14] sm:$0x1] %v271
      %v273 = vld [vmem:[#allocation2 + $0x20] sm:$0x1]
      %v274 = vsel %vm266, 0, %v273
      %275 = vst [vmem:[#allocation2 + $0x20] sm:$0x1] %v274
      %v276 = vld [vmem:[#allocation2 + $0x2c] sm:$0x1]
      %v277 = vsel %vm266, 0, %v276
      %278 = vst [vmem:[#allocation2 + $0x2c] sm:$0x1] %v277
      %v279 = vld [vmem:[#allocation2 + $0x38] sm:$0x1]
      %v280 = vsel %vm266, 0, %v279
      %281 = vst [vmem:[#allocation2 + $0x38] sm:$0x1] %v280
      %v282 = vld [vmem:[#allocation2 + $0x44] sm:$0x1]
      %v283 = vsel %vm266, 0, %v282
      %284 = vst [vmem:[#allocation2 + $0x44] sm:$0x1] %v283
      %v285 = vld [vmem:[#allocation2 + $0x50] sm:$0x1]
      %v286 = vsel %vm266, 0, %v285
      %287 = vst [vmem:[#allocation2 + $0x50] sm:$0x1] %v286
      %v288 = vld [vmem:[#allocation2 + $0x5c] sm:$0x1]
      %v289 = vsel %vm266, 0, %v288
      %290 = vst [vmem:[#allocation2 + $0x5c] sm:$0x1] %v289
      %v291 = vld [vmem:[#allocation2 + $0x68] sm:$0x1]
      %v292 = vsel %vm266, 0, %v291
      %293 = vst [vmem:[#allocation2 + $0x68] sm:$0x1] %v292
      %v294 = vld [vmem:[#allocation2 + $0x74] sm:$0x1]
      %v295 = vsel %vm266, 0, %v294
      %296 = vst [vmem:[#allocation2 + $0x74] sm:$0x1] %v295
      %v297 = vld [vmem:[#allocation2 + $0x80] sm:$0x1]
      %v298 = vsel %vm266, 0, %v297
      %299 = vst [vmem:[#allocation2 + $0x80] sm:$0x1] %v298
      %v300 = vld [vmem:[#allocation2 + $0x8c] sm:$0x1]
      %v301 = vsel %vm266, 0, %v300
      %302 = vst [vmem:[#allocation2 + $0x8c] sm:$0x1] %v301
      %v303 = vld [vmem:[#allocation2 + $0x98] sm:$0x1]
      %v304 = vsel %vm266, 0, %v303
      %305 = vst [vmem:[#allocation2 + $0x98] sm:$0x1] %v304
      %v306 = vld [vmem:[#allocation2 + $0xa4] sm:$0x1]
      %v307 = vsel %vm266, 0, %v306
      %308 = vst [vmem:[#allocation2 + $0xa4] sm:$0x1] %v307
      %v309 = vld [vmem:[#allocation2 + $0xb0] sm:$0x1]
      %v310 = vsel %vm266, 0, %v309
      %311 = vst [vmem:[#allocation2 + $0xb0] sm:$0x1] %v310
      %v312 = vld [vmem:[#allocation2 + $0xbc] sm:$0x1]
      %v313 = vsel %vm266, 0, %v312
      %314 = vst [vmem:[#allocation2 + $0xbc] sm:$0x1] %v313
      %v315 = vld [vmem:[#allocation2 + $0xc8] sm:$0x1]
      %v316 = vsel %vm266, 0, %v315
      %317 = vst [vmem:[#allocation2 + $0xc8] sm:$0x1] %v316
      %v318 = vld [vmem:[#allocation2 + $0xd4] sm:$0x1]
      %v319 = vsel %vm266, 0, %v318
      %320 = vst [vmem:[#allocation2 + $0xd4] sm:$0x1] %v319
      %v321 = vld [vmem:[%s192] sm:$0xf]
      %v322 = vld [vmem:[%s192 + $0x4] sm:$0xf]
      %v323 = vld [vmem:[%s192 + $0x8] sm:$0xf]
      %v324 = vld [vmem:[%s192 + $0xc] sm:$0xf]
      %v325 = vld [vmem:[%s192 + $0x10] sm:$0xf]
      %v326 = vld [vmem:[%s192 + $0x14] sm:$0xf]
      %v327 = vld [vmem:[%s192 + $0x18] sm:$0xf]
      %v328 = vld [vmem:[%s192 + $0x1c] sm:$0xf]
      %v329 = vld [vmem:[%s192 + $0x20] sm:$0xf]
      %v330 = vld [vmem:[%s192 + $0x24] sm:$0xf]
      %v331 = vld [vmem:[%s192 + $0x28] sm:$0xf]
      %v332 = vld [vmem:[%s192 + $0x2c] sm:$0xf]
      %v333 = vld [vmem:[%s192 + $0x30] sm:$0xf]
      %v334 = vld [vmem:[%s192 + $0x34] sm:$0xf]
      %v335 = vld [vmem:[%s192 + $0x38] sm:$0xf]
      %v336 = vld [vmem:[%s192 + $0x3c] sm:$0xf]
      %v337 = vld [vmem:[%s192 + $0x40] sm:$0xf]
      %v338 = vld [vmem:[%s192 + $0x44] sm:$0xf]
      %v339 = vld [vmem:[%s192 + $0x48] sm:$0xf]
      %v340 = vld [vmem:[%s192 + $0x4c] sm:$0xf]
      %v341 = vld [vmem:[%s192 + $0x50] sm:$0xf]
      %v342 = vld [vmem:[%s192 + $0x54] sm:$0xf]
      %v343 = vld [vmem:[%s192 + $0x58] sm:$0xf]
      %v344 = vld [vmem:[%s192 + $0x5c] sm:$0xf]
      %v345 = vld [vmem:[%s192 + $0x60] sm:$0xf]
      %v346 = vld [vmem:[%s192 + $0x64] sm:$0xf]
      %v347 = vld [vmem:[%s192 + $0x68] sm:$0xf]
      %v348 = vld [vmem:[%s192 + $0x6c] sm:$0xf]
      %v349 = vld [vmem:[%s192 + $0x70] sm:$0xf]
      %v350 = vld [vmem:[%s192 + $0x74] sm:$0xf]
      %v351 = vld [vmem:[%s192 + $0x78] sm:$0xf]
      %v352 = vld [vmem:[%s192 + $0x7c] sm:$0xf]
      %v353 = vunpack.c.l.bf16 %v321
      %v354 = vunpack.c.l.bf16 %v322
      %v355 = vunpack.c.l.bf16 %v323
      %v356 = vunpack.c.l.bf16 %v324
      %v357 = vunpack.c.l.bf16 %v325
      %v358 = vunpack.c.l.bf16 %v326
      %v359 = vunpack.c.l.bf16 %v327
      %v360 = vunpack.c.l.bf16 %v328
      %v361 = vunpack.c.l.bf16 %v329
      %v362 = vunpack.c.l.bf16 %v330
      %v363 = vunpack.c.l.bf16 %v331
      %v364 = vunpack.c.l.bf16 %v332
      %v365 = vunpack.c.l.bf16 %v333
      %v366 = vunpack.c.l.bf16 %v334
      %v367 = vunpack.c.l.bf16 %v335
      %v368 = vunpack.c.l.bf16 %v336
      %v369 = vunpack.c.l.bf16 %v337
      %v370 = vunpack.c.l.bf16 %v338
      %v371 = vunpack.c.l.bf16 %v339
      %v372 = vunpack.c.l.bf16 %v340
      %v373 = vunpack.c.l.bf16 %v341
      %v374 = vunpack.c.l.bf16 %v342
      %v375 = vunpack.c.l.bf16 %v343
      %v376 = vunpack.c.l.bf16 %v344
      %v377 = vunpack.c.l.bf16 %v345
      %v378 = vunpack.c.l.bf16 %v346
      %v379 = vunpack.c.l.bf16 %v347
      %v380 = vunpack.c.l.bf16 %v348
      %v381 = vunpack.c.l.bf16 %v349
      %v382 = vunpack.c.l.bf16 %v350
      %v383 = vunpack.c.l.bf16 %v351
      %v384 = vunpack.c.l.bf16 %v352
      %v385 = vld [vmem:[%s1] sm:$0x1]
      %v387 = vlaneseq
      %v388 = vshrl.u32 %v387, 7
      %v389 = vsub.s32 0, %v388
      %v390 = vrot.slane %v385, %v389
      %v392 = vmul.f32 %v353, %v390
      %v393 = vmul.f32 %v354, %v390
      %v394 = vmul.f32 %v355, %v390
      %v395 = vmul.f32 %v356, %v390
      %v396 = vmul.f32 %v357, %v390
      %v397 = vmul.f32 %v358, %v390
      %v398 = vmul.f32 %v359, %v390
      %v399 = vmul.f32 %v360, %v390
      %v400 = vmul.f32 %v361, %v390
      %v401 = vmul.f32 %v362, %v390
      %v402 = vmul.f32 %v363, %v390
      %v403 = vmul.f32 %v364, %v390
      %v404 = vmul.f32 %v365, %v390
      %v405 = vmul.f32 %v366, %v390
      %v406 = vmul.f32 %v367, %v390
      %v407 = vmul.f32 %v368, %v390
      %v408 = vmul.f32 %v369, %v390
      %v409 = vmul.f32 %v370, %v390
      %v410 = vmul.f32 %v371, %v390
      %v411 = vmul.f32 %v372, %v390
      %v412 = vmul.f32 %v373, %v390
      %v413 = vmul.f32 %v374, %v390
      %v414 = vmul.f32 %v375, %v390
      %v415 = vmul.f32 %v376, %v390
      %v416 = vmul.f32 %v377, %v390
      %v417 = vmul.f32 %v378, %v390
      %v418 = vmul.f32 %v379, %v390
      %v419 = vmul.f32 %v380, %v390
      %v420 = vmul.f32 %v381, %v390
      %v421 = vmul.f32 %v382, %v390
      %v422 = vmul.f32 %v383, %v390
      %v423 = vmul.f32 %v384, %v390
      %v424 = vld [vmem:[%s2] sm:$0x1]
      %v426 = vlaneseq
      %v427 = vshrl.u32 %v426, 7
      %v428 = vsub.s32 0, %v427
      %v429 = vrot.slane %v424, %v428
      %v431 = vadd.f32 %v392, %v429
      %v432 = vadd.f32 %v393, %v429
      %v433 = vadd.f32 %v394, %v429
      %v434 = vadd.f32 %v395, %v429
      %v435 = vadd.f32 %v396, %v429
      %v436 = vadd.f32 %v397, %v429
      %v437 = vadd.f32 %v398, %v429
      %v438 = vadd.f32 %v399, %v429
      %v439 = vadd.f32 %v400, %v429
      %v440 = vadd.f32 %v401, %v429
      %v441 = vadd.f32 %v402, %v429
      %v442 = vadd.f32 %v403, %v429
      %v443 = vadd.f32 %v404, %v429
      %v444 = vadd.f32 %v405, %v429
      %v445 = vadd.f32 %v406, %v429
      %v446 = vadd.f32 %v407, %v429
      %v447 = vadd.f32 %v408, %v429
      %v448 = vadd.f32 %v409, %v429
      %v449 = vadd.f32 %v410, %v429
      %v450 = vadd.f32 %v411, %v429
      %v451 = vadd.f32 %v412, %v429
      %v452 = vadd.f32 %v413, %v429
      %v453 = vadd.f32 %v414, %v429
      %v454 = vadd.f32 %v415, %v429
      %v455 = vadd.f32 %v416, %v429
      %v456 = vadd.f32 %v417, %v429
      %v457 = vadd.f32 %v418, %v429
      %v458 = vadd.f32 %v419, %v429
      %v459 = vadd.f32 %v420, %v429
      %v460 = vadd.f32 %v421, %v429
      %v461 = vadd.f32 %v422, %v429
      %v462 = vadd.f32 %v423, %v429
      %v463 = vmax.f32 %v431, 0.0
      %v464 = vmax.f32 %v432, 0.0
      %v465 = vmax.f32 %v433, 0.0
      %v466 = vmax.f32 %v434, 0.0
      %v467 = vmax.f32 %v435, 0.0
      %v468 = vmax.f32 %v436, 0.0
      %v469 = vmax.f32 %v437, 0.0
      %v470 = vmax.f32 %v438, 0.0
      %v471 = vmax.f32 %v439, 0.0
      %v472 = vmax.f32 %v440, 0.0
      %v473 = vmax.f32 %v441, 0.0
      %v474 = vmax.f32 %v442, 0.0
      %v475 = vmax.f32 %v443, 0.0
      %v476 = vmax.f32 %v444, 0.0
      %v477 = vmax.f32 %v445, 0.0
      %v478 = vmax.f32 %v446, 0.0
      %v479 = vmax.f32 %v447, 0.0
      %v480 = vmax.f32 %v448, 0.0
      %v481 = vmax.f32 %v449, 0.0
      %v482 = vmax.f32 %v450, 0.0
      %v483 = vmax.f32 %v451, 0.0
      %v484 = vmax.f32 %v452, 0.0
      %v485 = vmax.f32 %v453, 0.0
      %v486 = vmax.f32 %v454, 0.0
      %v487 = vmax.f32 %v455, 0.0
      %v488 = vmax.f32 %v456, 0.0
      %v489 = vmax.f32 %v457, 0.0
      %v490 = vmax.f32 %v458, 0.0
      %v491 = vmax.f32 %v459, 0.0
      %v492 = vmax.f32 %v460, 0.0
      %v493 = vmax.f32 %v461, 0.0
      %v494 = vmax.f32 %v462, 0.0
      %v495 = vpack.c.bf16 %v464, %v463
      %v496 = vpack.c.bf16 %v466, %v465
      %v497 = vpack.c.bf16 %v468, %v467
      %v498 = vpack.c.bf16 %v470, %v469
      %v499 = vpack.c.bf16 %v472, %v471
      %v500 = vpack.c.bf16 %v474, %v473
      %v501 = vpack.c.bf16 %v476, %v475
      %v502 = vpack.c.bf16 %v478, %v477
      %v503 = vpack.c.bf16 %v480, %v479
      %v504 = vpack.c.bf16 %v482, %v481
      %v505 = vpack.c.bf16 %v484, %v483
      %v506 = vpack.c.bf16 %v486, %v485
      %v507 = vpack.c.bf16 %v488, %v487
      %v508 = vpack.c.bf16 %v490, %v489
      %v509 = vpack.c.bf16 %v492, %v491
      %v510 = vpack.c.bf16 %v494, %v493
      %v527 = vunpack.c.l.b16 %v495
      %v528 = vunpack.c.h.b16 %v495
      %v529 = vunpack.c.l.b16 %v496
      %v530 = vunpack.c.h.b16 %v496
      %v531 = vunpack.c.l.b16 %v497
      %v532 = vunpack.c.h.b16 %v497
      %v533 = vunpack.c.l.b16 %v498
      %v534 = vunpack.c.h.b16 %v498
      %v535 = vunpack.c.l.b16 %v499
      %v536 = vunpack.c.h.b16 %v499
      %v537 = vunpack.c.l.b16 %v500
      %v538 = vunpack.c.h.b16 %v500
      %v539 = vunpack.c.l.b16 %v501
      %v540 = vunpack.c.h.b16 %v501
      %v541 = vunpack.c.l.b16 %v502
      %v542 = vunpack.c.h.b16 %v502
      %v543 = vunpack.c.l.b16 %v503
      %v544 = vunpack.c.h.b16 %v503
      %v545 = vunpack.c.l.b16 %v504
      %v546 = vunpack.c.h.b16 %v504
      %v547 = vunpack.c.l.b16 %v505
      %v548 = vunpack.c.h.b16 %v505
      %v549 = vunpack.c.l.b16 %v506
      %v550 = vunpack.c.h.b16 %v506
      %v551 = vunpack.c.l.b16 %v507
      %v552 = vunpack.c.h.b16 %v507
      %v553 = vunpack.c.l.b16 %v508
      %v554 = vunpack.c.h.b16 %v508
      %v555 = vunpack.c.l.b16 %v509
      %v556 = vunpack.c.h.b16 %v509
      %v557 = vunpack.c.l.b16 %v510
      %v558 = vunpack.c.h.b16 %v510
      %v559 = vpack.c.b16 %v527, %v527
      %v560 = vpack.c.b16 %v528, %v528
      %v561 = vpack.c.b16 %v529, %v529
      %v562 = vpack.c.b16 %v530, %v530
      %v563 = vpack.c.b16 %v531, %v531
      %v564 = vpack.c.b16 %v532, %v532
      %v565 = vpack.c.b16 %v533, %v533
      %v566 = vpack.c.b16 %v534, %v534
      %v567 = vpack.c.b16 %v535, %v535
      %v568 = vpack.c.b16 %v536, %v536
      %v569 = vpack.c.b16 %v537, %v537
      %v570 = vpack.c.b16 %v538, %v538
      %v571 = vpack.c.b16 %v539, %v539
      %v572 = vpack.c.b16 %v540, %v540
      %v573 = vpack.c.b16 %v541, %v541
      %v574 = vpack.c.b16 %v542, %v542
      %v575 = vpack.c.b16 %v543, %v543
      %v576 = vpack.c.b16 %v544, %v544
      %v577 = vpack.c.b16 %v545, %v545
      %v578 = vpack.c.b16 %v546, %v546
      %v579 = vpack.c.b16 %v547, %v547
      %v580 = vpack.c.b16 %v548, %v548
      %v581 = vpack.c.b16 %v549, %v549
      %v582 = vpack.c.b16 %v550, %v550
      %v583 = vpack.c.b16 %v551, %v551
      %v584 = vpack.c.b16 %v552, %v552
      %v585 = vpack.c.b16 %v553, %v553
      %v586 = vpack.c.b16 %v554, %v554
      %v587 = vpack.c.b16 %v555, %v555
      %v588 = vpack.c.b16 %v556, %v556
      %v589 = vpack.c.b16 %v557, %v557
      %v590 = vpack.c.b16 %v558, %v558
      %vm591 = vsmask.f32 4368
      %vm592 = vmor %vm209, %vm591
      %v594 = vshrl.u32 %v559, 16
      %v596 = vrot.slane %v594, 7
      %v597 = vshll.u32 %v559, 16
      %v599 = vor.u32 %v596, %v597
      %v600 = vrot.slane %v596, 4
      %v602 = vshrl.u32 %v560, 16
      %v604 = vrot.slane %v602, 7
      %v605 = vshll.u32 %v560, 16
      %v607 = vor.u32 %v604, %v605
      %v608 = vsel %vm592, %v600, %v607
      %v609 = vrot.slane %v604, 4
      %v611 = vshrl.u32 %v561, 16
      %v613 = vrot.slane %v611, 7
      %v614 = vshll.u32 %v561, 16
      %v616 = vor.u32 %v613, %v614
      %v617 = vrot.slane %v613, 4
      %v619 = vshrl.u32 %v562, 16
      %v621 = vrot.slane %v619, 7
      %v622 = vshll.u32 %v562, 16
      %v624 = vor.u32 %v621, %v622
      %v625 = vsel %vm592, %v617, %v624
      %v626 = vrot.slane %v621, 4
      %v628 = vshrl.u32 %v563, 16
      %v630 = vrot.slane %v628, 7
      %v631 = vshll.u32 %v563, 16
      %v633 = vor.u32 %v630, %v631
      %v634 = vrot.slane %v630, 4
      %v636 = vshrl.u32 %v564, 16
      %v638 = vrot.slane %v636, 7
      %v639 = vshll.u32 %v564, 16
      %v641 = vor.u32 %v638, %v639
      %v642 = vsel %vm592, %v634, %v641
      %v643 = vrot.slane %v638, 4
      %v645 = vshrl.u32 %v565, 16
      %v647 = vrot.slane %v645, 7
      %v648 = vshll.u32 %v565, 16
      %v650 = vor.u32 %v647, %v648
      %v651 = vrot.slane %v647, 4
      %v653 = vshrl.u32 %v566, 16
      %v655 = vrot.slane %v653, 7
      %v656 = vshll.u32 %v566, 16
      %v658 = vor.u32 %v655, %v656
      %v659 = vsel %vm592, %v651, %v658
      %v660 = vrot.slane %v655, 4
      %v662 = vshrl.u32 %v567, 16
      %v664 = vrot.slane %v662, 7
      %v665 = vshll.u32 %v567, 16
      %v667 = vor.u32 %v664, %v665
      %v668 = vrot.slane %v664, 4
      %v670 = vshrl.u32 %v568, 16
      %v672 = vrot.slane %v670, 7
      %v673 = vshll.u32 %v568, 16
      %v675 = vor.u32 %v672, %v673
      %v676 = vsel %vm592, %v668, %v675
      %v677 = vrot.slane %v672, 4
      %v679 = vshrl.u32 %v569, 16
      %v681 = vrot.slane %v679, 7
      %v682 = vshll.u32 %v569, 16
      %v684 = vor.u32 %v681, %v682
      %v685 = vrot.slane %v681, 4
      %v687 = vshrl.u32 %v570, 16
      %v689 = vrot.slane %v687, 7
      %v690 = vshll.u32 %v570, 16
      %v692 = vor.u32 %v689, %v690
      %v693 = vsel %vm592, %v685, %v692
      %v694 = vrot.slane %v689, 4
      %v696 = vshrl.u32 %v571, 16
      %v698 = vrot.slane %v696, 7
      %v699 = vshll.u32 %v571, 16
      %v701 = vor.u32 %v698, %v699
      %v702 = vrot.slane %v698, 4
      %v704 = vshrl.u32 %v572, 16
      %v706 = vrot.slane %v704, 7
      %v707 = vshll.u32 %v572, 16
      %v709 = vor.u32 %v706, %v707
      %v710 = vsel %vm592, %v702, %v709
      %v711 = vrot.slane %v706, 4
      %v713 = vshrl.u32 %v573, 16
      %v715 = vrot.slane %v713, 7
      %v716 = vshll.u32 %v573, 16
      %v718 = vor.u32 %v715, %v716
      %v719 = vrot.slane %v715, 4
      %v721 = vshrl.u32 %v574, 16
      %v723 = vrot.slane %v721, 7
      %v724 = vshll.u32 %v574, 16
      %v726 = vor.u32 %v723, %v724
      %v727 = vsel %vm592, %v719, %v726
      %v728 = vrot.slane %v723, 4
      %v730 = vshrl.u32 %v575, 16
      %v732 = vrot.slane %v730, 7
      %v733 = vshll.u32 %v575, 16
      %v735 = vor.u32 %v732, %v733
      %v736 = vrot.slane %v732, 4
      %v738 = vshrl.u32 %v576, 16
      %v740 = vrot.slane %v738, 7
      %v741 = vshll.u32 %v576, 16
      %v743 = vor.u32 %v740, %v741
      %v744 = vsel %vm592, %v736, %v743
      %v745 = vrot.slane %v740, 4
      %v747 = vshrl.u32 %v577, 16
      %v749 = vrot.slane %v747, 7
      %v750 = vshll.u32 %v577, 16
      %v752 = vor.u32 %v749, %v750
      %v753 = vrot.slane %v749, 4
      %v755 = vshrl.u32 %v578, 16
      %v757 = vrot.slane %v755, 7
      %v758 = vshll.u32 %v578, 16
      %v760 = vor.u32 %v757, %v758
      %v761 = vsel %vm592, %v753, %v760
      %v762 = vrot.slane %v757, 4
      %v764 = vshrl.u32 %v579, 16
      %v766 = vrot.slane %v764, 7
      %v767 = vshll.u32 %v579, 16
      %v769 = vor.u32 %v766, %v767
      %v770 = vrot.slane %v766, 4
      %v772 = vshrl.u32 %v580, 16
      %v774 = vrot.slane %v772, 7
      %v775 = vshll.u32 %v580, 16
      %v777 = vor.u32 %v774, %v775
      %v778 = vsel %vm592, %v770, %v777
      %v779 = vrot.slane %v774, 4
      %v781 = vshrl.u32 %v581, 16
      %v783 = vrot.slane %v781, 7
      %v784 = vshll.u32 %v581, 16
      %v786 = vor.u32 %v783, %v784
      %v787 = vrot.slane %v783, 4
      %v789 = vshrl.u32 %v582, 16
      %v791 = vrot.slane %v789, 7
      %v792 = vshll.u32 %v582, 16
      %v794 = vor.u32 %v791, %v792
      %v795 = vsel %vm592, %v787, %v794
      %v796 = vrot.slane %v791, 4
      %v798 = vshrl.u32 %v583, 16
      %v800 = vrot.slane %v798, 7
      %v801 = vshll.u32 %v583, 16
      %v803 = vor.u32 %v800, %v801
      %v804 = vrot.slane %v800, 4
      %v806 = vshrl.u32 %v584, 16
      %v808 = vrot.slane %v806, 7
      %v809 = vshll.u32 %v584, 16
      %v811 = vor.u32 %v808, %v809
      %v812 = vsel %vm592, %v804, %v811
      %v813 = vrot.slane %v808, 4
      %v815 = vshrl.u32 %v585, 16
      %v817 = vrot.slane %v815, 7
      %v818 = vshll.u32 %v585, 16
      %v820 = vor.u32 %v817, %v818
      %v821 = vrot.slane %v817, 4
      %v823 = vshrl.u32 %v586, 16
      %v825 = vrot.slane %v823, 7
      %v826 = vshll.u32 %v586, 16
      %v828 = vor.u32 %v825, %v826
      %v829 = vsel %vm592, %v821, %v828
      %v830 = vrot.slane %v825, 4
      %v832 = vshrl.u32 %v587, 16
      %v834 = vrot.slane %v832, 7
      %v835 = vshll.u32 %v587, 16
      %v837 = vor.u32 %v834, %v835
      %v838 = vrot.slane %v834, 4
      %v840 = vshrl.u32 %v588, 16
      %v842 = vrot.slane %v840, 7
      %v843 = vshll.u32 %v588, 16
      %v845 = vor.u32 %v842, %v843
      %v846 = vsel %vm592, %v838, %v845
      %v847 = vrot.slane %v842, 4
      %v849 = vshrl.u32 %v589, 16
      %v851 = vrot.slane %v849, 7
      %v852 = vshll.u32 %v589, 16
      %v854 = vor.u32 %v851, %v852
      %v855 = vrot.slane %v851, 4
      %v857 = vshrl.u32 %v590, 16
      %v859 = vrot.slane %v857, 7
      %v860 = vshll.u32 %v590, 16
      %v862 = vor.u32 %v859, %v860
      %v863 = vsel %vm592, %v855, %v862
      %v864 = vrot.slane %v859, 4
      %s913 = scalar_lea.vmem [#allocation2], 12
      %vm914 = vcmask 60416
      %vm915 = vmand %vm914, %vm265
      %v916 = vld [vmem:[%s913] sm:$0xf]
      %v917 = vsel %vm915, %v599, %v916
      %918 = vst [vmem:[%s913] sm:$0xf] %v917
      %919 = vst.msk [vmem:[%s913 + $0x4] sm:$0xf] %vm199, %v608
      %v920 = vld [vmem:[%s913 + $0x8] sm:$0x1]
      %v921 = vsel %vm210, %v609, %v920
      %922 = vst [vmem:[%s913 + $0x8] sm:$0x1] %v921
      %v923 = vld [vmem:[%s913 + $0xc] sm:$0xf]
      %v924 = vsel %vm915, %v616, %v923
      %925 = vst [vmem:[%s913 + $0xc] sm:$0xf] %v924
      %926 = vst.msk [vmem:[%s913 + $0x10] sm:$0xf] %vm199, %v625
      %v927 = vld [vmem:[%s913 + $0x14] sm:$0x1]
      %v928 = vsel %vm210, %v626, %v927
      %929 = vst [vmem:[%s913 + $0x14] sm:$0x1] %v928
      %v930 = vld [vmem:[%s913 + $0x18] sm:$0xf]
      %v931 = vsel %vm915, %v633, %v930
      %932 = vst [vmem:[%s913 + $0x18] sm:$0xf] %v931
      %933 = vst.msk [vmem:[%s913 + $0x1c] sm:$0xf] %vm199, %v642
      %v934 = vld [vmem:[%s913 + $0x20] sm:$0x1]
      %v935 = vsel %vm210, %v643, %v934
      %936 = vst [vmem:[%s913 + $0x20] sm:$0x1] %v935
      %v937 = vld [vmem:[%s913 + $0x24] sm:$0xf]
      %v938 = vsel %vm915, %v650, %v937
      %939 = vst [vmem:[%s913 + $0x24] sm:$0xf] %v938
      %940 = vst.msk [vmem:[%s913 + $0x28] sm:$0xf] %vm199, %v659
      %v941 = vld [vmem:[%s913 + $0x2c] sm:$0x1]
      %v942 = vsel %vm210, %v660, %v941
      %943 = vst [vmem:[%s913 + $0x2c] sm:$0x1] %v942
      %v944 = vld [vmem:[%s913 + $0x30] sm:$0xf]
      %v945 = vsel %vm915, %v667, %v944
      %946 = vst [vmem:[%s913 + $0x30] sm:$0xf] %v945
      %947 = vst.msk [vmem:[%s913 + $0x34] sm:$0xf] %vm199, %v676
      %v948 = vld [vmem:[%s913 + $0x38] sm:$0x1]
      %v949 = vsel %vm210, %v677, %v948
      %950 = vst [vmem:[%s913 + $0x38] sm:$0x1] %v949
      %v951 = vld [vmem:[%s913 + $0x3c] sm:$0xf]
      %v952 = vsel %vm915, %v684, %v951
      %953 = vst [vmem:[%s913 + $0x3c] sm:$0xf] %v952
      %954 = vst.msk [vmem:[%s913 + $0x40] sm:$0xf] %vm199, %v693
      %v955 = vld [vmem:[%s913 + $0x44] sm:$0x1]
      %v956 = vsel %vm210, %v694, %v955
      %957 = vst [vmem:[%s913 + $0x44] sm:$0x1] %v956
      %v958 = vld [vmem:[%s913 + $0x48] sm:$0xf]
      %v959 = vsel %vm915, %v701, %v958
      %960 = vst [vmem:[%s913 + $0x48] sm:$0xf] %v959
      %961 = vst.msk [vmem:[%s913 + $0x4c] sm:$0xf] %vm199, %v710
      %v962 = vld [vmem:[%s913 + $0x50] sm:$0x1]
      %v963 = vsel %vm210, %v711, %v962
      %964 = vst [vmem:[%s913 + $0x50] sm:$0x1] %v963
      %v965 = vld [vmem:[%s913 + $0x54] sm:$0xf]
      %v966 = vsel %vm915, %v718, %v965
      %967 = vst [vmem:[%s913 + $0x54] sm:$0xf] %v966
      %968 = vst.msk [vmem:[%s913 + $0x58] sm:$0xf] %vm199, %v727
      %v969 = vld [vmem:[%s913 + $0x5c] sm:$0x1]
      %v970 = vsel %vm210, %v728, %v969
      %971 = vst [vmem:[%s913 + $0x5c] sm:$0x1] %v970
      %v972 = vld [vmem:[%s913 + $0x60] sm:$0xf]
      %v973 = vsel %vm915, %v735, %v972
      %974 = vst [vmem:[%s913 + $0x60] sm:$0xf] %v973
      %975 = vst.msk [vmem:[%s913 + $0x64] sm:$0xf] %vm199, %v744
      %v976 = vld [vmem:[%s913 + $0x68] sm:$0x1]
      %v977 = vsel %vm210, %v745, %v976
      %978 = vst [vmem:[%s913 + $0x68] sm:$0x1] %v977
      %v979 = vld [vmem:[%s913 + $0x6c] sm:$0xf]
      %v980 = vsel %vm915, %v752, %v979
      %981 = vst [vmem:[%s913 + $0x6c] sm:$0xf] %v980
      %982 = vst.msk [vmem:[%s913 + $0x70] sm:$0xf] %vm199, %v761
      %v983 = vld [vmem:[%s913 + $0x74] sm:$0x1]
      %v984 = vsel %vm210, %v762, %v983
      %985 = vst [vmem:[%s913 + $0x74] sm:$0x1] %v984
      %v986 = vld [vmem:[%s913 + $0x78] sm:$0xf]
      %v987 = vsel %vm915, %v769, %v986
      %988 = vst [vmem:[%s913 + $0x78] sm:$0xf] %v987
      %989 = vst.msk [vmem:[%s913 + $0x7c] sm:$0xf] %vm199, %v778
      %v990 = vld [vmem:[%s913 + $0x80] sm:$0x1]
      %v991 = vsel %vm210, %v779, %v990
      %992 = vst [vmem:[%s913 + $0x80] sm:$0x1] %v991
      %v993 = vld [vmem:[%s913 + $0x84] sm:$0xf]
      %v994 = vsel %vm915, %v786, %v993
      %995 = vst [vmem:[%s913 + $0x84] sm:$0xf] %v994
      %996 = vst.msk [vmem:[%s913 + $0x88] sm:$0xf] %vm199, %v795
      %v997 = vld [vmem:[%s913 + $0x8c] sm:$0x1]
      %v998 = vsel %vm210, %v796, %v997
      %999 = vst [vmem:[%s913 + $0x8c] sm:$0x1] %v998
      %v1000 = vld [vmem:[%s913 + $0x90] sm:$0xf]
      %v1001 = vsel %vm915, %v803, %v1000
      %1002 = vst [vmem:[%s913 + $0x90] sm:$0xf] %v1001
      %1003 = vst.msk [vmem:[%s913 + $0x94] sm:$0xf] %vm199, %v812
      %v1004 = vld [vmem:[%s913 + $0x98] sm:$0x1]
      %v1005 = vsel %vm210, %v813, %v1004
      %1006 = vst [vmem:[%s913 + $0x98] sm:$0x1] %v1005
      %v1007 = vld [vmem:[%s913 + $0x9c] sm:$0xf]
      %v1008 = vsel %vm915, %v820, %v1007
      %1009 = vst [vmem:[%s913 + $0x9c] sm:$0xf] %v1008
      %1010 = vst.msk [vmem:[%s913 + $0xa0] sm:$0xf] %vm199, %v829
      %v1011 = vld [vmem:[%s913 + $0xa4] sm:$0x1]
      %v1012 = vsel %vm210, %v830, %v1011
      %1013 = vst [vmem:[%s913 + $0xa4] sm:$0x1] %v1012
      %v1014 = vld [vmem:[%s913 + $0xa8] sm:$0xf]
      %v1015 = vsel %vm915, %v837, %v1014
      %1016 = vst [vmem:[%s913 + $0xa8] sm:$0xf] %v1015
      %1017 = vst.msk [vmem:[%s913 + $0xac] sm:$0xf] %vm199, %v846
      %v1018 = vld [vmem:[%s913 + $0xb0] sm:$0x1]
      %v1019 = vsel %vm210, %v847, %v1018
      %1020 = vst [vmem:[%s913 + $0xb0] sm:$0x1] %v1019
      %v1021 = vld [vmem:[%s913 + $0xb4] sm:$0xf]
      %v1022 = vsel %vm915, %v854, %v1021
      %1023 = vst [vmem:[%s913 + $0xb4] sm:$0xf] %v1022
      %1024 = vst.msk [vmem:[%s913 + $0xb8] sm:$0xf] %vm199, %v863
      %v1025 = vld [vmem:[%s913 + $0xbc] sm:$0x1]
      %v1026 = vsel %vm210, %v864, %v1025
      %1027 = vst [vmem:[%s913 + $0xbc] sm:$0x1] %v1026
      %v1028 = vld [vmem:[#allocation2] sm:$0xf]
      %v1029 = vld [vmem:[#allocation2 + $0x4] sm:$0xf]
      %v1030 = vld [vmem:[#allocation2 + $0xc] sm:$0xf]
      %v1031 = vld [vmem:[#allocation2 + $0x10] sm:$0xf]
      %v1032 = vld [vmem:[#allocation2 + $0x18] sm:$0xf]
      %v1033 = vld [vmem:[#allocation2 + $0x1c] sm:$0xf]
      %v1034 = vld [vmem:[#allocation2 + $0x24] sm:$0xf]
      %v1035 = vld [vmem:[#allocation2 + $0x28] sm:$0xf]
      %v1036 = vld [vmem:[#allocation2 + $0x30] sm:$0xf]
      %v1037 = vld [vmem:[#allocation2 + $0x34] sm:$0xf]
      %v1038 = vld [vmem:[#allocation2 + $0x3c] sm:$0xf]
      %v1039 = vld [vmem:[#allocation2 + $0x40] sm:$0xf]
      %v1040 = vld [vmem:[#allocation2 + $0x48] sm:$0xf]
      %v1041 = vld [vmem:[#allocation2 + $0x4c] sm:$0xf]
      %v1042 = vld [vmem:[#allocation2 + $0x54] sm:$0xf]
      %v1043 = vld [vmem:[#allocation2 + $0x58] sm:$0xf]
      %v1044 = vld [vmem:[#allocation2 + $0x60] sm:$0xf]
      %v1045 = vld [vmem:[#allocation2 + $0x64] sm:$0xf]
      %v1046 = vld [vmem:[#allocation2 + $0x6c] sm:$0xf]
      %v1047 = vld [vmem:[#allocation2 + $0x70] sm:$0xf]
      %v1048 = vld [vmem:[#allocation2 + $0x78] sm:$0xf]
      %v1049 = vld [vmem:[#allocation2 + $0x7c] sm:$0xf]
      %v1050 = vld [vmem:[#allocation2 + $0x84] sm:$0xf]
      %v1051 = vld [vmem:[#allocation2 + $0x88] sm:$0xf]
      %v1052 = vld [vmem:[#allocation2 + $0x90] sm:$0xf]
      %v1053 = vld [vmem:[#allocation2 + $0x94] sm:$0xf]
      %v1054 = vld [vmem:[#allocation2 + $0x9c] sm:$0xf]
      %v1055 = vld [vmem:[#allocation2 + $0xa0] sm:$0xf]
      %v1056 = vld [vmem:[#allocation2 + $0xa8] sm:$0xf]
      %v1057 = vld [vmem:[#allocation2 + $0xac] sm:$0xf]
      %v1058 = vld [vmem:[#allocation2 + $0xb4] sm:$0xf]
      %v1059 = vld [vmem:[#allocation2 + $0xb8] sm:$0xf]
      %v1060 = vld [vmem:[%s3] sm:$0xf]
      %v1061 = vld [vmem:[#allocation2 + $0x8] sm:$0x1]
      %v1062 = vld [vmem:[#allocation2 + $0x14] sm:$0x1]
      %v1063 = vld [vmem:[#allocation2 + $0x20] sm:$0x1]
      %v1064 = vld [vmem:[#allocation2 + $0x2c] sm:$0x1]
      %v1065 = vld [vmem:[#allocation2 + $0x38] sm:$0x1]
      %v1066 = vld [vmem:[#allocation2 + $0x44] sm:$0x1]
      %v1067 = vld [vmem:[#allocation2 + $0x50] sm:$0x1]
      %v1068 = vld [vmem:[#allocation2 + $0x5c] sm:$0x1]
      %v1069 = vld [vmem:[#allocation2 + $0x68] sm:$0x1]
      %v1070 = vld [vmem:[#allocation2 + $0x74] sm:$0x1]
      %v1071 = vld [vmem:[#allocation2 + $0x80] sm:$0x1]
      %v1072 = vld [vmem:[#allocation2 + $0x8c] sm:$0x1]
      %v1073 = vld [vmem:[#allocation2 + $0x98] sm:$0x1]
      %v1074 = vld [vmem:[#allocation2 + $0xa4] sm:$0x1]
      %v1075 = vld [vmem:[#allocation2 + $0xb0] sm:$0x1]
      %v1076 = vld [vmem:[#allocation2 + $0xbc] sm:$0x1]
      %vm1077 = vsmask.f32 3328
      %vm1078 = vsmask.f32 7440
      %vm1079 = vmor %vm1077, %vm1078
      %v1081 = vshrl.u32 %v1028, 16
      %v1083 = vrot.slane %v1081, 4
      %v1084 = vshll.u32 %v1028, 16
      %v1086 = vrot.slane %v1084, 5
      %v1087 = vor.u32 %v1083, %v1086
      %v1088 = vrot.slane %v1087, 4
      %v1090 = vshll.u32 %v1029, 16
      %v1092 = vrot.slane %v1090, 5
      %v1093 = vsel %vm1079, %v1088, %v1092
      %v1094 = vshrl.u32 %v1029, 16
      %v1096 = vrot.slane %v1094, 4
      %v1097 = vor.u32 %v1096, %v1092
      %v1098 = vrot.slane %v1097, 4
      %v1100 = vshll.u32 %v1061, 16
      %v1102 = vrot.slane %v1100, 5
      %v1103 = vsel %vm1079, %v1098, %v1102
      %v1105 = vshrl.u32 %v1030, 16
      %v1107 = vrot.slane %v1105, 4
      %v1108 = vshll.u32 %v1030, 16
      %v1110 = vrot.slane %v1108, 5
      %v1111 = vor.u32 %v1107, %v1110
      %v1112 = vrot.slane %v1111, 4
      %v1114 = vshll.u32 %v1031, 16
      %v1116 = vrot.slane %v1114, 5
      %v1117 = vsel %vm1079, %v1112, %v1116
      %v1118 = vshrl.u32 %v1031, 16
      %v1120 = vrot.slane %v1118, 4
      %v1121 = vor.u32 %v1120, %v1116
      %v1122 = vrot.slane %v1121, 4
      %v1124 = vshll.u32 %v1062, 16
      %v1126 = vrot.slane %v1124, 5
      %v1127 = vsel %vm1079, %v1122, %v1126
      %v1129 = vshrl.u32 %v1032, 16
      %v1131 = vrot.slane %v1129, 4
      %v1132 = vshll.u32 %v1032, 16
      %v1134 = vrot.slane %v1132, 5
      %v1135 = vor.u32 %v1131, %v1134
      %v1136 = vrot.slane %v1135, 4
      %v1138 = vshll.u32 %v1033, 16
      %v1140 = vrot.slane %v1138, 5
      %v1141 = vsel %vm1079, %v1136, %v1140
      %v1142 = vshrl.u32 %v1033, 16
      %v1144 = vrot.slane %v1142, 4
      %v1145 = vor.u32 %v1144, %v1140
      %v1146 = vrot.slane %v1145, 4
      %v1148 = vshll.u32 %v1063, 16
      %v1150 = vrot.slane %v1148, 5
      %v1151 = vsel %vm1079, %v1146, %v1150
      %v1153 = vshrl.u32 %v1034, 16
      %v1155 = vrot.slane %v1153, 4
      %v1156 = vshll.u32 %v1034, 16
      %v1158 = vrot.slane %v1156, 5
      %v1159 = vor.u32 %v1155, %v1158
      %v1160 = vrot.slane %v1159, 4
      %v1162 = vshll.u32 %v1035, 16
      %v1164 = vrot.slane %v1162, 5
      %v1165 = vsel %vm1079, %v1160, %v1164
      %v1166 = vshrl.u32 %v1035, 16
      %v1168 = vrot.slane %v1166, 4
      %v1169 = vor.u32 %v1168, %v1164
      %v1170 = vrot.slane %v1169, 4
      %v1172 = vshll.u32 %v1064, 16
      %v1174 = vrot.slane %v1172, 5
      %v1175 = vsel %vm1079, %v1170, %v1174
      %v1177 = vshrl.u32 %v1036, 16
      %v1179 = vrot.slane %v1177, 4
      %v1180 = vshll.u32 %v1036, 16
      %v1182 = vrot.slane %v1180, 5
      %v1183 = vor.u32 %v1179, %v1182
      %v1184 = vrot.slane %v1183, 4
      %v1186 = vshll.u32 %v1037, 16
      %v1188 = vrot.slane %v1186, 5
      %v1189 = vsel %vm1079, %v1184, %v1188
      %v1190 = vshrl.u32 %v1037, 16
      %v1192 = vrot.slane %v1190, 4
      %v1193 = vor.u32 %v1192, %v1188
      %v1194 = vrot.slane %v1193, 4
      %v1196 = vshll.u32 %v1065, 16
      %v1198 = vrot.slane %v1196, 5
      %v1199 = vsel %vm1079, %v1194, %v1198
      %v1201 = vshrl.u32 %v1038, 16
      %v1203 = vrot.slane %v1201, 4
      %v1204 = vshll.u32 %v1038, 16
      %v1206 = vrot.slane %v1204, 5
      %v1207 = vor.u32 %v1203, %v1206
      %v1208 = vrot.slane %v1207, 4
      %v1210 = vshll.u32 %v1039, 16
      %v1212 = vrot.slane %v1210, 5
      %v1213 = vsel %vm1079, %v1208, %v1212
      %v1214 = vshrl.u32 %v1039, 16
      %v1216 = vrot.slane %v1214, 4
      %v1217 = vor.u32 %v1216, %v1212
      %v1218 = vrot.slane %v1217, 4
      %v1220 = vshll.u32 %v1066, 16
      %v1222 = vrot.slane %v1220, 5
      %v1223 = vsel %vm1079, %v1218, %v1222
      %v1225 = vshrl.u32 %v1040, 16
      %v1227 = vrot.slane %v1225, 4
      %v1228 = vshll.u32 %v1040, 16
      %v1230 = vrot.slane %v1228, 5
      %v1231 = vor.u32 %v1227, %v1230
      %v1232 = vrot.slane %v1231, 4
      %v1234 = vshll.u32 %v1041, 16
      %v1236 = vrot.slane %v1234, 5
      %v1237 = vsel %vm1079, %v1232, %v1236
      %v1238 = vshrl.u32 %v1041, 16
      %v1240 = vrot.slane %v1238, 4
      %v1241 = vor.u32 %v1240, %v1236
      %v1242 = vrot.slane %v1241, 4
      %v1244 = vshll.u32 %v1067, 16
      %v1246 = vrot.slane %v1244, 5
      %v1247 = vsel %vm1079, %v1242, %v1246
      %v1249 = vshrl.u32 %v1042, 16
      %v1251 = vrot.slane %v1249, 4
      %v1252 = vshll.u32 %v1042, 16
      %v1254 = vrot.slane %v1252, 5
      %v1255 = vor.u32 %v1251, %v1254
      %v1256 = vrot.slane %v1255, 4
      %v1258 = vshll.u32 %v1043, 16
      %v1260 = vrot.slane %v1258, 5
      %v1261 = vsel %vm1079, %v1256, %v1260
      %v1262 = vshrl.u32 %v1043, 16
      %v1264 = vrot.slane %v1262, 4
      %v1265 = vor.u32 %v1264, %v1260
      %v1266 = vrot.slane %v1265, 4
      %v1268 = vshll.u32 %v1068, 16
      %v1270 = vrot.slane %v1268, 5
      %v1271 = vsel %vm1079, %v1266, %v1270
      %v1273 = vshrl.u32 %v1044, 16
      %v1275 = vrot.slane %v1273, 4
      %v1276 = vshll.u32 %v1044, 16
      %v1278 = vrot.slane %v1276, 5
      %v1279 = vor.u32 %v1275, %v1278
      %v1280 = vrot.slane %v1279, 4
      %v1282 = vshll.u32 %v1045, 16
      %v1284 = vrot.slane %v1282, 5
      %v1285 = vsel %vm1079, %v1280, %v1284
      %v1286 = vshrl.u32 %v1045, 16
      %v1288 = vrot.slane %v1286, 4
      %v1289 = vor.u32 %v1288, %v1284
      %v1290 = vrot.slane %v1289, 4
      %v1292 = vshll.u32 %v1069, 16
      %v1294 = vrot.slane %v1292, 5
      %v1295 = vsel %vm1079, %v1290, %v1294
      %v1297 = vshrl.u32 %v1046, 16
      %v1299 = vrot.slane %v1297, 4
      %v1300 = vshll.u32 %v1046, 16
      %v1302 = vrot.slane %v1300, 5
      %v1303 = vor.u32 %v1299, %v1302
      %v1304 = vrot.slane %v1303, 4
      %v1306 = vshll.u32 %v1047, 16
      %v1308 = vrot.slane %v1306, 5
      %v1309 = vsel %vm1079, %v1304, %v1308
      %v1310 = vshrl.u32 %v1047, 16
      %v1312 = vrot.slane %v1310, 4
      %v1313 = vor.u32 %v1312, %v1308
      %v1314 = vrot.slane %v1313, 4
      %v1316 = vshll.u32 %v1070, 16
      %v1318 = vrot.slane %v1316, 5
      %v1319 = vsel %vm1079, %v1314, %v1318
      %v1321 = vshrl.u32 %v1048, 16
      %v1323 = vrot.slane %v1321, 4
      %v1324 = vshll.u32 %v1048, 16
      %v1326 = vrot.slane %v1324, 5
      %v1327 = vor.u32 %v1323, %v1326
      %v1328 = vrot.slane %v1327, 4
      %v1330 = vshll.u32 %v1049, 16
      %v1332 = vrot.slane %v1330, 5
      %v1333 = vsel %vm1079, %v1328, %v1332
      %v1334 = vshrl.u32 %v1049, 16
      %v1336 = vrot.slane %v1334, 4
      %v1337 = vor.u32 %v1336, %v1332
      %v1338 = vrot.slane %v1337, 4
      %v1340 = vshll.u32 %v1071, 16
      %v1342 = vrot.slane %v1340, 5
      %v1343 = vsel %vm1079, %v1338, %v1342
      %v1345 = vshrl.u32 %v1050, 16
      %v1347 = vrot.slane %v1345, 4
      %v1348 = vshll.u32 %v1050, 16
      %v1350 = vrot.slane %v1348, 5
      %v1351 = vor.u32 %v1347, %v1350
      %v1352 = vrot.slane %v1351, 4
      %v1354 = vshll.u32 %v1051, 16
      %v1356 = vrot.slane %v1354, 5
      %v1357 = vsel %vm1079, %v1352, %v1356
      %v1358 = vshrl.u32 %v1051, 16
      %v1360 = vrot.slane %v1358, 4
      %v1361 = vor.u32 %v1360, %v1356
      %v1362 = vrot.slane %v1361, 4
      %v1364 = vshll.u32 %v1072, 16
      %v1366 = vrot.slane %v1364, 5
      %v1367 = vsel %vm1079, %v1362, %v1366
      %v1369 = vshrl.u32 %v1052, 16
      %v1371 = vrot.slane %v1369, 4
      %v1372 = vshll.u32 %v1052, 16
      %v1374 = vrot.slane %v1372, 5
      %v1375 = vor.u32 %v1371, %v1374
      %v1376 = vrot.slane %v1375, 4
      %v1378 = vshll.u32 %v1053, 16
      %v1380 = vrot.slane %v1378, 5
      %v1381 = vsel %vm1079, %v1376, %v1380
      %v1382 = vshrl.u32 %v1053, 16
      %v1384 = vrot.slane %v1382, 4
      %v1385 = vor.u32 %v1384, %v1380
      %v1386 = vrot.slane %v1385, 4
      %v1388 = vshll.u32 %v1073, 16
      %v1390 = vrot.slane %v1388, 5
      %v1391 = vsel %vm1079, %v1386, %v1390
      %v1393 = vshrl.u32 %v1054, 16
      %v1395 = vrot.slane %v1393, 4
      %v1396 = vshll.u32 %v1054, 16
      %v1398 = vrot.slane %v1396, 5
      %v1399 = vor.u32 %v1395, %v1398
      %v1400 = vrot.slane %v1399, 4
      %v1402 = vshll.u32 %v1055, 16
      %v1404 = vrot.slane %v1402, 5
      %v1405 = vsel %vm1079, %v1400, %v1404
      %v1406 = vshrl.u32 %v1055, 16
      %v1408 = vrot.slane %v1406, 4
      %v1409 = vor.u32 %v1408, %v1404
      %v1410 = vrot.slane %v1409, 4
      %v1412 = vshll.u32 %v1074, 16
      %v1414 = vrot.slane %v1412, 5
      %v1415 = vsel %vm1079, %v1410, %v1414
      %v1417 = vshrl.u32 %v1056, 16
      %v1419 = vrot.slane %v1417, 4
      %v1420 = vshll.u32 %v1056, 16
      %v1422 = vrot.slane %v1420, 5
      %v1423 = vor.u32 %v1419, %v1422
      %v1424 = vrot.slane %v1423, 4
      %v1426 = vshll.u32 %v1057, 16
      %v1428 = vrot.slane %v1426, 5
      %v1429 = vsel %vm1079, %v1424, %v1428
      %v1430 = vshrl.u32 %v1057, 16
      %v1432 = vrot.slane %v1430, 4
      %v1433 = vor.u32 %v1432, %v1428
      %v1434 = vrot.slane %v1433, 4
      %v1436 = vshll.u32 %v1075, 16
      %v1438 = vrot.slane %v1436, 5
      %v1439 = vsel %vm1079, %v1434, %v1438
      %v1441 = vshrl.u32 %v1058, 16
      %v1443 = vrot.slane %v1441, 4
      %v1444 = vshll.u32 %v1058, 16
      %v1446 = vrot.slane %v1444, 5
      %v1447 = vor.u32 %v1443, %v1446
      %v1448 = vrot.slane %v1447, 4
      %v1450 = vshll.u32 %v1059, 16
      %v1452 = vrot.slane %v1450, 5
      %v1453 = vsel %vm1079, %v1448, %v1452
      %v1454 = vshrl.u32 %v1059, 16
      %v1456 = vrot.slane %v1454, 4
      %v1457 = vor.u32 %v1456, %v1452
      %v1458 = vrot.slane %v1457, 4
      %v1460 = vshll.u32 %v1076, 16
      %v1462 = vrot.slane %v1460, 5
      %v1463 = vsel %vm1079, %v1458, %v1462
      %s1464 = scalar_lea.vmem %s3, 4
      %v1465 = vld [vmem:[%s1464] sm:$0xf]
      %v1466 = vunpack.c.l.b16 %v1093
      %v1467 = vunpack.c.l.b16 %v1103
      %v1468 = vunpack.c.l.b16 %v1117
      %v1469 = vunpack.c.l.b16 %v1127
      %v1470 = vunpack.c.l.b16 %v1141
      %v1471 = vunpack.c.l.b16 %v1151
      %v1472 = vunpack.c.l.b16 %v1165
      %v1473 = vunpack.c.l.b16 %v1175
      %v1474 = vunpack.c.l.b16 %v1189
      %v1475 = vunpack.c.l.b16 %v1199
      %v1476 = vunpack.c.l.b16 %v1213
      %v1477 = vunpack.c.l.b16 %v1223
      %v1478 = vunpack.c.l.b16 %v1237
      %v1479 = vunpack.c.l.b16 %v1247
      %v1480 = vunpack.c.l.b16 %v1261
      %v1481 = vunpack.c.l.b16 %v1271
      %v1482 = vunpack.c.l.b16 %v1285
      %v1483 = vunpack.c.l.b16 %v1295
      %v1484 = vunpack.c.l.b16 %v1309
      %v1485 = vunpack.c.l.b16 %v1319
      %v1486 = vunpack.c.l.b16 %v1333
      %v1487 = vunpack.c.l.b16 %v1343
      %v1488 = vunpack.c.l.b16 %v1357
      %v1489 = vunpack.c.l.b16 %v1367
      %v1490 = vunpack.c.l.b16 %v1381
      %v1491 = vunpack.c.l.b16 %v1391
      %v1492 = vunpack.c.l.b16 %v1405
      %v1493 = vunpack.c.l.b16 %v1415
      %v1494 = vunpack.c.l.b16 %v1429
      %v1495 = vunpack.c.l.b16 %v1439
      %v1496 = vunpack.c.l.b16 %v1453
      %v1497 = vunpack.c.l.b16 %v1463
      %v1498 = vpack.c.b16 %v1467, %v1466
      %v1499 = vpack.c.b16 %v1469, %v1468
      %v1500 = vpack.c.b16 %v1471, %v1470
      %v1501 = vpack.c.b16 %v1473, %v1472
      %v1502 = vpack.c.b16 %v1475, %v1474
      %v1503 = vpack.c.b16 %v1477, %v1476
      %v1504 = vpack.c.b16 %v1479, %v1478
      %v1505 = vpack.c.b16 %v1481, %v1480
      %v1506 = vpack.c.b16 %v1483, %v1482
      %v1507 = vpack.c.b16 %v1485, %v1484
      %v1508 = vpack.c.b16 %v1487, %v1486
      %v1509 = vpack.c.b16 %v1489, %v1488
      %v1510 = vpack.c.b16 %v1491, %v1490
      %v1511 = vpack.c.b16 %v1493, %v1492
      %v1512 = vpack.c.b16 %v1495, %v1494
      %v1513 = vpack.c.b16 %v1497, %v1496
      %vm1514 = vcmask 64512
      %v1516 = vsel %vm1514, %v1498, 0
      %v1519 = vsel %vm1514, %v1499, 0
      %v1522 = vsel %vm1514, %v1500, 0
      %v1525 = vsel %vm1514, %v1501, 0
      %v1528 = vsel %vm1514, %v1502, 0
      %v1531 = vsel %vm1514, %v1503, 0
      %v1534 = vsel %vm1514, %v1504, 0
      %v1537 = vsel %vm1514, %v1505, 0
      %v1540 = vsel %vm1514, %v1506, 0
      %v1543 = vsel %vm1514, %v1507, 0
      %v1546 = vsel %vm1514, %v1508, 0
      %v1549 = vsel %vm1514, %v1509, 0
      %v1552 = vsel %vm1514, %v1510, 0
      %v1555 = vsel %vm1514, %v1511, 0
      %v1558 = vsel %vm1514, %v1512, 0
      %v1561 = vsel %vm1514, %v1513, 0
      %vm1563 = vcmask 1043456
      %v1565 = vsel %vm1563, %v1465, 0
      %1567 = vmatprep.subr.bf16.mxu0 0
      %1568 = vmatpush1.bf16.msra.mxu0 %v1565
      %1569 = vmatprep.subr.bf16.mxu0 0
      %1570 = vmatpush1.bf16.msra.mxu0 0
      %1571 = vmatprep.subr.bf16.mxu0 0
      %1572 = vmatpush1.bf16.msra.mxu0 0
      %1573 = vmatprep.subr.bf16.mxu0 0
      %1574 = vmatpush1.bf16.msra.mxu0 0
      %1575 = vmatprep.subr.bf16.mxu0 0
      %1576 = vmatpush1.bf16.msra.mxu0 0
      %1577 = vmatprep.subr.bf16.mxu0 0
      %1578 = vmatpush1.bf16.msra.mxu0 0
      %1579 = vmatprep.subr.bf16.mxu0 0
      %1580 = vmatpush1.bf16.msra.mxu0 0
      %1581 = vmatprep.subr.bf16.mxu0 0
      %1582 = vmatpush1.bf16.msra.mxu0 0
      %1583 = vmatprep.subr.bf16.mxu0 0
      %1584 = vmatpush1.bf16.msra.mxu0 0
      %1585 = vmatprep.subr.bf16.mxu0 0
      %1586 = vmatpush1.bf16.msra.mxu0 0
      %1587 = vmatprep.subr.bf16.mxu0 0
      %1588 = vmatpush1.bf16.msra.mxu0 0
      %1589 = vmatprep.subr.bf16.mxu0 0
      %1590 = vmatpush1.bf16.msra.mxu0 0
      %1591 = vmatprep.subr.bf16.mxu0 0
      %1592 = vmatpush1.bf16.msra.mxu0 0
      %1593 = vmatprep.subr.bf16.mxu0 0
      %1594 = vmatpush1.bf16.msra.mxu0 0
      %1595 = vmatprep.subr.bf16.mxu0 0
      %1596 = vmatpush1.bf16.msra.mxu0 0
      %1597 = vmatprep.subr.bf16.mxu0 0
      %1598 = vmatpush1.bf16.msra.mxu0 0
      %1599 = vmatprep.mubr.bf16.mxu0 0
      %1600 = vmatmul.mubr.bf16.gmra.mrb[0].mxu0 %v1516
      %v1601 = vpop.f32.mrb[0].mxu0
      %v1602 = vadd.f32 0.0, %v1601
      %v1603 = vpop.f32.mrb[0].mxu0
      %v1604 = vpop.f32.mrb[0].mxu0
      %v1605 = vadd.f32 0.0, %v1604
      %v1606 = vpop.f32.mrb[0].mxu0
      %1607 = vmatprep.mubr.bf16.mxu0 0
      %1608 = vmatmul.mubr.bf16.gmra.mrb[0].mxu0 %v1519
      %v1609 = vpop.f32.mrb[0].mxu0
      %v1610 = vadd.f32 0.0, %v1609
      %v1611 = vpop.f32.mrb[0].mxu0
      %v1612 = vpop.f32.mrb[0].mxu0
      %v1613 = vadd.f32 0.0, %v1612
      %v1614 = vpop.f32.mrb[0].mxu0
      %1615 = vmatprep.mubr.bf16.mxu0 0
      %1616 = vmatmul.mubr.bf16.gmra.mrb[0].mxu0 %v1522
      %v1617 = vpop.f32.mrb[0].mxu0
      %v1618 = vadd.f32 0.0, %v1617
      %v1619 = vpop.f32.mrb[0].mxu0
      %v1620 = vpop.f32.mrb[0].mxu0
      %v1621 = vadd.f32 0.0, %v1620
      %v1622 = vpop.f32.mrb[0].mxu0
      %1623 = vmatprep.mubr.bf16.mxu0 0
      %1624 = vmatmul.mubr.bf16.gmra.mrb[0].mxu0 %v1525
      %v1625 = vpop.f32.mrb[0].mxu0
      %v1626 = vadd.f32 0.0, %v1625
      %v1627 = vpop.f32.mrb[0].mxu0
      %v1628 = vpop.f32.mrb[0].mxu0
      %v1629 = vadd.f32 0.0, %v1628
      %v1630 = vpop.f32.mrb[0].mxu0
      %1631 = vmatprep.mubr.bf16.mxu0 0
      %1632 = vmatmul.mubr.bf16.gmra.mrb[0].mxu0 %v1528
      %v1633 = vpop.f32.mrb[0].mxu0
      %v1634 = vadd.f32 0.0, %v1633
      %v1635 = vpop.f32.mrb[0].mxu0
      %v1636 = vpop.f32.mrb[0].mxu0
      %v1637 = vadd.f32 0.0, %v1636
      %v1638 = vpop.f32.mrb[0].mxu0
      %1639 = vmatprep.mubr.bf16.mxu0 0
      %1640 = vmatmul.mubr.bf16.gmra.mrb[0].mxu0 %v1531
      %v1641 = vpop.f32.mrb[0].mxu0
      %v1642 = vadd.f32 0.0, %v1641
      %v1643 = vpop.f32.mrb[0].mxu0
      %v1644 = vpop.f32.mrb[0].mxu0
      %v1645 = vadd.f32 0.0, %v1644
      %v1646 = vpop.f32.mrb[0].mxu0
      %1647 = vmatprep.mubr.bf16.mxu0 0
      %1648 = vmatmul.mubr.bf16.gmra.mrb[0].mxu0 %v1534
      %v1649 = vpop.f32.mrb[0].mxu0
      %v1650 = vadd.f32 0.0, %v1649
      %v1651 = vpop.f32.mrb[0].mxu0
      %v1652 = vpop.f32.mrb[0].mxu0
      %v1653 = vadd.f32 0.0, %v1652
      %v1654 = vpop.f32.mrb[0].mxu0
      %1655 = vmatprep.mubr.bf16.mxu0 0
      %1656 = vmatmul.mubr.bf16.gmra.mrb[0].mxu0 %v1537
      %v1657 = vpop.f32.mrb[0].mxu0
      %v1658 = vadd.f32 0.0, %v1657
      %v1659 = vpop.f32.mrb[0].mxu0
      %v1660 = vpop.f32.mrb[0].mxu0
      %v1661 = vadd.f32 0.0, %v1660
      %v1662 = vpop.f32.mrb[0].mxu0
      %1663 = vmatprep.mubr.bf16.mxu0 0
      %1664 = vmatmul.mubr.bf16.gmra.mrb[0].mxu0 %v1540
      %v1665 = vpop.f32.mrb[0].mxu0
      %v1666 = vadd.f32 0.0, %v1665
      %v1667 = vpop.f32.mrb[0].mxu0
      %v1668 = vpop.f32.mrb[0].mxu0
      %v1669 = vadd.f32 0.0, %v1668
      %v1670 = vpop.f32.mrb[0].mxu0
      %1671 = vmatprep.mubr.bf16.mxu0 0
      %1672 = vmatmul.mubr.bf16.gmra.mrb[0].mxu0 %v1543
      %v1673 = vpop.f32.mrb[0].mxu0
      %v1674 = vadd.f32 0.0, %v1673
      %v1675 = vpop.f32.mrb[0].mxu0
      %v1676 = vpop.f32.mrb[0].mxu0
      %v1677 = vadd.f32 0.0, %v1676
      %v1678 = vpop.f32.mrb[0].mxu0
      %1679 = vmatprep.mubr.bf16.mxu0 0
      %1680 = vmatmul.mubr.bf16.gmra.mrb[0].mxu0 %v1546
      %v1681 = vpop.f32.mrb[0].mxu0
      %v1682 = vadd.f32 0.0, %v1681
      %v1683 = vpop.f32.mrb[0].mxu0
      %v1684 = vpop.f32.mrb[0].mxu0
      %v1685 = vadd.f32 0.0, %v1684
      %v1686 = vpop.f32.mrb[0].mxu0
      %1687 = vmatprep.mubr.bf16.mxu0 0
      %1688 = vmatmul.mubr.bf16.gmra.mrb[0].mxu0 %v1549
      %v1689 = vpop.f32.mrb[0].mxu0
      %v1690 = vadd.f32 0.0, %v1689
      %v1691 = vpop.f32.mrb[0].mxu0
      %v1692 = vpop.f32.mrb[0].mxu0
      %v1693 = vadd.f32 0.0, %v1692
      %v1694 = vpop.f32.mrb[0].mxu0
      %1695 = vmatprep.mubr.bf16.mxu0 0
      %1696 = vmatmul.mubr.bf16.gmra.mrb[0].mxu0 %v1552
      %v1697 = vpop.f32.mrb[0].mxu0
      %v1698 = vadd.f32 0.0, %v1697
      %v1699 = vpop.f32.mrb[0].mxu0
      %v1700 = vpop.f32.mrb[0].mxu0
      %v1701 = vadd.f32 0.0, %v1700
      %v1702 = vpop.f32.mrb[0].mxu0
      %1703 = vmatprep.mubr.bf16.mxu0 0
      %1704 = vmatmul.mubr.bf16.gmra.mrb[0].mxu0 %v1555
      %v1705 = vpop.f32.mrb[0].mxu0
      %v1706 = vadd.f32 0.0, %v1705
      %v1707 = vpop.f32.mrb[0].mxu0
      %v1708 = vpop.f32.mrb[0].mxu0
      %v1709 = vadd.f32 0.0, %v1708
      %v1710 = vpop.f32.mrb[0].mxu0
      %1711 = vmatprep.mubr.bf16.mxu0 0
      %1712 = vmatmul.mubr.bf16.gmra.mrb[0].mxu0 %v1558
      %v1713 = vpop.f32.mrb[0].mxu0
      %v1714 = vadd.f32 0.0, %v1713
      %v1715 = vpop.f32.mrb[0].mxu0
      %v1716 = vpop.f32.mrb[0].mxu0
      %v1717 = vadd.f32 0.0, %v1716
      %v1718 = vpop.f32.mrb[0].mxu0
      %1719 = vmatprep.mubr.bf16.mxu0 0
      %1720 = vmatmul.mubr.bf16.gmra.mrb[0].mxu0 %v1561
      %v1721 = vpop.f32.mrb[0].mxu0
      %v1722 = vadd.f32 0.0, %v1721
      %v1723 = vpop.f32.mrb[0].mxu0
      %v1724 = vpop.f32.mrb[0].mxu0
      %v1725 = vadd.f32 0.0, %v1724
      %v1726 = vpop.f32.mrb[0].mxu0
      %1727 = vdwg.mxu0
      %v1760 = vunpack.c.l.b16 %v1028
      %v1761 = vunpack.c.l.b16 %v1029
      %v1762 = vunpack.c.l.b16 %v1030
      %v1763 = vunpack.c.l.b16 %v1031
      %v1764 = vunpack.c.l.b16 %v1032
      %v1765 = vunpack.c.l.b16 %v1033
      %v1766 = vunpack.c.l.b16 %v1034
      %v1767 = vunpack.c.l.b16 %v1035
      %v1768 = vunpack.c.l.b16 %v1036
      %v1769 = vunpack.c.l.b16 %v1037
      %v1770 = vunpack.c.l.b16 %v1038
      %v1771 = vunpack.c.l.b16 %v1039
      %v1772 = vunpack.c.l.b16 %v1040
      %v1773 = vunpack.c.l.b16 %v1041
      %v1774 = vunpack.c.l.b16 %v1042
      %v1775 = vunpack.c.l.b16 %v1043
      %v1776 = vunpack.c.l.b16 %v1044
      %v1777 = vunpack.c.l.b16 %v1045
      %v1778 = vunpack.c.l.b16 %v1046
      %v1779 = vunpack.c.l.b16 %v1047
      %v1780 = vunpack.c.l.b16 %v1048
      %v1781 = vunpack.c.l.b16 %v1049
      %v1782 = vunpack.c.l.b16 %v1050
      %v1783 = vunpack.c.l.b16 %v1051
      %v1784 = vunpack.c.l.b16 %v1052
      %v1785 = vunpack.c.l.b16 %v1053
      %v1786 = vunpack.c.l.b16 %v1054
      %v1787 = vunpack.c.l.b16 %v1055
      %v1788 = vunpack.c.l.b16 %v1056
      %v1789 = vunpack.c.l.b16 %v1057
      %v1790 = vunpack.c.l.b16 %v1058
      %v1791 = vunpack.c.l.b16 %v1059
      %v1792 = vpack.c.b16 %v1761, %v1760
      %v1793 = vpack.c.b16 %v1763, %v1762
      %v1794 = vpack.c.b16 %v1765, %v1764
      %v1795 = vpack.c.b16 %v1767, %v1766
      %v1796 = vpack.c.b16 %v1769, %v1768
      %v1797 = vpack.c.b16 %v1771, %v1770
      %v1798 = vpack.c.b16 %v1773, %v1772
      %v1799 = vpack.c.b16 %v1775, %v1774
      %v1800 = vpack.c.b16 %v1777, %v1776
      %v1801 = vpack.c.b16 %v1779, %v1778
      %v1802 = vpack.c.b16 %v1781, %v1780
      %v1803 = vpack.c.b16 %v1783, %v1782
      %v1804 = vpack.c.b16 %v1785, %v1784
      %v1805 = vpack.c.b16 %v1787, %v1786
      %v1806 = vpack.c.b16 %v1789, %v1788
      %v1807 = vpack.c.b16 %v1791, %v1790
      %v1809 = vsel %vm1514, %v1792, 0
      %v1812 = vsel %vm1514, %v1793, 0
      %v1815 = vsel %vm1514, %v1794, 0
      %v1818 = vsel %vm1514, %v1795, 0
      %v1821 = vsel %vm1514, %v1796, 0
      %v1824 = vsel %vm1514, %v1797, 0
      %v1827 = vsel %vm1514, %v1798, 0
      %v1830 = vsel %vm1514, %v1799, 0
      %v1833 = vsel %vm1514, %v1800, 0
      %v1836 = vsel %vm1514, %v1801, 0
      %v1839 = vsel %vm1514, %v1802, 0
      %v1842 = vsel %vm1514, %v1803, 0
      %v1845 = vsel %vm1514, %v1804, 0
      %v1848 = vsel %vm1514, %v1805, 0
      %v1851 = vsel %vm1514, %v1806, 0
      %v1854 = vsel %vm1514, %v1807, 0
      %v1857 = vsel %vm1563, %v1060, 0
      %1859 = vmatprep.subr.bf16.mxu0 0
      %1860 = vmatpush1.bf16.msra.mxu0 %v1857
      %1861 = vmatprep.subr.bf16.mxu0 0
      %1862 = vmatpush1.bf16.msra.mxu0 0
      %1863 = vmatprep.subr.bf16.mxu0 0
      %1864 = vmatpush1.bf16.msra.mxu0 0
      %1865 = vmatprep.subr.bf16.mxu0 0
      %1866 = vmatpush1.bf16.msra.mxu0 0
      %1867 = vmatprep.subr.bf16.mxu0 0
      %1868 = vmatpush1.bf16.msra.mxu0 0
      %1869 = vmatprep.subr.bf16.mxu0 0
      %1870 = vmatpush1.bf16.msra.mxu0 0
      %1871 = vmatprep.subr.bf16.mxu0 0
      %1872 = vmatpush1.bf16.msra.mxu0 0
      %1873 = vmatprep.subr.bf16.mxu0 0
      %1874 = vmatpush1.bf16.msra.mxu0 0
      %1875 = vmatprep.subr.bf16.mxu0 0
      %1876 = vmatpush1.bf16.msra.mxu0 0
      %1877 = vmatprep.subr.bf16.mxu0 0
      %1878 = vmatpush1.bf16.msra.mxu0 0
      %1879 = vmatprep.subr.bf16.mxu0 0
      %1880 = vmatpush1.bf16.msra.mxu0 0
      %1881 = vmatprep.subr.bf16.mxu0 0
      %1882 = vmatpush1.bf16.msra.mxu0 0
      %1883 = vmatprep.subr.bf16.mxu0 0
      %1884 = vmatpush1.bf16.msra.mxu0 0
      %1885 = vmatprep.subr.bf16.mxu0 0
      %1886 = vmatpush1.bf16.msra.mxu0 0
      %1887 = vmatprep.subr.bf16.mxu0 0
      %1888 = vmatpush1.bf16.msra.mxu0 0
      %1889 = vmatprep.subr.bf16.mxu0 0
      %1890 = vmatpush1.bf16.msra.mxu0 0
      %1891 = vmatprep.mubr.bf16.mxu0 0
      %1892 = vmatmul.mubr.bf16.gmra.mrb[0].mxu0 %v1809
      %v1893 = vpop.f32.mrb[0].mxu0
      %v1894 = vadd.f32 %v1602, %v1893
      %v1895 = vpop.f32.mrb[0].mxu0
      %v1896 = vpop.f32.mrb[0].mxu0
      %v1897 = vadd.f32 %v1605, %v1896
      %v1898 = vpop.f32.mrb[0].mxu0
      %1899 = vmatprep.mubr.bf16.mxu0 0
      %1900 = vmatmul.mubr.bf16.gmra.mrb[0].mxu0 %v1812
      %v1901 = vpop.f32.mrb[0].mxu0
      %v1902 = vadd.f32 %v1610, %v1901
      %v1903 = vpop.f32.mrb[0].mxu0
      %v1904 = vpop.f32.mrb[0].mxu0
      %v1905 = vadd.f32 %v1613, %v1904
      %v1906 = vpop.f32.mrb[0].mxu0
      %1907 = vmatprep.mubr.bf16.mxu0 0
      %1908 = vmatmul.mubr.bf16.gmra.mrb[0].mxu0 %v1815
      %v1909 = vpop.f32.mrb[0].mxu0
      %v1910 = vadd.f32 %v1618, %v1909
      %v1911 = vpop.f32.mrb[0].mxu0
      %v1912 = vpop.f32.mrb[0].mxu0
      %v1913 = vadd.f32 %v1621, %v1912
      %v1914 = vpop.f32.mrb[0].mxu0
      %1915 = vmatprep.mubr.bf16.mxu0 0
      %1916 = vmatmul.mubr.bf16.gmra.mrb[0].mxu0 %v1818
      %v1917 = vpop.f32.mrb[0].mxu0
      %v1918 = vadd.f32 %v1626, %v1917
      %v1919 = vpop.f32.mrb[0].mxu0
      %v1920 = vpop.f32.mrb[0].mxu0
      %v1921 = vadd.f32 %v1629, %v1920
      %v1922 = vpop.f32.mrb[0].mxu0
      %1923 = vmatprep.mubr.bf16.mxu0 0
      %1924 = vmatmul.mubr.bf16.gmra.mrb[0].mxu0 %v1821
      %v1925 = vpop.f32.mrb[0].mxu0
      %v1926 = vadd.f32 %v1634, %v1925
      %v1927 = vpop.f32.mrb[0].mxu0
      %v1928 = vpop.f32.mrb[0].mxu0
      %v1929 = vadd.f32 %v1637, %v1928
      %v1930 = vpop.f32.mrb[0].mxu0
      %1931 = vmatprep.mubr.bf16.mxu0 0
      %1932 = vmatmul.mubr.bf16.gmra.mrb[0].mxu0 %v1824
      %v1933 = vpop.f32.mrb[0].mxu0
      %v1934 = vadd.f32 %v1642, %v1933
      %v1935 = vpop.f32.mrb[0].mxu0
      %v1936 = vpop.f32.mrb[0].mxu0
      %v1937 = vadd.f32 %v1645, %v1936
      %v1938 = vpop.f32.mrb[0].mxu0
      %1939 = vmatprep.mubr.bf16.mxu0 0
      %1940 = vmatmul.mubr.bf16.gmra.mrb[0].mxu0 %v1827
      %v1941 = vpop.f32.mrb[0].mxu0
      %v1942 = vadd.f32 %v1650, %v1941
      %v1943 = vpop.f32.mrb[0].mxu0
      %v1944 = vpop.f32.mrb[0].mxu0
      %v1945 = vadd.f32 %v1653, %v1944
      %v1946 = vpop.f32.mrb[0].mxu0
      %1947 = vmatprep.mubr.bf16.mxu0 0
      %1948 = vmatmul.mubr.bf16.gmra.mrb[0].mxu0 %v1830
      %v1949 = vpop.f32.mrb[0].mxu0
      %v1950 = vadd.f32 %v1658, %v1949
      %v1951 = vpop.f32.mrb[0].mxu0
      %v1952 = vpop.f32.mrb[0].mxu0
      %v1953 = vadd.f32 %v1661, %v1952
      %v1954 = vpop.f32.mrb[0].mxu0
      %1955 = vmatprep.mubr.bf16.mxu0 0
      %1956 = vmatmul.mubr.bf16.gmra.mrb[0].mxu0 %v1833
      %v1957 = vpop.f32.mrb[0].mxu0
      %v1958 = vadd.f32 %v1666, %v1957
      %v1959 = vpop.f32.mrb[0].mxu0
      %v1960 = vpop.f32.mrb[0].mxu0
      %v1961 = vadd.f32 %v1669, %v1960
      %v1962 = vpop.f32.mrb[0].mxu0
      %1963 = vmatprep.mubr.bf16.mxu0 0
      %1964 = vmatmul.mubr.bf16.gmra.mrb[0].mxu0 %v1836
      %v1965 = vpop.f32.mrb[0].mxu0
      %v1966 = vadd.f32 %v1674, %v1965
      %v1967 = vpop.f32.mrb[0].mxu0
      %v1968 = vpop.f32.mrb[0].mxu0
      %v1969 = vadd.f32 %v1677, %v1968
      %v1970 = vpop.f32.mrb[0].mxu0
      %1971 = vmatprep.mubr.bf16.mxu0 0
      %1972 = vmatmul.mubr.bf16.gmra.mrb[0].mxu0 %v1839
      %v1973 = vpop.f32.mrb[0].mxu0
      %v1974 = vadd.f32 %v1682, %v1973
      %v1975 = vpop.f32.mrb[0].mxu0
      %v1976 = vpop.f32.mrb[0].mxu0
      %v1977 = vadd.f32 %v1685, %v1976
      %v1978 = vpop.f32.mrb[0].mxu0
      %1979 = vmatprep.mubr.bf16.mxu0 0
      %1980 = vmatmul.mubr.bf16.gmra.mrb[0].mxu0 %v1842
      %v1981 = vpop.f32.mrb[0].mxu0
      %v1982 = vadd.f32 %v1690, %v1981
      %v1983 = vpop.f32.mrb[0].mxu0
      %v1984 = vpop.f32.mrb[0].mxu0
      %v1985 = vadd.f32 %v1693, %v1984
      %v1986 = vpop.f32.mrb[0].mxu0
      %1987 = vmatprep.mubr.bf16.mxu0 0
      %1988 = vmatmul.mubr.bf16.gmra.mrb[0].mxu0 %v1845
      %v1989 = vpop.f32.mrb[0].mxu0
      %v1990 = vadd.f32 %v1698, %v1989
      %v1991 = vpop.f32.mrb[0].mxu0
      %v1992 = vpop.f32.mrb[0].mxu0
      %v1993 = vadd.f32 %v1701, %v1992
      %v1994 = vpop.f32.mrb[0].mxu0
      %1995 = vmatprep.mubr.bf16.mxu0 0
      %1996 = vmatmul.mubr.bf16.gmra.mrb[0].mxu0 %v1848
      %v1997 = vpop.f32.mrb[0].mxu0
      %v1998 = vadd.f32 %v1706, %v1997
      %v1999 = vpop.f32.mrb[0].mxu0
      %v2000 = vpop.f32.mrb[0].mxu0
      %v2001 = vadd.f32 %v1709, %v2000
      %v2002 = vpop.f32.mrb[0].mxu0
      %2003 = vmatprep.mubr.bf16.mxu0 0
      %2004 = vmatmul.mubr.bf16.gmra.mrb[0].mxu0 %v1851
      %v2005 = vpop.f32.mrb[0].mxu0
      %v2006 = vadd.f32 %v1714, %v2005
      %v2007 = vpop.f32.mrb[0].mxu0
      %v2008 = vpop.f32.mrb[0].mxu0
      %v2009 = vadd.f32 %v1717, %v2008
      %v2010 = vpop.f32.mrb[0].mxu0
      %2011 = vmatprep.mubr.bf16.mxu0 0
      %2012 = vmatmul.mubr.bf16.gmra.mrb[0].mxu0 %v1854
      %v2013 = vpop.f32.mrb[0].mxu0
      %v2014 = vadd.f32 %v1722, %v2013
      %v2015 = vpop.f32.mrb[0].mxu0
      %v2016 = vpop.f32.mrb[0].mxu0
      %v2017 = vadd.f32 %v1725, %v2016
      %v2018 = vpop.f32.mrb[0].mxu0
      %2019 = vdwg.mxu0
      %v2020 = vld [vmem:[#allocation2] sm:$0xe]
      %v2021 = vld [vmem:[#allocation2 + $0xc] sm:$0xe]
      %v2022 = vld [vmem:[#allocation2 + $0x18] sm:$0xe]
      %v2023 = vld [vmem:[#allocation2 + $0x24] sm:$0xe]
      %v2024 = vld [vmem:[#allocation2 + $0x30] sm:$0xe]
      %v2025 = vld [vmem:[#allocation2 + $0x3c] sm:$0xe]
      %v2026 = vld [vmem:[#allocation2 + $0x48] sm:$0xe]
      %v2027 = vld [vmem:[#allocation2 + $0x54] sm:$0xe]
      %v2028 = vld [vmem:[#allocation2 + $0x60] sm:$0xe]
      %v2029 = vld [vmem:[#allocation2 + $0x6c] sm:$0xe]
      %v2030 = vld [vmem:[#allocation2 + $0x78] sm:$0xe]
      %v2031 = vld [vmem:[#allocation2 + $0x84] sm:$0xe]
      %v2032 = vld [vmem:[#allocation2 + $0x90] sm:$0xe]
      %v2033 = vld [vmem:[#allocation2 + $0x9c] sm:$0xe]
      %v2034 = vld [vmem:[#allocation2 + $0xa8] sm:$0xe]
      %v2035 = vld [vmem:[#allocation2 + $0xb4] sm:$0xe]
      %vm2068 = vcmask 1042432
      %vm2069 = vcmask 1046532
      %vm2070 = vmor %vm2068, %vm2069
      %v2071 = vrot.slane %v2020, 5
      %v2072 = vrot.slane %v2071, 4
      %v2073 = vrot.slane %v1029, 5
      %v2074 = vsel %vm2070, %v2072, %v2073
      %v2075 = vrot.slane %v2073, 4
      %v2076 = vrot.slane %v1061, 5
      %v2077 = vsel %vm2070, %v2075, %v2076
      %v2078 = vrot.slane %v2021, 5
      %v2079 = vrot.slane %v2078, 4
      %v2080 = vrot.slane %v1031, 5
      %v2081 = vsel %vm2070, %v2079, %v2080
      %v2082 = vrot.slane %v2080, 4
      %v2083 = vrot.slane %v1062, 5
      %v2084 = vsel %vm2070, %v2082, %v2083
      %v2085 = vrot.slane %v2022, 5
      %v2086 = vrot.slane %v2085, 4
      %v2087 = vrot.slane %v1033, 5
      %v2088 = vsel %vm2070, %v2086, %v2087
      %v2089 = vrot.slane %v2087, 4
      %v2090 = vrot.slane %v1063, 5
      %v2091 = vsel %vm2070, %v2089, %v2090
      %v2092 = vrot.slane %v2023, 5
      %v2093 = vrot.slane %v2092, 4
      %v2094 = vrot.slane %v1035, 5
      %v2095 = vsel %vm2070, %v2093, %v2094
      %v2096 = vrot.slane %v2094, 4
      %v2097 = vrot.slane %v1064, 5
      %v2098 = vsel %vm2070, %v2096, %v2097
      %v2099 = vrot.slane %v2024, 5
      %v2100 = vrot.slane %v2099, 4
      %v2101 = vrot.slane %v1037, 5
      %v2102 = vsel %vm2070, %v2100, %v2101
      %v2103 = vrot.slane %v2101, 4
      %v2104 = vrot.slane %v1065, 5
      %v2105 = vsel %vm2070, %v2103, %v2104
      %v2106 = vrot.slane %v2025, 5
      %v2107 = vrot.slane %v2106, 4
      %v2108 = vrot.slane %v1039, 5
      %v2109 = vsel %vm2070, %v2107, %v2108
      %v2110 = vrot.slane %v2108, 4
      %v2111 = vrot.slane %v1066, 5
      %v2112 = vsel %vm2070, %v2110, %v2111
      %v2113 = vrot.slane %v2026, 5
      %v2114 = vrot.slane %v2113, 4
      %v2115 = vrot.slane %v1041, 5
      %v2116 = vsel %vm2070, %v2114, %v2115
      %v2117 = vrot.slane %v2115, 4
      %v2118 = vrot.slane %v1067, 5
      %v2119 = vsel %vm2070, %v2117, %v2118
      %v2120 = vrot.slane %v2027, 5
      %v2121 = vrot.slane %v2120, 4
      %v2122 = vrot.slane %v1043, 5
      %v2123 = vsel %vm2070, %v2121, %v2122
      %v2124 = vrot.slane %v2122, 4
      %v2125 = vrot.slane %v1068, 5
      %v2126 = vsel %vm2070, %v2124, %v2125
      %v2127 = vrot.slane %v2028, 5
      %v2128 = vrot.slane %v2127, 4
      %v2129 = vrot.slane %v1045, 5
      %v2130 = vsel %vm2070, %v2128, %v2129
      %v2131 = vrot.slane %v2129, 4
      %v2132 = vrot.slane %v1069, 5
      %v2133 = vsel %vm2070, %v2131, %v2132
      %v2134 = vrot.slane %v2029, 5
      %v2135 = vrot.slane %v2134, 4
      %v2136 = vrot.slane %v1047, 5
      %v2137 = vsel %vm2070, %v2135, %v2136
      %v2138 = vrot.slane %v2136, 4
      %v2139 = vrot.slane %v1070, 5
      %v2140 = vsel %vm2070, %v2138, %v2139
      %v2141 = vrot.slane %v2030, 5
      %v2142 = vrot.slane %v2141, 4
      %v2143 = vrot.slane %v1049, 5
      %v2144 = vsel %vm2070, %v2142, %v2143
      %v2145 = vrot.slane %v2143, 4
      %v2146 = vrot.slane %v1071, 5
      %v2147 = vsel %vm2070, %v2145, %v2146
      %v2148 = vrot.slane %v2031, 5
      %v2149 = vrot.slane %v2148, 4
      %v2150 = vrot.slane %v1051, 5
      %v2151 = vsel %vm2070, %v2149, %v2150
      %v2152 = vrot.slane %v2150, 4
      %v2153 = vrot.slane %v1072, 5
      %v2154 = vsel %vm2070, %v2152, %v2153
      %v2155 = vrot.slane %v2032, 5
      %v2156 = vrot.slane %v2155, 4
      %v2157 = vrot.slane %v1053, 5
      %v2158 = vsel %vm2070, %v2156, %v2157
      %v2159 = vrot.slane %v2157, 4
      %v2160 = vrot.slane %v1073, 5
      %v2161 = vsel %vm2070, %v2159, %v2160
      %v2162 = vrot.slane %v2033, 5
      %v2163 = vrot.slane %v2162, 4
      %v2164 = vrot.slane %v1055, 5
      %v2165 = vsel %vm2070, %v2163, %v2164
      %v2166 = vrot.slane %v2164, 4
      %v2167 = vrot.slane %v1074, 5
      %v2168 = vsel %vm2070, %v2166, %v2167
      %v2169 = vrot.slane %v2034, 5
      %v2170 = vrot.slane %v2169, 4
      %v2171 = vrot.slane %v1057, 5
      %v2172 = vsel %vm2070, %v2170, %v2171
      %v2173 = vrot.slane %v2171, 4
      %v2174 = vrot.slane %v1075, 5
      %v2175 = vsel %vm2070, %v2173, %v2174
      %v2176 = vrot.slane %v2035, 5
      %v2177 = vrot.slane %v2176, 4
      %v2178 = vrot.slane %v1059, 5
      %v2179 = vsel %vm2070, %v2177, %v2178
      %v2180 = vrot.slane %v2178, 4
      %v2181 = vrot.slane %v1076, 5
      %v2182 = vsel %vm2070, %v2180, %v2181
      %s2183 = scalar_lea.vmem %s3, 8
      %v2184 = vld [vmem:[%s2183] sm:$0xf]
      %v2185 = vunpack.c.l.b16 %v2074
      %v2186 = vunpack.c.l.b16 %v2077
      %v2187 = vunpack.c.l.b16 %v2081
      %v2188 = vunpack.c.l.b16 %v2084
      %v2189 = vunpack.c.l.b16 %v2088
      %v2190 = vunpack.c.l.b16 %v2091
      %v2191 = vunpack.c.l.b16 %v2095
      %v2192 = vunpack.c.l.b16 %v2098
      %v2193 = vunpack.c.l.b16 %v2102
      %v2194 = vunpack.c.l.b16 %v2105
      %v2195 = vunpack.c.l.b16 %v2109
      %v2196 = vunpack.c.l.b16 %v2112
      %v2197 = vunpack.c.l.b16 %v2116
      %v2198 = vunpack.c.l.b16 %v2119
      %v2199 = vunpack.c.l.b16 %v2123
      %v2200 = vunpack.c.l.b16 %v2126
      %v2201 = vunpack.c.l.b16 %v2130
      %v2202 = vunpack.c.l.b16 %v2133
      %v2203 = vunpack.c.l.b16 %v2137
      %v2204 = vunpack.c.l.b16 %v2140
      %v2205 = vunpack.c.l.b16 %v2144
      %v2206 = vunpack.c.l.b16 %v2147
      %v2207 = vunpack.c.l.b16 %v2151
      %v2208 = vunpack.c.l.b16 %v2154
      %v2209 = vunpack.c.l.b16 %v2158
      %v2210 = vunpack.c.l.b16 %v2161
      %v2211 = vunpack.c.l.b16 %v2165
      %v2212 = vunpack.c.l.b16 %v2168
      %v2213 = vunpack.c.l.b16 %v2172
      %v2214 = vunpack.c.l.b16 %v2175
      %v2215 = vunpack.c.l.b16 %v2179
      %v2216 = vunpack.c.l.b16 %v2182
      %v2217 = vpack.c.b16 %v2186, %v2185
      %v2218 = vpack.c.b16 %v2188, %v2187
      %v2219 = vpack.c.b16 %v2190, %v2189
      %v2220 = vpack.c.b16 %v2192, %v2191
      %v2221 = vpack.c.b16 %v2194, %v2193
      %v2222 = vpack.c.b16 %v2196, %v2195
      %v2223 = vpack.c.b16 %v2198, %v2197
      %v2224 = vpack.c.b16 %v2200, %v2199
      %v2225 = vpack.c.b16 %v2202, %v2201
      %v2226 = vpack.c.b16 %v2204, %v2203
      %v2227 = vpack.c.b16 %v2206, %v2205
      %v2228 = vpack.c.b16 %v2208, %v2207
      %v2229 = vpack.c.b16 %v2210, %v2209
      %v2230 = vpack.c.b16 %v2212, %v2211
      %v2231 = vpack.c.b16 %v2214, %v2213
      %v2232 = vpack.c.b16 %v2216, %v2215
      %v2234 = vsel %vm1514, %v2217, 0
      %v2237 = vsel %vm1514, %v2218, 0
      %v2240 = vsel %vm1514, %v2219, 0
      %v2243 = vsel %vm1514, %v2220, 0
      %v2246 = vsel %vm1514, %v2221, 0
      %v2249 = vsel %vm1514, %v2222, 0
      %v2252 = vsel %vm1514, %v2223, 0
      %v2255 = vsel %vm1514, %v2224, 0
      %v2258 = vsel %vm1514, %v2225, 0
      %v2261 = vsel %vm1514, %v2226, 0
      %v2264 = vsel %vm1514, %v2227, 0
      %v2267 = vsel %vm1514, %v2228, 0
      %v2270 = vsel %vm1514, %v2229, 0
      %v2273 = vsel %vm1514, %v2230, 0
      %v2276 = vsel %vm1514, %v2231, 0
      %v2279 = vsel %vm1514, %v2232, 0
      %v2282 = vsel %vm1563, %v2184, 0
      %2284 = vmatprep.subr.bf16.mxu0 0
      %2285 = vmatpush1.bf16.msra.mxu0 %v2282
      %2286 = vmatprep.subr.bf16.mxu0 0
      %2287 = vmatpush1.bf16.msra.mxu0 0
      %2288 = vmatprep.subr.bf16.mxu0 0
      %2289 = vmatpush1.bf16.msra.mxu0 0
      %2290 = vmatprep.subr.bf16.mxu0 0
      %2291 = vmatpush1.bf16.msra.mxu0 0
      %2292 = vmatprep.subr.bf16.mxu0 0
      %2293 = vmatpush1.bf16.msra.mxu0 0
      %2294 = vmatprep.subr.bf16.mxu0 0
      %2295 = vmatpush1.bf16.msra.mxu0 0
      %2296 = vmatprep.subr.bf16.mxu0 0
      %2297 = vmatpush1.bf16.msra.mxu0 0
      %2298 = vmatprep.subr.bf16.mxu0 0
      %2299 = vmatpush1.bf16.msra.mxu0 0
      %2300 = vmatprep.subr.bf16.mxu0 0
      %2301 = vmatpush1.bf16.msra.mxu0 0
      %2302 = vmatprep.subr.bf16.mxu0 0
      %2303 = vmatpush1.bf16.msra.mxu0 0
      %2304 = vmatprep.subr.bf16.mxu0 0
      %2305 = vmatpush1.bf16.msra.mxu0 0
      %2306 = vmatprep.subr.bf16.mxu0 0
      %2307 = vmatpush1.bf16.msra.mxu0 0
      %2308 = vmatprep.subr.bf16.mxu0 0
      %2309 = vmatpush1.bf16.msra.mxu0 0
      %2310 = vmatprep.subr.bf16.mxu0 0
      %2311 = vmatpush1.bf16.msra.mxu0 0
      %2312 = vmatprep.subr.bf16.mxu0 0
      %2313 = vmatpush1.bf16.msra.mxu0 0
      %2314 = vmatprep.subr.bf16.mxu0 0
      %2315 = vmatpush1.bf16.msra.mxu0 0
      %2316 = vmatprep.mubr.bf16.mxu0 0
      %2317 = vmatmul.mubr.bf16.gmra.mrb[0].mxu0 %v2234
      %v2318 = vpop.f32.mrb[0].mxu0
      %v2319 = vadd.f32 0.0, %v2318
      %v2320 = vpop.f32.mrb[0].mxu0
      %v2321 = vpop.f32.mrb[0].mxu0
      %v2322 = vadd.f32 0.0, %v2321
      %v2323 = vpop.f32.mrb[0].mxu0
      %2324 = vmatprep.mubr.bf16.mxu0 0
      %2325 = vmatmul.mubr.bf16.gmra.mrb[0].mxu0 %v2237
      %v2326 = vpop.f32.mrb[0].mxu0
      %v2327 = vadd.f32 0.0, %v2326
      %v2328 = vpop.f32.mrb[0].mxu0
      %v2329 = vpop.f32.mrb[0].mxu0
      %v2330 = vadd.f32 0.0, %v2329
      %v2331 = vpop.f32.mrb[0].mxu0
      %2332 = vmatprep.mubr.bf16.mxu0 0
      %2333 = vmatmul.mubr.bf16.gmra.mrb[0].mxu0 %v2240
      %v2334 = vpop.f32.mrb[0].mxu0
      %v2335 = vadd.f32 0.0, %v2334
      %v2336 = vpop.f32.mrb[0].mxu0
      %v2337 = vpop.f32.mrb[0].mxu0
      %v2338 = vadd.f32 0.0, %v2337
      %v2339 = vpop.f32.mrb[0].mxu0
      %2340 = vmatprep.mubr.bf16.mxu0 0
      %2341 = vmatmul.mubr.bf16.gmra.mrb[0].mxu0 %v2243
      %v2342 = vpop.f32.mrb[0].mxu0
      %v2343 = vadd.f32 0.0, %v2342
      %v2344 = vpop.f32.mrb[0].mxu0
      %v2345 = vpop.f32.mrb[0].mxu0
      %v2346 = vadd.f32 0.0, %v2345
      %v2347 = vpop.f32.mrb[0].mxu0
      %2348 = vmatprep.mubr.bf16.mxu0 0
      %2349 = vmatmul.mubr.bf16.gmra.mrb[0].mxu0 %v2246
      %v2350 = vpop.f32.mrb[0].mxu0
      %v2351 = vadd.f32 0.0, %v2350
      %v2352 = vpop.f32.mrb[0].mxu0
      %v2353 = vpop.f32.mrb[0].mxu0
      %v2354 = vadd.f32 0.0, %v2353
      %v2355 = vpop.f32.mrb[0].mxu0
      %2356 = vmatprep.mubr.bf16.mxu0 0
      %2357 = vmatmul.mubr.bf16.gmra.mrb[0].mxu0 %v2249
      %v2358 = vpop.f32.mrb[0].mxu0
      %v2359 = vadd.f32 0.0, %v2358
      %v2360 = vpop.f32.mrb[0].mxu0
      %v2361 = vpop.f32.mrb[0].mxu0
      %v2362 = vadd.f32 0.0, %v2361
      %v2363 = vpop.f32.mrb[0].mxu0
      %2364 = vmatprep.mubr.bf16.mxu0 0
      %2365 = vmatmul.mubr.bf16.gmra.mrb[0].mxu0 %v2252
      %v2366 = vpop.f32.mrb[0].mxu0
      %v2367 = vadd.f32 0.0, %v2366
      %v2368 = vpop.f32.mrb[0].mxu0
      %v2369 = vpop.f32.mrb[0].mxu0
      %v2370 = vadd.f32 0.0, %v2369
      %v2371 = vpop.f32.mrb[0].mxu0
      %2372 = vmatprep.mubr.bf16.mxu0 0
      %2373 = vmatmul.mubr.bf16.gmra.mrb[0].mxu0 %v2255
      %v2374 = vpop.f32.mrb[0].mxu0
      %v2375 = vadd.f32 0.0, %v2374
      %v2376 = vpop.f32.mrb[0].mxu0
      %v2377 = vpop.f32.mrb[0].mxu0
      %v2378 = vadd.f32 0.0, %v2377
      %v2379 = vpop.f32.mrb[0].mxu0
      %2380 = vmatprep.mubr.bf16.mxu0 0
      %2381 = vmatmul.mubr.bf16.gmra.mrb[0].mxu0 %v2258
      %v2382 = vpop.f32.mrb[0].mxu0
      %v2383 = vadd.f32 0.0, %v2382
      %v2384 = vpop.f32.mrb[0].mxu0
      %v2385 = vpop.f32.mrb[0].mxu0
      %v2386 = vadd.f32 0.0, %v2385
      %v2387 = vpop.f32.mrb[0].mxu0
      %2388 = vmatprep.mubr.bf16.mxu0 0
      %2389 = vmatmul.mubr.bf16.gmra.mrb[0].mxu0 %v2261
      %v2390 = vpop.f32.mrb[0].mxu0
      %v2391 = vadd.f32 0.0, %v2390
      %v2392 = vpop.f32.mrb[0].mxu0
      %v2393 = vpop.f32.mrb[0].mxu0
      %v2394 = vadd.f32 0.0, %v2393
      %v2395 = vpop.f32.mrb[0].mxu0
      %2396 = vmatprep.mubr.bf16.mxu0 0
      %2397 = vmatmul.mubr.bf16.gmra.mrb[0].mxu0 %v2264
      %v2398 = vpop.f32.mrb[0].mxu0
      %v2399 = vadd.f32 0.0, %v2398
      %v2400 = vpop.f32.mrb[0].mxu0
      %v2401 = vpop.f32.mrb[0].mxu0
      %v2402 = vadd.f32 0.0, %v2401
      %v2403 = vpop.f32.mrb[0].mxu0
      %2404 = vmatprep.mubr.bf16.mxu0 0
      %2405 = vmatmul.mubr.bf16.gmra.mrb[0].mxu0 %v2267
      %v2406 = vpop.f32.mrb[0].mxu0
      %v2407 = vadd.f32 0.0, %v2406
      %v2408 = vpop.f32.mrb[0].mxu0
      %v2409 = vpop.f32.mrb[0].mxu0
      %v2410 = vadd.f32 0.0, %v2409
      %v2411 = vpop.f32.mrb[0].mxu0
      %2412 = vmatprep.mubr.bf16.mxu0 0
      %2413 = vmatmul.mubr.bf16.gmra.mrb[0].mxu0 %v2270
      %v2414 = vpop.f32.mrb[0].mxu0
      %v2415 = vadd.f32 0.0, %v2414
      %v2416 = vpop.f32.mrb[0].mxu0
      %v2417 = vpop.f32.mrb[0].mxu0
      %v2418 = vadd.f32 0.0, %v2417
      %v2419 = vpop.f32.mrb[0].mxu0
      %2420 = vmatprep.mubr.bf16.mxu0 0
      %2421 = vmatmul.mubr.bf16.gmra.mrb[0].mxu0 %v2273
      %v2422 = vpop.f32.mrb[0].mxu0
      %v2423 = vadd.f32 0.0, %v2422
      %v2424 = vpop.f32.mrb[0].mxu0
      %v2425 = vpop.f32.mrb[0].mxu0
      %v2426 = vadd.f32 0.0, %v2425
      %v2427 = vpop.f32.mrb[0].mxu0
      %2428 = vmatprep.mubr.bf16.mxu0 0
      %2429 = vmatmul.mubr.bf16.gmra.mrb[0].mxu0 %v2276
      %v2430 = vpop.f32.mrb[0].mxu0
      %v2431 = vadd.f32 0.0, %v2430
      %v2432 = vpop.f32.mrb[0].mxu0
      %v2433 = vpop.f32.mrb[0].mxu0
      %v2434 = vadd.f32 0.0, %v2433
      %v2435 = vpop.f32.mrb[0].mxu0
      %2436 = vmatprep.mubr.bf16.mxu0 0
      %2437 = vmatmul.mubr.bf16.gmra.mrb[0].mxu0 %v2279
      %v2438 = vpop.f32.mrb[0].mxu0
      %v2439 = vadd.f32 0.0, %v2438
      %v2440 = vpop.f32.mrb[0].mxu0
      %v2441 = vpop.f32.mrb[0].mxu0
      %v2442 = vadd.f32 0.0, %v2441
      %v2443 = vpop.f32.mrb[0].mxu0
      %2444 = vdwg.mxu0
      %v2445 = vadd.f32 %v1894, %v2319
      %v2446 = vadd.f32 %v1897, %v2322
      %v2447 = vadd.f32 %v1902, %v2327
      %v2448 = vadd.f32 %v1905, %v2330
      %v2449 = vadd.f32 %v1910, %v2335
      %v2450 = vadd.f32 %v1913, %v2338
      %v2451 = vadd.f32 %v1918, %v2343
      %v2452 = vadd.f32 %v1921, %v2346
      %v2453 = vadd.f32 %v1926, %v2351
      %v2454 = vadd.f32 %v1929, %v2354
      %v2455 = vadd.f32 %v1934, %v2359
      %v2456 = vadd.f32 %v1937, %v2362
      %v2457 = vadd.f32 %v1942, %v2367
      %v2458 = vadd.f32 %v1945, %v2370
      %v2459 = vadd.f32 %v1950, %v2375
      %v2460 = vadd.f32 %v1953, %v2378
      %v2461 = vadd.f32 %v1958, %v2383
      %v2462 = vadd.f32 %v1961, %v2386
      %v2463 = vadd.f32 %v1966, %v2391
      %v2464 = vadd.f32 %v1969, %v2394
      %v2465 = vadd.f32 %v1974, %v2399
      %v2466 = vadd.f32 %v1977, %v2402
      %v2467 = vadd.f32 %v1982, %v2407
      %v2468 = vadd.f32 %v1985, %v2410
      %v2469 = vadd.f32 %v1990, %v2415
      %v2470 = vadd.f32 %v1993, %v2418
      %v2471 = vadd.f32 %v1998, %v2423
      %v2472 = vadd.f32 %v2001, %v2426
      %v2473 = vadd.f32 %v2006, %v2431
      %v2474 = vadd.f32 %v2009, %v2434
      %v2475 = vadd.f32 %v2014, %v2439
      %v2476 = vadd.f32 %v2017, %v2442
      %v2477 = vld [vmem:[%s913] sm:$0xf]
      %v2478 = vld [vmem:[%s913 + $0x4] sm:$0xf]
      %v2479 = vld [vmem:[%s913 + $0xc] sm:$0xf]
      %v2480 = vld [vmem:[%s913 + $0x10] sm:$0xf]
      %v2481 = vld [vmem:[%s913 + $0x18] sm:$0xf]
      %v2482 = vld [vmem:[%s913 + $0x1c] sm:$0xf]
      %v2483 = vld [vmem:[%s913 + $0x24] sm:$0xf]
      %v2484 = vld [vmem:[%s913 + $0x28] sm:$0xf]
      %v2485 = vld [vmem:[%s913 + $0x30] sm:$0xf]
      %v2486 = vld [vmem:[%s913 + $0x34] sm:$0xf]
      %v2487 = vld [vmem:[%s913 + $0x3c] sm:$0xf]
      %v2488 = vld [vmem:[%s913 + $0x40] sm:$0xf]
      %v2489 = vld [vmem:[%s913 + $0x48] sm:$0xf]
      %v2490 = vld [vmem:[%s913 + $0x4c] sm:$0xf]
      %v2491 = vld [vmem:[%s913 + $0x54] sm:$0xf]
      %v2492 = vld [vmem:[%s913 + $0x58] sm:$0xf]
      %v2493 = vld [vmem:[%s913 + $0x60] sm:$0xf]
      %v2494 = vld [vmem:[%s913 + $0x64] sm:$0xf]
      %v2495 = vld [vmem:[%s913 + $0x6c] sm:$0xf]
      %v2496 = vld [vmem:[%s913 + $0x70] sm:$0xf]
      %v2497 = vld [vmem:[%s913 + $0x78] sm:$0xf]
      %v2498 = vld [vmem:[%s913 + $0x7c] sm:$0xf]
      %v2499 = vld [vmem:[%s913 + $0x84] sm:$0xf]
      %v2500 = vld [vmem:[%s913 + $0x88] sm:$0xf]
      %v2501 = vld [vmem:[%s913 + $0x90] sm:$0xf]
      %v2502 = vld [vmem:[%s913 + $0x94] sm:$0xf]
      %v2503 = vld [vmem:[%s913 + $0x9c] sm:$0xf]
      %v2504 = vld [vmem:[%s913 + $0xa0] sm:$0xf]
      %v2505 = vld [vmem:[%s913 + $0xa8] sm:$0xf]
      %v2506 = vld [vmem:[%s913 + $0xac] sm:$0xf]
      %v2507 = vld [vmem:[%s913 + $0xb4] sm:$0xf]
      %v2508 = vld [vmem:[%s913 + $0xb8] sm:$0xf]
      %s2509 = scalar_lea.vmem %s3, 12
      %v2510 = vld [vmem:[%s2509] sm:$0xf]
      %v2543 = vunpack.c.l.b16 %v2477
      %v2544 = vunpack.c.l.b16 %v2478
      %v2545 = vunpack.c.l.b16 %v2479
      %v2546 = vunpack.c.l.b16 %v2480
      %v2547 = vunpack.c.l.b16 %v2481
      %v2548 = vunpack.c.l.b16 %v2482
      %v2549 = vunpack.c.l.b16 %v2483
      %v2550 = vunpack.c.l.b16 %v2484
      %v2551 = vunpack.c.l.b16 %v2485
      %v2552 = vunpack.c.l.b16 %v2486
      %v2553 = vunpack.c.l.b16 %v2487
      %v2554 = vunpack.c.l.b16 %v2488
      %v2555 = vunpack.c.l.b16 %v2489
      %v2556 = vunpack.c.l.b16 %v2490
      %v2557 = vunpack.c.l.b16 %v2491
      %v2558 = vunpack.c.l.b16 %v2492
      %v2559 = vunpack.c.l.b16 %v2493
      %v2560 = vunpack.c.l.b16 %v2494
      %v2561 = vunpack.c.l.b16 %v2495
      %v2562 = vunpack.c.l.b16 %v2496
      %v2563 = vunpack.c.l.b16 %v2497
      %v2564 = vunpack.c.l.b16 %v2498
      %v2565 = vunpack.c.l.b16 %v2499
      %v2566 = vunpack.c.l.b16 %v2500
      %v2567 = vunpack.c.l.b16 %v2501
      %v2568 = vunpack.c.l.b16 %v2502
      %v2569 = vunpack.c.l.b16 %v2503
      %v2570 = vunpack.c.l.b16 %v2504
      %v2571 = vunpack.c.l.b16 %v2505
      %v2572 = vunpack.c.l.b16 %v2506
      %v2573 = vunpack.c.l.b16 %v2507
      %v2574 = vunpack.c.l.b16 %v2508
      %v2575 = vpack.c.b16 %v2544, %v2543
      %v2576 = vpack.c.b16 %v2546, %v2545
      %v2577 = vpack.c.b16 %v2548, %v2547
      %v2578 = vpack.c.b16 %v2550, %v2549
      %v2579 = vpack.c.b16 %v2552, %v2551
      %v2580 = vpack.c.b16 %v2554, %v2553
      %v2581 = vpack.c.b16 %v2556, %v2555
      %v2582 = vpack.c.b16 %v2558, %v2557
      %v2583 = vpack.c.b16 %v2560, %v2559
      %v2584 = vpack.c.b16 %v2562, %v2561
      %v2585 = vpack.c.b16 %v2564, %v2563
      %v2586 = vpack.c.b16 %v2566, %v2565
      %v2587 = vpack.c.b16 %v2568, %v2567
      %v2588 = vpack.c.b16 %v2570, %v2569
      %v2589 = vpack.c.b16 %v2572, %v2571
      %v2590 = vpack.c.b16 %v2574, %v2573
      %v2592 = vsel %vm1514, %v2575, 0
      %v2595 = vsel %vm1514, %v2576, 0
      %v2598 = vsel %vm1514, %v2577, 0
      %v2601 = vsel %vm1514, %v2578, 0
      %v2604 = vsel %vm1514, %v2579, 0
      %v2607 = vsel %vm1514, %v2580, 0
      %v2610 = vsel %vm1514, %v2581, 0
      %v2613 = vsel %vm1514, %v2582, 0
      %v2616 = vsel %vm1514, %v2583, 0
      %v2619 = vsel %vm1514, %v2584, 0
      %v2622 = vsel %vm1514, %v2585, 0
      %v2625 = vsel %vm1514, %v2586, 0
      %v2628 = vsel %vm1514, %v2587, 0
      %v2631 = vsel %vm1514, %v2588, 0
      %v2634 = vsel %vm1514, %v2589, 0
      %v2637 = vsel %vm1514, %v2590, 0
      %v2640 = vsel %vm1563, %v2510, 0
      %2642 = vmatprep.subr.bf16.mxu0 0
      %2643 = vmatpush1.bf16.msra.mxu0 %v2640
      %2644 = vmatprep.subr.bf16.mxu0 0
      %2645 = vmatpush1.bf16.msra.mxu0 0
      %2646 = vmatprep.subr.bf16.mxu0 0
      %2647 = vmatpush1.bf16.msra.mxu0 0
      %2648 = vmatprep.subr.bf16.mxu0 0
      %2649 = vmatpush1.bf16.msra.mxu0 0
      %2650 = vmatprep.subr.bf16.mxu0 0
      %2651 = vmatpush1.bf16.msra.mxu0 0
      %2652 = vmatprep.subr.bf16.mxu0 0
      %2653 = vmatpush1.bf16.msra.mxu0 0
      %2654 = vmatprep.subr.bf16.mxu0 0
      %2655 = vmatpush1.bf16.msra.mxu0 0
      %2656 = vmatprep.subr.bf16.mxu0 0
      %2657 = vmatpush1.bf16.msra.mxu0 0
      %2658 = vmatprep.subr.bf16.mxu0 0
      %2659 = vmatpush1.bf16.msra.mxu0 0
      %2660 = vmatprep.subr.bf16.mxu0 0
      %2661 = vmatpush1.bf16.msra.mxu0 0
      %2662 = vmatprep.subr.bf16.mxu0 0
      %2663 = vmatpush1.bf16.msra.mxu0 0
      %2664 = vmatprep.subr.bf16.mxu0 0
      %2665 = vmatpush1.bf16.msra.mxu0 0
      %2666 = vmatprep.subr.bf16.mxu0 0
      %2667 = vmatpush1.bf16.msra.mxu0 0
      %2668 = vmatprep.subr.bf16.mxu0 0
      %2669 = vmatpush1.bf16.msra.mxu0 0
      %2670 = vmatprep.subr.bf16.mxu0 0
      %2671 = vmatpush1.bf16.msra.mxu0 0
      %2672 = vmatprep.subr.bf16.mxu0 0
      %2673 = vmatpush1.bf16.msra.mxu0 0
      %2674 = vmatprep.mubr.bf16.mxu0 0
      %2675 = vmatmul.mubr.bf16.gmra.mrb[0].mxu0 %v2592
      %v2676 = vpop.f32.mrb[0].mxu0
      %v2677 = vadd.f32 0.0, %v2676
      %v2678 = vpop.f32.mrb[0].mxu0
      %v2679 = vpop.f32.mrb[0].mxu0
      %v2680 = vadd.f32 0.0, %v2679
      %v2681 = vpop.f32.mrb[0].mxu0
      %2682 = vmatprep.mubr.bf16.mxu0 0
      %2683 = vmatmul.mubr.bf16.gmra.mrb[0].mxu0 %v2595
      %v2684 = vpop.f32.mrb[0].mxu0
      %v2685 = vadd.f32 0.0, %v2684
      %v2686 = vpop.f32.mrb[0].mxu0
      %v2687 = vpop.f32.mrb[0].mxu0
      %v2688 = vadd.f32 0.0, %v2687
      %v2689 = vpop.f32.mrb[0].mxu0
      %2690 = vmatprep.mubr.bf16.mxu0 0
      %2691 = vmatmul.mubr.bf16.gmra.mrb[0].mxu0 %v2598
      %v2692 = vpop.f32.mrb[0].mxu0
      %v2693 = vadd.f32 0.0, %v2692
      %v2694 = vpop.f32.mrb[0].mxu0
      %v2695 = vpop.f32.mrb[0].mxu0
      %v2696 = vadd.f32 0.0, %v2695
      %v2697 = vpop.f32.mrb[0].mxu0
      %2698 = vmatprep.mubr.bf16.mxu0 0
      %2699 = vmatmul.mubr.bf16.gmra.mrb[0].mxu0 %v2601
      %v2700 = vpop.f32.mrb[0].mxu0
      %v2701 = vadd.f32 0.0, %v2700
      %v2702 = vpop.f32.mrb[0].mxu0
      %v2703 = vpop.f32.mrb[0].mxu0
      %v2704 = vadd.f32 0.0, %v2703
      %v2705 = vpop.f32.mrb[0].mxu0
      %2706 = vmatprep.mubr.bf16.mxu0 0
      %2707 = vmatmul.mubr.bf16.gmra.mrb[0].mxu0 %v2604
      %v2708 = vpop.f32.mrb[0].mxu0
      %v2709 = vadd.f32 0.0, %v2708
      %v2710 = vpop.f32.mrb[0].mxu0
      %v2711 = vpop.f32.mrb[0].mxu0
      %v2712 = vadd.f32 0.0, %v2711
      %v2713 = vpop.f32.mrb[0].mxu0
      %2714 = vmatprep.mubr.bf16.mxu0 0
      %2715 = vmatmul.mubr.bf16.gmra.mrb[0].mxu0 %v2607
      %v2716 = vpop.f32.mrb[0].mxu0
      %v2717 = vadd.f32 0.0, %v2716
      %v2718 = vpop.f32.mrb[0].mxu0
      %v2719 = vpop.f32.mrb[0].mxu0
      %v2720 = vadd.f32 0.0, %v2719
      %v2721 = vpop.f32.mrb[0].mxu0
      %2722 = vmatprep.mubr.bf16.mxu0 0
      %2723 = vmatmul.mubr.bf16.gmra.mrb[0].mxu0 %v2610
      %v2724 = vpop.f32.mrb[0].mxu0
      %v2725 = vadd.f32 0.0, %v2724
      %v2726 = vpop.f32.mrb[0].mxu0
      %v2727 = vpop.f32.mrb[0].mxu0
      %v2728 = vadd.f32 0.0, %v2727
      %v2729 = vpop.f32.mrb[0].mxu0
      %2730 = vmatprep.mubr.bf16.mxu0 0
      %2731 = vmatmul.mubr.bf16.gmra.mrb[0].mxu0 %v2613
      %v2732 = vpop.f32.mrb[0].mxu0
      %v2733 = vadd.f32 0.0, %v2732
      %v2734 = vpop.f32.mrb[0].mxu0
      %v2735 = vpop.f32.mrb[0].mxu0
      %v2736 = vadd.f32 0.0, %v2735
      %v2737 = vpop.f32.mrb[0].mxu0
      %2738 = vmatprep.mubr.bf16.mxu0 0
      %2739 = vmatmul.mubr.bf16.gmra.mrb[0].mxu0 %v2616
      %v2740 = vpop.f32.mrb[0].mxu0
      %v2741 = vadd.f32 0.0, %v2740
      %v2742 = vpop.f32.mrb[0].mxu0
      %v2743 = vpop.f32.mrb[0].mxu0
      %v2744 = vadd.f32 0.0, %v2743
      %v2745 = vpop.f32.mrb[0].mxu0
      %2746 = vmatprep.mubr.bf16.mxu0 0
      %2747 = vmatmul.mubr.bf16.gmra.mrb[0].mxu0 %v2619
      %v2748 = vpop.f32.mrb[0].mxu0
      %v2749 = vadd.f32 0.0, %v2748
      %v2750 = vpop.f32.mrb[0].mxu0
      %v2751 = vpop.f32.mrb[0].mxu0
      %v2752 = vadd.f32 0.0, %v2751
      %v2753 = vpop.f32.mrb[0].mxu0
      %2754 = vmatprep.mubr.bf16.mxu0 0
      %2755 = vmatmul.mubr.bf16.gmra.mrb[0].mxu0 %v2622
      %v2756 = vpop.f32.mrb[0].mxu0
      %v2757 = vadd.f32 0.0, %v2756
      %v2758 = vpop.f32.mrb[0].mxu0
      %v2759 = vpop.f32.mrb[0].mxu0
      %v2760 = vadd.f32 0.0, %v2759
      %v2761 = vpop.f32.mrb[0].mxu0
      %2762 = vmatprep.mubr.bf16.mxu0 0
      %2763 = vmatmul.mubr.bf16.gmra.mrb[0].mxu0 %v2625
      %v2764 = vpop.f32.mrb[0].mxu0
      %v2765 = vadd.f32 0.0, %v2764
      %v2766 = vpop.f32.mrb[0].mxu0
      %v2767 = vpop.f32.mrb[0].mxu0
      %v2768 = vadd.f32 0.0, %v2767
      %v2769 = vpop.f32.mrb[0].mxu0
      %2770 = vmatprep.mubr.bf16.mxu0 0
      %2771 = vmatmul.mubr.bf16.gmra.mrb[0].mxu0 %v2628
      %v2772 = vpop.f32.mrb[0].mxu0
      %v2773 = vadd.f32 0.0, %v2772
      %v2774 = vpop.f32.mrb[0].mxu0
      %v2775 = vpop.f32.mrb[0].mxu0
      %v2776 = vadd.f32 0.0, %v2775
      %v2777 = vpop.f32.mrb[0].mxu0
      %2778 = vmatprep.mubr.bf16.mxu0 0
      %2779 = vmatmul.mubr.bf16.gmra.mrb[0].mxu0 %v2631
      %v2780 = vpop.f32.mrb[0].mxu0
      %v2781 = vadd.f32 0.0, %v2780
      %v2782 = vpop.f32.mrb[0].mxu0
      %v2783 = vpop.f32.mrb[0].mxu0
      %v2784 = vadd.f32 0.0, %v2783
      %v2785 = vpop.f32.mrb[0].mxu0
      %2786 = vmatprep.mubr.bf16.mxu0 0
      %2787 = vmatmul.mubr.bf16.gmra.mrb[0].mxu0 %v2634
      %v2788 = vpop.f32.mrb[0].mxu0
      %v2789 = vadd.f32 0.0, %v2788
      %v2790 = vpop.f32.mrb[0].mxu0
      %v2791 = vpop.f32.mrb[0].mxu0
      %v2792 = vadd.f32 0.0, %v2791
      %v2793 = vpop.f32.mrb[0].mxu0
      %2794 = vmatprep.mubr.bf16.mxu0 0
      %2795 = vmatmul.mubr.bf16.gmra.mrb[0].mxu0 %v2637
      %v2796 = vpop.f32.mrb[0].mxu0
      %v2797 = vadd.f32 0.0, %v2796
      %v2798 = vpop.f32.mrb[0].mxu0
      %v2799 = vpop.f32.mrb[0].mxu0
      %v2800 = vadd.f32 0.0, %v2799
      %v2801 = vpop.f32.mrb[0].mxu0
      %2802 = vdwg.mxu0
      %v2803 = vadd.f32 %v2445, %v2677
      %v2804 = vadd.f32 %v2446, %v2680
      %v2805 = vadd.f32 %v2447, %v2685
      %v2806 = vadd.f32 %v2448, %v2688
      %v2807 = vadd.f32 %v2449, %v2693
      %v2808 = vadd.f32 %v2450, %v2696
      %v2809 = vadd.f32 %v2451, %v2701
      %v2810 = vadd.f32 %v2452, %v2704
      %v2811 = vadd.f32 %v2453, %v2709
      %v2812 = vadd.f32 %v2454, %v2712
      %v2813 = vadd.f32 %v2455, %v2717
      %v2814 = vadd.f32 %v2456, %v2720
      %v2815 = vadd.f32 %v2457, %v2725
      %v2816 = vadd.f32 %v2458, %v2728
      %v2817 = vadd.f32 %v2459, %v2733
      %v2818 = vadd.f32 %v2460, %v2736
      %v2819 = vadd.f32 %v2461, %v2741
      %v2820 = vadd.f32 %v2462, %v2744
      %v2821 = vadd.f32 %v2463, %v2749
      %v2822 = vadd.f32 %v2464, %v2752
      %v2823 = vadd.f32 %v2465, %v2757
      %v2824 = vadd.f32 %v2466, %v2760
      %v2825 = vadd.f32 %v2467, %v2765
      %v2826 = vadd.f32 %v2468, %v2768
      %v2827 = vadd.f32 %v2469, %v2773
      %v2828 = vadd.f32 %v2470, %v2776
      %v2829 = vadd.f32 %v2471, %v2781
      %v2830 = vadd.f32 %v2472, %v2784
      %v2831 = vadd.f32 %v2473, %v2789
      %v2832 = vadd.f32 %v2474, %v2792
      %v2833 = vadd.f32 %v2475, %v2797
      %v2834 = vadd.f32 %v2476, %v2800
      %v2835 = vld [vmem:[%s913] sm:$0xf]
      %v2836 = vld [vmem:[%s913 + $0x4] sm:$0xf]
      %v2837 = vld [vmem:[%s913 + $0x8] sm:$0x1]
      %v2838 = vld [vmem:[%s913 + $0xc] sm:$0xf]
      %v2839 = vld [vmem:[%s913 + $0x10] sm:$0xf]
      %v2840 = vld [vmem:[%s913 + $0x14] sm:$0x1]
      %v2841 = vld [vmem:[%s913 + $0x18] sm:$0xf]
      %v2842 = vld [vmem:[%s913 + $0x1c] sm:$0xf]
      %v2843 = vld [vmem:[%s913 + $0x20] sm:$0x1]
      %v2844 = vld [vmem:[%s913 + $0x24] sm:$0xf]
      %v2845 = vld [vmem:[%s913 + $0x28] sm:$0xf]
      %v2846 = vld [vmem:[%s913 + $0x2c] sm:$0x1]
      %v2847 = vld [vmem:[%s913 + $0x30] sm:$0xf]
      %v2848 = vld [vmem:[%s913 + $0x34] sm:$0xf]
      %v2849 = vld [vmem:[%s913 + $0x38] sm:$0x1]
      %v2850 = vld [vmem:[%s913 + $0x3c] sm:$0xf]
      %v2851 = vld [vmem:[%s913 + $0x40] sm:$0xf]
      %v2852 = vld [vmem:[%s913 + $0x44] sm:$0x1]
      %v2853 = vld [vmem:[%s913 + $0x48] sm:$0xf]
      %v2854 = vld [vmem:[%s913 + $0x4c] sm:$0xf]
      %v2855 = vld [vmem:[%s913 + $0x50] sm:$0x1]
      %v2856 = vld [vmem:[%s913 + $0x54] sm:$0xf]
      %v2857 = vld [vmem:[%s913 + $0x58] sm:$0xf]
      %v2858 = vld [vmem:[%s913 + $0x5c] sm:$0x1]
      %v2859 = vld [vmem:[%s913 + $0x60] sm:$0xf]
      %v2860 = vld [vmem:[%s913 + $0x64] sm:$0xf]
      %v2861 = vld [vmem:[%s913 + $0x68] sm:$0x1]
      %v2862 = vld [vmem:[%s913 + $0x6c] sm:$0xf]
      %v2863 = vld [vmem:[%s913 + $0x70] sm:$0xf]
      %v2864 = vld [vmem:[%s913 + $0x74] sm:$0x1]
      %v2865 = vld [vmem:[%s913 + $0x78] sm:$0xf]
      %v2866 = vld [vmem:[%s913 + $0x7c] sm:$0xf]
      %v2867 = vld [vmem:[%s913 + $0x80] sm:$0x1]
      %v2868 = vld [vmem:[%s913 + $0x84] sm:$0xf]
      %v2869 = vld [vmem:[%s913 + $0x88] sm:$0xf]
      %v2870 = vld [vmem:[%s913 + $0x8c] sm:$0x1]
      %v2871 = vld [vmem:[%s913 + $0x90] sm:$0xf]
      %v2872 = vld [vmem:[%s913 + $0x94] sm:$0xf]
      %v2873 = vld [vmem:[%s913 + $0x98] sm:$0x1]
      %v2874 = vld [vmem:[%s913 + $0x9c] sm:$0xf]
      %v2875 = vld [vmem:[%s913 + $0xa0] sm:$0xf]
      %v2876 = vld [vmem:[%s913 + $0xa4] sm:$0x1]
      %v2877 = vld [vmem:[%s913 + $0xa8] sm:$0xf]
      %v2878 = vld [vmem:[%s913 + $0xac] sm:$0xf]
      %v2879 = vld [vmem:[%s913 + $0xb0] sm:$0x1]
      %v2880 = vld [vmem:[%s913 + $0xb4] sm:$0xf]
      %v2881 = vld [vmem:[%s913 + $0xb8] sm:$0xf]
      %v2882 = vld [vmem:[%s913 + $0xbc] sm:$0x1]
      %v2884 = vshrl.u32 %v2835, 16
      %v2886 = vrot.slane %v2884, 4
      %v2887 = vshll.u32 %v2835, 16
      %v2889 = vrot.slane %v2887, 5
      %v2890 = vor.u32 %v2886, %v2889
      %v2891 = vrot.slane %v2890, 4
      %v2893 = vshll.u32 %v2836, 16
      %v2895 = vrot.slane %v2893, 5
      %v2896 = vsel %vm1079, %v2891, %v2895
      %v2897 = vshrl.u32 %v2836, 16
      %v2899 = vrot.slane %v2897, 4
      %v2900 = vor.u32 %v2899, %v2895
      %v2901 = vrot.slane %v2900, 4
      %v2903 = vshll.u32 %v2837, 16
      %v2905 = vrot.slane %v2903, 5
      %v2906 = vsel %vm1079, %v2901, %v2905
      %v2908 = vshrl.u32 %v2838, 16
      %v2910 = vrot.slane %v2908, 4
      %v2911 = vshll.u32 %v2838, 16
      %v2913 = vrot.slane %v2911, 5
      %v2914 = vor.u32 %v2910, %v2913
      %v2915 = vrot.slane %v2914, 4
      %v2917 = vshll.u32 %v2839, 16
      %v2919 = vrot.slane %v2917, 5
      %v2920 = vsel %vm1079, %v2915, %v2919
      %v2921 = vshrl.u32 %v2839, 16
      %v2923 = vrot.slane %v2921, 4
      %v2924 = vor.u32 %v2923, %v2919
      %v2925 = vrot.slane %v2924, 4
      %v2927 = vshll.u32 %v2840, 16
      %v2929 = vrot.slane %v2927, 5
      %v2930 = vsel %vm1079, %v2925, %v2929
      %v2932 = vshrl.u32 %v2841, 16
      %v2934 = vrot.slane %v2932, 4
      %v2935 = vshll.u32 %v2841, 16
      %v2937 = vrot.slane %v2935, 5
      %v2938 = vor.u32 %v2934, %v2937
      %v2939 = vrot.slane %v2938, 4
      %v2941 = vshll.u32 %v2842, 16
      %v2943 = vrot.slane %v2941, 5
      %v2944 = vsel %vm1079, %v2939, %v2943
      %v2945 = vshrl.u32 %v2842, 16
      %v2947 = vrot.slane %v2945, 4
      %v2948 = vor.u32 %v2947, %v2943
      %v2949 = vrot.slane %v2948, 4
      %v2951 = vshll.u32 %v2843, 16
      %v2953 = vrot.slane %v2951, 5
      %v2954 = vsel %vm1079, %v2949, %v2953
      %v2956 = vshrl.u32 %v2844, 16
      %v2958 = vrot.slane %v2956, 4
      %v2959 = vshll.u32 %v2844, 16
      %v2961 = vrot.slane %v2959, 5
      %v2962 = vor.u32 %v2958, %v2961
      %v2963 = vrot.slane %v2962, 4
      %v2965 = vshll.u32 %v2845, 16
      %v2967 = vrot.slane %v2965, 5
      %v2968 = vsel %vm1079, %v2963, %v2967
      %v2969 = vshrl.u32 %v2845, 16
      %v2971 = vrot.slane %v2969, 4
      %v2972 = vor.u32 %v2971, %v2967
      %v2973 = vrot.slane %v2972, 4
      %v2975 = vshll.u32 %v2846, 16
      %v2977 = vrot.slane %v2975, 5
      %v2978 = vsel %vm1079, %v2973, %v2977
      %v2980 = vshrl.u32 %v2847, 16
      %v2982 = vrot.slane %v2980, 4
      %v2983 = vshll.u32 %v2847, 16
      %v2985 = vrot.slane %v2983, 5
      %v2986 = vor.u32 %v2982, %v2985
      %v2987 = vrot.slane %v2986, 4
      %v2989 = vshll.u32 %v2848, 16
      %v2991 = vrot.slane %v2989, 5
      %v2992 = vsel %vm1079, %v2987, %v2991
      %v2993 = vshrl.u32 %v2848, 16
      %v2995 = vrot.slane %v2993, 4
      %v2996 = vor.u32 %v2995, %v2991
      %v2997 = vrot.slane %v2996, 4
      %v2999 = vshll.u32 %v2849, 16
      %v3001 = vrot.slane %v2999, 5
      %v3002 = vsel %vm1079, %v2997, %v3001
      %v3004 = vshrl.u32 %v2850, 16
      %v3006 = vrot.slane %v3004, 4
      %v3007 = vshll.u32 %v2850, 16
      %v3009 = vrot.slane %v3007, 5
      %v3010 = vor.u32 %v3006, %v3009
      %v3011 = vrot.slane %v3010, 4
      %v3013 = vshll.u32 %v2851, 16
      %v3015 = vrot.slane %v3013, 5
      %v3016 = vsel %vm1079, %v3011, %v3015
      %v3017 = vshrl.u32 %v2851, 16
      %v3019 = vrot.slane %v3017, 4
      %v3020 = vor.u32 %v3019, %v3015
      %v3021 = vrot.slane %v3020, 4
      %v3023 = vshll.u32 %v2852, 16
      %v3025 = vrot.slane %v3023, 5
      %v3026 = vsel %vm1079, %v3021, %v3025
      %v3028 = vshrl.u32 %v2853, 16
      %v3030 = vrot.slane %v3028, 4
      %v3031 = vshll.u32 %v2853, 16
      %v3033 = vrot.slane %v3031, 5
      %v3034 = vor.u32 %v3030, %v3033
      %v3035 = vrot.slane %v3034, 4
      %v3037 = vshll.u32 %v2854, 16
      %v3039 = vrot.slane %v3037, 5
      %v3040 = vsel %vm1079, %v3035, %v3039
      %v3041 = vshrl.u32 %v2854, 16
      %v3043 = vrot.slane %v3041, 4
      %v3044 = vor.u32 %v3043, %v3039
      %v3045 = vrot.slane %v3044, 4
      %v3047 = vshll.u32 %v2855, 16
      %v3049 = vrot.slane %v3047, 5
      %v3050 = vsel %vm1079, %v3045, %v3049
      %v3052 = vshrl.u32 %v2856, 16
      %v3054 = vrot.slane %v3052, 4
      %v3055 = vshll.u32 %v2856, 16
      %v3057 = vrot.slane %v3055, 5
      %v3058 = vor.u32 %v3054, %v3057
      %v3059 = vrot.slane %v3058, 4
      %v3061 = vshll.u32 %v2857, 16
      %v3063 = vrot.slane %v3061, 5
      %v3064 = vsel %vm1079, %v3059, %v3063
      %v3065 = vshrl.u32 %v2857, 16
      %v3067 = vrot.slane %v3065, 4
      %v3068 = vor.u32 %v3067, %v3063
      %v3069 = vrot.slane %v3068, 4
      %v3071 = vshll.u32 %v2858, 16
      %v3073 = vrot.slane %v3071, 5
      %v3074 = vsel %vm1079, %v3069, %v3073
      %v3076 = vshrl.u32 %v2859, 16
      %v3078 = vrot.slane %v3076, 4
      %v3079 = vshll.u32 %v2859, 16
      %v3081 = vrot.slane %v3079, 5
      %v3082 = vor.u32 %v3078, %v3081
      %v3083 = vrot.slane %v3082, 4
      %v3085 = vshll.u32 %v2860, 16
      %v3087 = vrot.slane %v3085, 5
      %v3088 = vsel %vm1079, %v3083, %v3087
      %v3089 = vshrl.u32 %v2860, 16
      %v3091 = vrot.slane %v3089, 4
      %v3092 = vor.u32 %v3091, %v3087
      %v3093 = vrot.slane %v3092, 4
      %v3095 = vshll.u32 %v2861, 16
      %v3097 = vrot.slane %v3095, 5
      %v3098 = vsel %vm1079, %v3093, %v3097
      %v3100 = vshrl.u32 %v2862, 16
      %v3102 = vrot.slane %v3100, 4
      %v3103 = vshll.u32 %v2862, 16
      %v3105 = vrot.slane %v3103, 5
      %v3106 = vor.u32 %v3102, %v3105
      %v3107 = vrot.slane %v3106, 4
      %v3109 = vshll.u32 %v2863, 16
      %v3111 = vrot.slane %v3109, 5
      %v3112 = vsel %vm1079, %v3107, %v3111
      %v3113 = vshrl.u32 %v2863, 16
      %v3115 = vrot.slane %v3113, 4
      %v3116 = vor.u32 %v3115, %v3111
      %v3117 = vrot.slane %v3116, 4
      %v3119 = vshll.u32 %v2864, 16
      %v3121 = vrot.slane %v3119, 5
      %v3122 = vsel %vm1079, %v3117, %v3121
      %v3124 = vshrl.u32 %v2865, 16
      %v3126 = vrot.slane %v3124, 4
      %v3127 = vshll.u32 %v2865, 16
      %v3129 = vrot.slane %v3127, 5
      %v3130 = vor.u32 %v3126, %v3129
      %v3131 = vrot.slane %v3130, 4
      %v3133 = vshll.u32 %v2866, 16
      %v3135 = vrot.slane %v3133, 5
      %v3136 = vsel %vm1079, %v3131, %v3135
      %v3137 = vshrl.u32 %v2866, 16
      %v3139 = vrot.slane %v3137, 4
      %v3140 = vor.u32 %v3139, %v3135
      %v3141 = vrot.slane %v3140, 4
      %v3143 = vshll.u32 %v2867, 16
      %v3145 = vrot.slane %v3143, 5
      %v3146 = vsel %vm1079, %v3141, %v3145
      %v3148 = vshrl.u32 %v2868, 16
      %v3150 = vrot.slane %v3148, 4
      %v3151 = vshll.u32 %v2868, 16
      %v3153 = vrot.slane %v3151, 5
      %v3154 = vor.u32 %v3150, %v3153
      %v3155 = vrot.slane %v3154, 4
      %v3157 = vshll.u32 %v2869, 16
      %v3159 = vrot.slane %v3157, 5
      %v3160 = vsel %vm1079, %v3155, %v3159
      %v3161 = vshrl.u32 %v2869, 16
      %v3163 = vrot.slane %v3161, 4
      %v3164 = vor.u32 %v3163, %v3159
      %v3165 = vrot.slane %v3164, 4
      %v3167 = vshll.u32 %v2870, 16
      %v3169 = vrot.slane %v3167, 5
      %v3170 = vsel %vm1079, %v3165, %v3169
      %v3172 = vshrl.u32 %v2871, 16
      %v3174 = vrot.slane %v3172, 4
      %v3175 = vshll.u32 %v2871, 16
      %v3177 = vrot.slane %v3175, 5
      %v3178 = vor.u32 %v3174, %v3177
      %v3179 = vrot.slane %v3178, 4
      %v3181 = vshll.u32 %v2872, 16
      %v3183 = vrot.slane %v3181, 5
      %v3184 = vsel %vm1079, %v3179, %v3183
      %v3185 = vshrl.u32 %v2872, 16
      %v3187 = vrot.slane %v3185, 4
      %v3188 = vor.u32 %v3187, %v3183
      %v3189 = vrot.slane %v3188, 4
      %v3191 = vshll.u32 %v2873, 16
      %v3193 = vrot.slane %v3191, 5
      %v3194 = vsel %vm1079, %v3189, %v3193
      %v3196 = vshrl.u32 %v2874, 16
      %v3198 = vrot.slane %v3196, 4
      %v3199 = vshll.u32 %v2874, 16
      %v3201 = vrot.slane %v3199, 5
      %v3202 = vor.u32 %v3198, %v3201
      %v3203 = vrot.slane %v3202, 4
      %v3205 = vshll.u32 %v2875, 16
      %v3207 = vrot.slane %v3205, 5
      %v3208 = vsel %vm1079, %v3203, %v3207
      %v3209 = vshrl.u32 %v2875, 16
      %v3211 = vrot.slane %v3209, 4
      %v3212 = vor.u32 %v3211, %v3207
      %v3213 = vrot.slane %v3212, 4
      %v3215 = vshll.u32 %v2876, 16
      %v3217 = vrot.slane %v3215, 5
      %v3218 = vsel %vm1079, %v3213, %v3217
      %v3220 = vshrl.u32 %v2877, 16
      %v3222 = vrot.slane %v3220, 4
      %v3223 = vshll.u32 %v2877, 16
      %v3225 = vrot.slane %v3223, 5
      %v3226 = vor.u32 %v3222, %v3225
      %v3227 = vrot.slane %v3226, 4
      %v3229 = vshll.u32 %v2878, 16
      %v3231 = vrot.slane %v3229, 5
      %v3232 = vsel %vm1079, %v3227, %v3231
      %v3233 = vshrl.u32 %v2878, 16
      %v3235 = vrot.slane %v3233, 4
      %v3236 = vor.u32 %v3235, %v3231
      %v3237 = vrot.slane %v3236, 4
      %v3239 = vshll.u32 %v2879, 16
      %v3241 = vrot.slane %v3239, 5
      %v3242 = vsel %vm1079, %v3237, %v3241
      %v3244 = vshrl.u32 %v2880, 16
      %v3246 = vrot.slane %v3244, 4
      %v3247 = vshll.u32 %v2880, 16
      %v3249 = vrot.slane %v3247, 5
      %v3250 = vor.u32 %v3246, %v3249
      %v3251 = vrot.slane %v3250, 4
      %v3253 = vshll.u32 %v2881, 16
      %v3255 = vrot.slane %v3253, 5
      %v3256 = vsel %vm1079, %v3251, %v3255
      %v3257 = vshrl.u32 %v2881, 16
      %v3259 = vrot.slane %v3257, 4
      %v3260 = vor.u32 %v3259, %v3255
      %v3261 = vrot.slane %v3260, 4
      %v3263 = vshll.u32 %v2882, 16
      %v3265 = vrot.slane %v3263, 5
      %v3266 = vsel %vm1079, %v3261, %v3265
      %s3267 = scalar_lea.vmem %s3, 16
      %v3268 = vld [vmem:[%s3267] sm:$0xf]
      %v3269 = vunpack.c.l.b16 %v2896
      %v3270 = vunpack.c.l.b16 %v2906
      %v3271 = vunpack.c.l.b16 %v2920
      %v3272 = vunpack.c.l.b16 %v2930
      %v3273 = vunpack.c.l.b16 %v2944
      %v3274 = vunpack.c.l.b16 %v2954
      %v3275 = vunpack.c.l.b16 %v2968
      %v3276 = vunpack.c.l.b16 %v2978
      %v3277 = vunpack.c.l.b16 %v2992
      %v3278 = vunpack.c.l.b16 %v3002
      %v3279 = vunpack.c.l.b16 %v3016
      %v3280 = vunpack.c.l.b16 %v3026
      %v3281 = vunpack.c.l.b16 %v3040
      %v3282 = vunpack.c.l.b16 %v3050
      %v3283 = vunpack.c.l.b16 %v3064
      %v3284 = vunpack.c.l.b16 %v3074
      %v3285 = vunpack.c.l.b16 %v3088
      %v3286 = vunpack.c.l.b16 %v3098
      %v3287 = vunpack.c.l.b16 %v3112
      %v3288 = vunpack.c.l.b16 %v3122
      %v3289 = vunpack.c.l.b16 %v3136
      %v3290 = vunpack.c.l.b16 %v3146
      %v3291 = vunpack.c.l.b16 %v3160
      %v3292 = vunpack.c.l.b16 %v3170
      %v3293 = vunpack.c.l.b16 %v3184
      %v3294 = vunpack.c.l.b16 %v3194
      %v3295 = vunpack.c.l.b16 %v3208
      %v3296 = vunpack.c.l.b16 %v3218
      %v3297 = vunpack.c.l.b16 %v3232
      %v3298 = vunpack.c.l.b16 %v3242
      %v3299 = vunpack.c.l.b16 %v3256
      %v3300 = vunpack.c.l.b16 %v3266
      %v3301 = vpack.c.b16 %v3270, %v3269
      %v3302 = vpack.c.b16 %v3272, %v3271
      %v3303 = vpack.c.b16 %v3274, %v3273
      %v3304 = vpack.c.b16 %v3276, %v3275
      %v3305 = vpack.c.b16 %v3278, %v3277
      %v3306 = vpack.c.b16 %v3280, %v3279
      %v3307 = vpack.c.b16 %v3282, %v3281
      %v3308 = vpack.c.b16 %v3284, %v3283
      %v3309 = vpack.c.b16 %v3286, %v3285
      %v3310 = vpack.c.b16 %v3288, %v3287
      %v3311 = vpack.c.b16 %v3290, %v3289
      %v3312 = vpack.c.b16 %v3292, %v3291
      %v3313 = vpack.c.b16 %v3294, %v3293
      %v3314 = vpack.c.b16 %v3296, %v3295
      %v3315 = vpack.c.b16 %v3298, %v3297
      %v3316 = vpack.c.b16 %v3300, %v3299
      %v3318 = vsel %vm1514, %v3301, 0
      %v3321 = vsel %vm1514, %v3302, 0
      %v3324 = vsel %vm1514, %v3303, 0
      %v3327 = vsel %vm1514, %v3304, 0
      %v3330 = vsel %vm1514, %v3305, 0
      %v3333 = vsel %vm1514, %v3306, 0
      %v3336 = vsel %vm1514, %v3307, 0
      %v3339 = vsel %vm1514, %v3308, 0
      %v3342 = vsel %vm1514, %v3309, 0
      %v3345 = vsel %vm1514, %v3310, 0
      %v3348 = vsel %vm1514, %v3311, 0
      %v3351 = vsel %vm1514, %v3312, 0
      %v3354 = vsel %vm1514, %v3313, 0
      %v3357 = vsel %vm1514, %v3314, 0
      %v3360 = vsel %vm1514, %v3315, 0
      %v3363 = vsel %vm1514, %v3316, 0
      %v3366 = vsel %vm1563, %v3268, 0
      %3368 = vmatprep.subr.bf16.mxu0 0
      %3369 = vmatpush1.bf16.msra.mxu0 %v3366
      %3370 = vmatprep.subr.bf16.mxu0 0
      %3371 = vmatpush1.bf16.msra.mxu0 0
      %3372 = vmatprep.subr.bf16.mxu0 0
      %3373 = vmatpush1.bf16.msra.mxu0 0
      %3374 = vmatprep.subr.bf16.mxu0 0
      %3375 = vmatpush1.bf16.msra.mxu0 0
      %3376 = vmatprep.subr.bf16.mxu0 0
      %3377 = vmatpush1.bf16.msra.mxu0 0
      %3378 = vmatprep.subr.bf16.mxu0 0
      %3379 = vmatpush1.bf16.msra.mxu0 0
      %3380 = vmatprep.subr.bf16.mxu0 0
      %3381 = vmatpush1.bf16.msra.mxu0 0
      %3382 = vmatprep.subr.bf16.mxu0 0
      %3383 = vmatpush1.bf16.msra.mxu0 0
      %3384 = vmatprep.subr.bf16.mxu0 0
      %3385 = vmatpush1.bf16.msra.mxu0 0
      %3386 = vmatprep.subr.bf16.mxu0 0
      %3387 = vmatpush1.bf16.msra.mxu0 0
      %3388 = vmatprep.subr.bf16.mxu0 0
      %3389 = vmatpush1.bf16.msra.mxu0 0
      %3390 = vmatprep.subr.bf16.mxu0 0
      %3391 = vmatpush1.bf16.msra.mxu0 0
      %3392 = vmatprep.subr.bf16.mxu0 0
      %3393 = vmatpush1.bf16.msra.mxu0 0
      %3394 = vmatprep.subr.bf16.mxu0 0
      %3395 = vmatpush1.bf16.msra.mxu0 0
      %3396 = vmatprep.subr.bf16.mxu0 0
      %3397 = vmatpush1.bf16.msra.mxu0 0
      %3398 = vmatprep.subr.bf16.mxu0 0
      %3399 = vmatpush1.bf16.msra.mxu0 0
      %3400 = vmatprep.mubr.bf16.mxu0 0
      %3401 = vmatmul.mubr.bf16.gmra.mrb[0].mxu0 %v3318
      %v3402 = vpop.f32.mrb[0].mxu0
      %v3403 = vadd.f32 0.0, %v3402
      %v3404 = vpop.f32.mrb[0].mxu0
      %v3405 = vpop.f32.mrb[0].mxu0
      %v3406 = vadd.f32 0.0, %v3405
      %v3407 = vpop.f32.mrb[0].mxu0
      %3408 = vmatprep.mubr.bf16.mxu0 0
      %3409 = vmatmul.mubr.bf16.gmra.mrb[0].mxu0 %v3321
      %v3410 = vpop.f32.mrb[0].mxu0
      %v3411 = vadd.f32 0.0, %v3410
      %v3412 = vpop.f32.mrb[0].mxu0
      %v3413 = vpop.f32.mrb[0].mxu0
      %v3414 = vadd.f32 0.0, %v3413
      %v3415 = vpop.f32.mrb[0].mxu0
      %3416 = vmatprep.mubr.bf16.mxu0 0
      %3417 = vmatmul.mubr.bf16.gmra.mrb[0].mxu0 %v3324
      %v3418 = vpop.f32.mrb[0].mxu0
      %v3419 = vadd.f32 0.0, %v3418
      %v3420 = vpop.f32.mrb[0].mxu0
      %v3421 = vpop.f32.mrb[0].mxu0
      %v3422 = vadd.f32 0.0, %v3421
      %v3423 = vpop.f32.mrb[0].mxu0
      %3424 = vmatprep.mubr.bf16.mxu0 0
      %3425 = vmatmul.mubr.bf16.gmra.mrb[0].mxu0 %v3327
      %v3426 = vpop.f32.mrb[0].mxu0
      %v3427 = vadd.f32 0.0, %v3426
      %v3428 = vpop.f32.mrb[0].mxu0
      %v3429 = vpop.f32.mrb[0].mxu0
      %v3430 = vadd.f32 0.0, %v3429
      %v3431 = vpop.f32.mrb[0].mxu0
      %3432 = vmatprep.mubr.bf16.mxu0 0
      %3433 = vmatmul.mubr.bf16.gmra.mrb[0].mxu0 %v3330
      %v3434 = vpop.f32.mrb[0].mxu0
      %v3435 = vadd.f32 0.0, %v3434
      %v3436 = vpop.f32.mrb[0].mxu0
      %v3437 = vpop.f32.mrb[0].mxu0
      %v3438 = vadd.f32 0.0, %v3437
      %v3439 = vpop.f32.mrb[0].mxu0
      %3440 = vmatprep.mubr.bf16.mxu0 0
      %3441 = vmatmul.mubr.bf16.gmra.mrb[0].mxu0 %v3333
      %v3442 = vpop.f32.mrb[0].mxu0
      %v3443 = vadd.f32 0.0, %v3442
      %v3444 = vpop.f32.mrb[0].mxu0
      %v3445 = vpop.f32.mrb[0].mxu0
      %v3446 = vadd.f32 0.0, %v3445
      %v3447 = vpop.f32.mrb[0].mxu0
      %3448 = vmatprep.mubr.bf16.mxu0 0
      %3449 = vmatmul.mubr.bf16.gmra.mrb[0].mxu0 %v3336
      %v3450 = vpop.f32.mrb[0].mxu0
      %v3451 = vadd.f32 0.0, %v3450
      %v3452 = vpop.f32.mrb[0].mxu0
      %v3453 = vpop.f32.mrb[0].mxu0
      %v3454 = vadd.f32 0.0, %v3453
      %v3455 = vpop.f32.mrb[0].mxu0
      %3456 = vmatprep.mubr.bf16.mxu0 0
      %3457 = vmatmul.mubr.bf16.gmra.mrb[0].mxu0 %v3339
      %v3458 = vpop.f32.mrb[0].mxu0
      %v3459 = vadd.f32 0.0, %v3458
      %v3460 = vpop.f32.mrb[0].mxu0
      %v3461 = vpop.f32.mrb[0].mxu0
      %v3462 = vadd.f32 0.0, %v3461
      %v3463 = vpop.f32.mrb[0].mxu0
      %3464 = vmatprep.mubr.bf16.mxu0 0
      %3465 = vmatmul.mubr.bf16.gmra.mrb[0].mxu0 %v3342
      %v3466 = vpop.f32.mrb[0].mxu0
      %v3467 = vadd.f32 0.0, %v3466
      %v3468 = vpop.f32.mrb[0].mxu0
      %v3469 = vpop.f32.mrb[0].mxu0
      %v3470 = vadd.f32 0.0, %v3469
      %v3471 = vpop.f32.mrb[0].mxu0
      %3472 = vmatprep.mubr.bf16.mxu0 0
      %3473 = vmatmul.mubr.bf16.gmra.mrb[0].mxu0 %v3345
      %v3474 = vpop.f32.mrb[0].mxu0
      %v3475 = vadd.f32 0.0, %v3474
      %v3476 = vpop.f32.mrb[0].mxu0
      %v3477 = vpop.f32.mrb[0].mxu0
      %v3478 = vadd.f32 0.0, %v3477
      %v3479 = vpop.f32.mrb[0].mxu0
      %3480 = vmatprep.mubr.bf16.mxu0 0
      %3481 = vmatmul.mubr.bf16.gmra.mrb[0].mxu0 %v3348
      %v3482 = vpop.f32.mrb[0].mxu0
      %v3483 = vadd.f32 0.0, %v3482
      %v3484 = vpop.f32.mrb[0].mxu0
      %v3485 = vpop.f32.mrb[0].mxu0
      %v3486 = vadd.f32 0.0, %v3485
      %v3487 = vpop.f32.mrb[0].mxu0
      %3488 = vmatprep.mubr.bf16.mxu0 0
      %3489 = vmatmul.mubr.bf16.gmra.mrb[0].mxu0 %v3351
      %v3490 = vpop.f32.mrb[0].mxu0
      %v3491 = vadd.f32 0.0, %v3490
      %v3492 = vpop.f32.mrb[0].mxu0
      %v3493 = vpop.f32.mrb[0].mxu0
      %v3494 = vadd.f32 0.0, %v3493
      %v3495 = vpop.f32.mrb[0].mxu0
      %3496 = vmatprep.mubr.bf16.mxu0 0
      %3497 = vmatmul.mubr.bf16.gmra.mrb[0].mxu0 %v3354
      %v3498 = vpop.f32.mrb[0].mxu0
      %v3499 = vadd.f32 0.0, %v3498
      %v3500 = vpop.f32.mrb[0].mxu0
      %v3501 = vpop.f32.mrb[0].mxu0
      %v3502 = vadd.f32 0.0, %v3501
      %v3503 = vpop.f32.mrb[0].mxu0
      %3504 = vmatprep.mubr.bf16.mxu0 0
      %3505 = vmatmul.mubr.bf16.gmra.mrb[0].mxu0 %v3357
      %v3506 = vpop.f32.mrb[0].mxu0
      %v3507 = vadd.f32 0.0, %v3506
      %v3508 = vpop.f32.mrb[0].mxu0
      %v3509 = vpop.f32.mrb[0].mxu0
      %v3510 = vadd.f32 0.0, %v3509
      %v3511 = vpop.f32.mrb[0].mxu0
      %3512 = vmatprep.mubr.bf16.mxu0 0
      %3513 = vmatmul.mubr.bf16.gmra.mrb[0].mxu0 %v3360
      %v3514 = vpop.f32.mrb[0].mxu0
      %v3515 = vadd.f32 0.0, %v3514
      %v3516 = vpop.f32.mrb[0].mxu0
      %v3517 = vpop.f32.mrb[0].mxu0
      %v3518 = vadd.f32 0.0, %v3517
      %v3519 = vpop.f32.mrb[0].mxu0
      %3520 = vmatprep.mubr.bf16.mxu0 0
      %3521 = vmatmul.mubr.bf16.gmra.mrb[0].mxu0 %v3363
      %v3522 = vpop.f32.mrb[0].mxu0
      %v3523 = vadd.f32 0.0, %v3522
      %v3524 = vpop.f32.mrb[0].mxu0
      %v3525 = vpop.f32.mrb[0].mxu0
      %v3526 = vadd.f32 0.0, %v3525
      %v3527 = vpop.f32.mrb[0].mxu0
      %3528 = vdwg.mxu0
      %v3529 = vadd.f32 %v2803, %v3403
      %v3530 = vadd.f32 %v2804, %v3406
      %v3531 = vadd.f32 %v2805, %v3411
      %v3532 = vadd.f32 %v2806, %v3414
      %v3533 = vadd.f32 %v2807, %v3419
      %v3534 = vadd.f32 %v2808, %v3422
      %v3535 = vadd.f32 %v2809, %v3427
      %v3536 = vadd.f32 %v2810, %v3430
      %v3537 = vadd.f32 %v2811, %v3435
      %v3538 = vadd.f32 %v2812, %v3438
      %v3539 = vadd.f32 %v2813, %v3443
      %v3540 = vadd.f32 %v2814, %v3446
      %v3541 = vadd.f32 %v2815, %v3451
      %v3542 = vadd.f32 %v2816, %v3454
      %v3543 = vadd.f32 %v2817, %v3459
      %v3544 = vadd.f32 %v2818, %v3462
      %v3545 = vadd.f32 %v2819, %v3467
      %v3546 = vadd.f32 %v2820, %v3470
      %v3547 = vadd.f32 %v2821, %v3475
      %v3548 = vadd.f32 %v2822, %v3478
      %v3549 = vadd.f32 %v2823, %v3483
      %v3550 = vadd.f32 %v2824, %v3486
      %v3551 = vadd.f32 %v2825, %v3491
      %v3552 = vadd.f32 %v2826, %v3494
      %v3553 = vadd.f32 %v2827, %v3499
      %v3554 = vadd.f32 %v2828, %v3502
      %v3555 = vadd.f32 %v2829, %v3507
      %v3556 = vadd.f32 %v2830, %v3510
      %v3557 = vadd.f32 %v2831, %v3515
      %v3558 = vadd.f32 %v2832, %v3518
      %v3559 = vadd.f32 %v2833, %v3523
      %v3560 = vadd.f32 %v2834, %v3526
      %v3561 = vld [vmem:[%s913] sm:$0xe]
      %v3562 = vld [vmem:[%s913 + $0xc] sm:$0xe]
      %v3563 = vld [vmem:[%s913 + $0x18] sm:$0xe]
      %v3564 = vld [vmem:[%s913 + $0x24] sm:$0xe]
      %v3565 = vld [vmem:[%s913 + $0x30] sm:$0xe]
      %v3566 = vld [vmem:[%s913 + $0x3c] sm:$0xe]
      %v3567 = vld [vmem:[%s913 + $0x48] sm:$0xe]
      %v3568 = vld [vmem:[%s913 + $0x54] sm:$0xe]
      %v3569 = vld [vmem:[%s913 + $0x60] sm:$0xe]
      %v3570 = vld [vmem:[%s913 + $0x6c] sm:$0xe]
      %v3571 = vld [vmem:[%s913 + $0x78] sm:$0xe]
      %v3572 = vld [vmem:[%s913 + $0x84] sm:$0xe]
      %v3573 = vld [vmem:[%s913 + $0x90] sm:$0xe]
      %v3574 = vld [vmem:[%s913 + $0x9c] sm:$0xe]
      %v3575 = vld [vmem:[%s913 + $0xa8] sm:$0xe]
      %v3576 = vld [vmem:[%s913 + $0xb4] sm:$0xe]
      %v3625 = vrot.slane %v3561, 5
      %v3626 = vrot.slane %v3625, 4
      %v3627 = vrot.slane %v2836, 5
      %v3628 = vsel %vm2070, %v3626, %v3627
      %v3629 = vrot.slane %v3627, 4
      %v3630 = vrot.slane %v2837, 5
      %v3631 = vsel %vm2070, %v3629, %v3630
      %v3632 = vrot.slane %v3562, 5
      %v3633 = vrot.slane %v3632, 4
      %v3634 = vrot.slane %v2839, 5
      %v3635 = vsel %vm2070, %v3633, %v3634
      %v3636 = vrot.slane %v3634, 4
      %v3637 = vrot.slane %v2840, 5
      %v3638 = vsel %vm2070, %v3636, %v3637
      %v3639 = vrot.slane %v3563, 5
      %v3640 = vrot.slane %v3639, 4
      %v3641 = vrot.slane %v2842, 5
      %v3642 = vsel %vm2070, %v3640, %v3641
      %v3643 = vrot.slane %v3641, 4
      %v3644 = vrot.slane %v2843, 5
      %v3645 = vsel %vm2070, %v3643, %v3644
      %v3646 = vrot.slane %v3564, 5
      %v3647 = vrot.slane %v3646, 4
      %v3648 = vrot.slane %v2845, 5
      %v3649 = vsel %vm2070, %v3647, %v3648
      %v3650 = vrot.slane %v3648, 4
      %v3651 = vrot.slane %v2846, 5
      %v3652 = vsel %vm2070, %v3650, %v3651
      %v3653 = vrot.slane %v3565, 5
      %v3654 = vrot.slane %v3653, 4
      %v3655 = vrot.slane %v2848, 5
      %v3656 = vsel %vm2070, %v3654, %v3655
      %v3657 = vrot.slane %v3655, 4
      %v3658 = vrot.slane %v2849, 5
      %v3659 = vsel %vm2070, %v3657, %v3658
      %v3660 = vrot.slane %v3566, 5
      %v3661 = vrot.slane %v3660, 4
      %v3662 = vrot.slane %v2851, 5
      %v3663 = vsel %vm2070, %v3661, %v3662
      %v3664 = vrot.slane %v3662, 4
      %v3665 = vrot.slane %v2852, 5
      %v3666 = vsel %vm2070, %v3664, %v3665
      %v3667 = vrot.slane %v3567, 5
      %v3668 = vrot.slane %v3667, 4
      %v3669 = vrot.slane %v2854, 5
      %v3670 = vsel %vm2070, %v3668, %v3669
      %v3671 = vrot.slane %v3669, 4
      %v3672 = vrot.slane %v2855, 5
      %v3673 = vsel %vm2070, %v3671, %v3672
      %v3674 = vrot.slane %v3568, 5
      %v3675 = vrot.slane %v3674, 4
      %v3676 = vrot.slane %v2857, 5
      %v3677 = vsel %vm2070, %v3675, %v3676
      %v3678 = vrot.slane %v3676, 4
      %v3679 = vrot.slane %v2858, 5
      %v3680 = vsel %vm2070, %v3678, %v3679
      %v3681 = vrot.slane %v3569, 5
      %v3682 = vrot.slane %v3681, 4
      %v3683 = vrot.slane %v2860, 5
      %v3684 = vsel %vm2070, %v3682, %v3683
      %v3685 = vrot.slane %v3683, 4
      %v3686 = vrot.slane %v2861, 5
      %v3687 = vsel %vm2070, %v3685, %v3686
      %v3688 = vrot.slane %v3570, 5
      %v3689 = vrot.slane %v3688, 4
      %v3690 = vrot.slane %v2863, 5
      %v3691 = vsel %vm2070, %v3689, %v3690
      %v3692 = vrot.slane %v3690, 4
      %v3693 = vrot.slane %v2864, 5
      %v3694 = vsel %vm2070, %v3692, %v3693
      %v3695 = vrot.slane %v3571, 5
      %v3696 = vrot.slane %v3695, 4
      %v3697 = vrot.slane %v2866, 5
      %v3698 = vsel %vm2070, %v3696, %v3697
      %v3699 = vrot.slane %v3697, 4
      %v3700 = vrot.slane %v2867, 5
      %v3701 = vsel %vm2070, %v3699, %v3700
      %v3702 = vrot.slane %v3572, 5
      %v3703 = vrot.slane %v3702, 4
      %v3704 = vrot.slane %v2869, 5
      %v3705 = vsel %vm2070, %v3703, %v3704
      %v3706 = vrot.slane %v3704, 4
      %v3707 = vrot.slane %v2870, 5
      %v3708 = vsel %vm2070, %v3706, %v3707
      %v3709 = vrot.slane %v3573, 5
      %v3710 = vrot.slane %v3709, 4
      %v3711 = vrot.slane %v2872, 5
      %v3712 = vsel %vm2070, %v3710, %v3711
      %v3713 = vrot.slane %v3711, 4
      %v3714 = vrot.slane %v2873, 5
      %v3715 = vsel %vm2070, %v3713, %v3714
      %v3716 = vrot.slane %v3574, 5
      %v3717 = vrot.slane %v3716, 4
      %v3718 = vrot.slane %v2875, 5
      %v3719 = vsel %vm2070, %v3717, %v3718
      %v3720 = vrot.slane %v3718, 4
      %v3721 = vrot.slane %v2876, 5
      %v3722 = vsel %vm2070, %v3720, %v3721
      %v3723 = vrot.slane %v3575, 5
      %v3724 = vrot.slane %v3723, 4
      %v3725 = vrot.slane %v2878, 5
      %v3726 = vsel %vm2070, %v3724, %v3725
      %v3727 = vrot.slane %v3725, 4
      %v3728 = vrot.slane %v2879, 5
      %v3729 = vsel %vm2070, %v3727, %v3728
      %v3730 = vrot.slane %v3576, 5
      %v3731 = vrot.slane %v3730, 4
      %v3732 = vrot.slane %v2881, 5
      %v3733 = vsel %vm2070, %v3731, %v3732
      %v3734 = vrot.slane %v3732, 4
      %v3735 = vrot.slane %v2882, 5
      %v3736 = vsel %vm2070, %v3734, %v3735
      %s3737 = scalar_lea.vmem %s3, 20
      %v3738 = vld [vmem:[%s3737] sm:$0xf]
      %v3739 = vunpack.c.l.b16 %v3628
      %v3740 = vunpack.c.l.b16 %v3631
      %v3741 = vunpack.c.l.b16 %v3635
      %v3742 = vunpack.c.l.b16 %v3638
      %v3743 = vunpack.c.l.b16 %v3642
      %v3744 = vunpack.c.l.b16 %v3645
      %v3745 = vunpack.c.l.b16 %v3649
      %v3746 = vunpack.c.l.b16 %v3652
      %v3747 = vunpack.c.l.b16 %v3656
      %v3748 = vunpack.c.l.b16 %v3659
      %v3749 = vunpack.c.l.b16 %v3663
      %v3750 = vunpack.c.l.b16 %v3666
      %v3751 = vunpack.c.l.b16 %v3670
      %v3752 = vunpack.c.l.b16 %v3673
      %v3753 = vunpack.c.l.b16 %v3677
      %v3754 = vunpack.c.l.b16 %v3680
      %v3755 = vunpack.c.l.b16 %v3684
      %v3756 = vunpack.c.l.b16 %v3687
      %v3757 = vunpack.c.l.b16 %v3691
      %v3758 = vunpack.c.l.b16 %v3694
      %v3759 = vunpack.c.l.b16 %v3698
      %v3760 = vunpack.c.l.b16 %v3701
      %v3761 = vunpack.c.l.b16 %v3705
      %v3762 = vunpack.c.l.b16 %v3708
      %v3763 = vunpack.c.l.b16 %v3712
      %v3764 = vunpack.c.l.b16 %v3715
      %v3765 = vunpack.c.l.b16 %v3719
      %v3766 = vunpack.c.l.b16 %v3722
      %v3767 = vunpack.c.l.b16 %v3726
      %v3768 = vunpack.c.l.b16 %v3729
      %v3769 = vunpack.c.l.b16 %v3733
      %v3770 = vunpack.c.l.b16 %v3736
      %v3771 = vpack.c.b16 %v3740, %v3739
      %v3772 = vpack.c.b16 %v3742, %v3741
      %v3773 = vpack.c.b16 %v3744, %v3743
      %v3774 = vpack.c.b16 %v3746, %v3745
      %v3775 = vpack.c.b16 %v3748, %v3747
      %v3776 = vpack.c.b16 %v3750, %v3749
      %v3777 = vpack.c.b16 %v3752, %v3751
      %v3778 = vpack.c.b16 %v3754, %v3753
      %v3779 = vpack.c.b16 %v3756, %v3755
      %v3780 = vpack.c.b16 %v3758, %v3757
      %v3781 = vpack.c.b16 %v3760, %v3759
      %v3782 = vpack.c.b16 %v3762, %v3761
      %v3783 = vpack.c.b16 %v3764, %v3763
      %v3784 = vpack.c.b16 %v3766, %v3765
      %v3785 = vpack.c.b16 %v3768, %v3767
      %v3786 = vpack.c.b16 %v3770, %v3769
      %v3788 = vsel %vm1514, %v3771, 0
      %v3791 = vsel %vm1514, %v3772, 0
      %v3794 = vsel %vm1514, %v3773, 0
      %v3797 = vsel %vm1514, %v3774, 0
      %v3800 = vsel %vm1514, %v3775, 0
      %v3803 = vsel %vm1514, %v3776, 0
      %v3806 = vsel %vm1514, %v3777, 0
      %v3809 = vsel %vm1514, %v3778, 0
      %v3812 = vsel %vm1514, %v3779, 0
      %v3815 = vsel %vm1514, %v3780, 0
      %v3818 = vsel %vm1514, %v3781, 0
      %v3821 = vsel %vm1514, %v3782, 0
      %v3824 = vsel %vm1514, %v3783, 0
      %v3827 = vsel %vm1514, %v3784, 0
      %v3830 = vsel %vm1514, %v3785, 0
      %v3833 = vsel %vm1514, %v3786, 0
      %v3836 = vsel %vm1563, %v3738, 0
      %3838 = vmatprep.subr.bf16.mxu0 0
      %3839 = vmatpush1.bf16.msra.mxu0 %v3836
      %3840 = vmatprep.subr.bf16.mxu0 0
      %3841 = vmatpush1.bf16.msra.mxu0 0
      %3842 = vmatprep.subr.bf16.mxu0 0
      %3843 = vmatpush1.bf16.msra.mxu0 0
      %3844 = vmatprep.subr.bf16.mxu0 0
      %3845 = vmatpush1.bf16.msra.mxu0 0
      %3846 = vmatprep.subr.bf16.mxu0 0
      %3847 = vmatpush1.bf16.msra.mxu0 0
      %3848 = vmatprep.subr.bf16.mxu0 0
      %3849 = vmatpush1.bf16.msra.mxu0 0
      %3850 = vmatprep.subr.bf16.mxu0 0
      %3851 = vmatpush1.bf16.msra.mxu0 0
      %3852 = vmatprep.subr.bf16.mxu0 0
      %3853 = vmatpush1.bf16.msra.mxu0 0
      %3854 = vmatprep.subr.bf16.mxu0 0
      %3855 = vmatpush1.bf16.msra.mxu0 0
      %3856 = vmatprep.subr.bf16.mxu0 0
      %3857 = vmatpush1.bf16.msra.mxu0 0
      %3858 = vmatprep.subr.bf16.mxu0 0
      %3859 = vmatpush1.bf16.msra.mxu0 0
      %3860 = vmatprep.subr.bf16.mxu0 0
      %3861 = vmatpush1.bf16.msra.mxu0 0
      %3862 = vmatprep.subr.bf16.mxu0 0
      %3863 = vmatpush1.bf16.msra.mxu0 0
      %3864 = vmatprep.subr.bf16.mxu0 0
      %3865 = vmatpush1.bf16.msra.mxu0 0
      %3866 = vmatprep.subr.bf16.mxu0 0
      %3867 = vmatpush1.bf16.msra.mxu0 0
      %3868 = vmatprep.subr.bf16.mxu0 0
      %3869 = vmatpush1.bf16.msra.mxu0 0
      %3870 = vmatprep.mubr.bf16.mxu0 0
      %3871 = vmatmul.mubr.bf16.gmra.mrb[0].mxu0 %v3788
      %v3872 = vpop.f32.mrb[0].mxu0
      %v3873 = vadd.f32 0.0, %v3872
      %v3874 = vpop.f32.mrb[0].mxu0
      %v3875 = vpop.f32.mrb[0].mxu0
      %v3876 = vadd.f32 0.0, %v3875
      %v3877 = vpop.f32.mrb[0].mxu0
      %3878 = vmatprep.mubr.bf16.mxu0 0
      %3879 = vmatmul.mubr.bf16.gmra.mrb[0].mxu0 %v3791
      %v3880 = vpop.f32.mrb[0].mxu0
      %v3881 = vadd.f32 0.0, %v3880
      %v3882 = vpop.f32.mrb[0].mxu0
      %v3883 = vpop.f32.mrb[0].mxu0
      %v3884 = vadd.f32 0.0, %v3883
      %v3885 = vpop.f32.mrb[0].mxu0
      %3886 = vmatprep.mubr.bf16.mxu0 0
      %3887 = vmatmul.mubr.bf16.gmra.mrb[0].mxu0 %v3794
      %v3888 = vpop.f32.mrb[0].mxu0
      %v3889 = vadd.f32 0.0, %v3888
      %v3890 = vpop.f32.mrb[0].mxu0
      %v3891 = vpop.f32.mrb[0].mxu0
      %v3892 = vadd.f32 0.0, %v3891
      %v3893 = vpop.f32.mrb[0].mxu0
      %3894 = vmatprep.mubr.bf16.mxu0 0
      %3895 = vmatmul.mubr.bf16.gmra.mrb[0].mxu0 %v3797
      %v3896 = vpop.f32.mrb[0].mxu0
      %v3897 = vadd.f32 0.0, %v3896
      %v3898 = vpop.f32.mrb[0].mxu0
      %v3899 = vpop.f32.mrb[0].mxu0
      %v3900 = vadd.f32 0.0, %v3899
      %v3901 = vpop.f32.mrb[0].mxu0
      %3902 = vmatprep.mubr.bf16.mxu0 0
      %3903 = vmatmul.mubr.bf16.gmra.mrb[0].mxu0 %v3800
      %v3904 = vpop.f32.mrb[0].mxu0
      %v3905 = vadd.f32 0.0, %v3904
      %v3906 = vpop.f32.mrb[0].mxu0
      %v3907 = vpop.f32.mrb[0].mxu0
      %v3908 = vadd.f32 0.0, %v3907
      %v3909 = vpop.f32.mrb[0].mxu0
      %3910 = vmatprep.mubr.bf16.mxu0 0
      %3911 = vmatmul.mubr.bf16.gmra.mrb[0].mxu0 %v3803
      %v3912 = vpop.f32.mrb[0].mxu0
      %v3913 = vadd.f32 0.0, %v3912
      %v3914 = vpop.f32.mrb[0].mxu0
      %v3915 = vpop.f32.mrb[0].mxu0
      %v3916 = vadd.f32 0.0, %v3915
      %v3917 = vpop.f32.mrb[0].mxu0
      %3918 = vmatprep.mubr.bf16.mxu0 0
      %3919 = vmatmul.mubr.bf16.gmra.mrb[0].mxu0 %v3806
      %v3920 = vpop.f32.mrb[0].mxu0
      %v3921 = vadd.f32 0.0, %v3920
      %v3922 = vpop.f32.mrb[0].mxu0
      %v3923 = vpop.f32.mrb[0].mxu0
      %v3924 = vadd.f32 0.0, %v3923
      %v3925 = vpop.f32.mrb[0].mxu0
      %3926 = vmatprep.mubr.bf16.mxu0 0
      %3927 = vmatmul.mubr.bf16.gmra.mrb[0].mxu0 %v3809
      %v3928 = vpop.f32.mrb[0].mxu0
      %v3929 = vadd.f32 0.0, %v3928
      %v3930 = vpop.f32.mrb[0].mxu0
      %v3931 = vpop.f32.mrb[0].mxu0
      %v3932 = vadd.f32 0.0, %v3931
      %v3933 = vpop.f32.mrb[0].mxu0
      %3934 = vmatprep.mubr.bf16.mxu0 0
      %3935 = vmatmul.mubr.bf16.gmra.mrb[0].mxu0 %v3812
      %v3936 = vpop.f32.mrb[0].mxu0
      %v3937 = vadd.f32 0.0, %v3936
      %v3938 = vpop.f32.mrb[0].mxu0
      %v3939 = vpop.f32.mrb[0].mxu0
      %v3940 = vadd.f32 0.0, %v3939
      %v3941 = vpop.f32.mrb[0].mxu0
      %3942 = vmatprep.mubr.bf16.mxu0 0
      %3943 = vmatmul.mubr.bf16.gmra.mrb[0].mxu0 %v3815
      %v3944 = vpop.f32.mrb[0].mxu0
      %v3945 = vadd.f32 0.0, %v3944
      %v3946 = vpop.f32.mrb[0].mxu0
      %v3947 = vpop.f32.mrb[0].mxu0
      %v3948 = vadd.f32 0.0, %v3947
      %v3949 = vpop.f32.mrb[0].mxu0
      %3950 = vmatprep.mubr.bf16.mxu0 0
      %3951 = vmatmul.mubr.bf16.gmra.mrb[0].mxu0 %v3818
      %v3952 = vpop.f32.mrb[0].mxu0
      %v3953 = vadd.f32 0.0, %v3952
      %v3954 = vpop.f32.mrb[0].mxu0
      %v3955 = vpop.f32.mrb[0].mxu0
      %v3956 = vadd.f32 0.0, %v3955
      %v3957 = vpop.f32.mrb[0].mxu0
      %3958 = vmatprep.mubr.bf16.mxu0 0
      %3959 = vmatmul.mubr.bf16.gmra.mrb[0].mxu0 %v3821
      %v3960 = vpop.f32.mrb[0].mxu0
      %v3961 = vadd.f32 0.0, %v3960
      %v3962 = vpop.f32.mrb[0].mxu0
      %v3963 = vpop.f32.mrb[0].mxu0
      %v3964 = vadd.f32 0.0, %v3963
      %v3965 = vpop.f32.mrb[0].mxu0
      %3966 = vmatprep.mubr.bf16.mxu0 0
      %3967 = vmatmul.mubr.bf16.gmra.mrb[0].mxu0 %v3824
      %v3968 = vpop.f32.mrb[0].mxu0
      %v3969 = vadd.f32 0.0, %v3968
      %v3970 = vpop.f32.mrb[0].mxu0
      %v3971 = vpop.f32.mrb[0].mxu0
      %v3972 = vadd.f32 0.0, %v3971
      %v3973 = vpop.f32.mrb[0].mxu0
      %3974 = vmatprep.mubr.bf16.mxu0 0
      %3975 = vmatmul.mubr.bf16.gmra.mrb[0].mxu0 %v3827
      %v3976 = vpop.f32.mrb[0].mxu0
      %v3977 = vadd.f32 0.0, %v3976
      %v3978 = vpop.f32.mrb[0].mxu0
      %v3979 = vpop.f32.mrb[0].mxu0
      %v3980 = vadd.f32 0.0, %v3979
      %v3981 = vpop.f32.mrb[0].mxu0
      %3982 = vmatprep.mubr.bf16.mxu0 0
      %3983 = vmatmul.mubr.bf16.gmra.mrb[0].mxu0 %v3830
      %v3984 = vpop.f32.mrb[0].mxu0
      %v3985 = vadd.f32 0.0, %v3984
      %v3986 = vpop.f32.mrb[0].mxu0
      %v3987 = vpop.f32.mrb[0].mxu0
      %v3988 = vadd.f32 0.0, %v3987
      %v3989 = vpop.f32.mrb[0].mxu0
      %3990 = vmatprep.mubr.bf16.mxu0 0
      %3991 = vmatmul.mubr.bf16.gmra.mrb[0].mxu0 %v3833
      %v3992 = vpop.f32.mrb[0].mxu0
      %v3993 = vadd.f32 0.0, %v3992
      %v3994 = vpop.f32.mrb[0].mxu0
      %v3995 = vpop.f32.mrb[0].mxu0
      %v3996 = vadd.f32 0.0, %v3995
      %v3997 = vpop.f32.mrb[0].mxu0
      %3998 = vdwg.mxu0
      %v3999 = vadd.f32 %v3529, %v3873
      %v4000 = vadd.f32 %v3530, %v3876
      %v4001 = vadd.f32 %v3531, %v3881
      %v4002 = vadd.f32 %v3532, %v3884
      %v4003 = vadd.f32 %v3533, %v3889
      %v4004 = vadd.f32 %v3534, %v3892
      %v4005 = vadd.f32 %v3535, %v3897
      %v4006 = vadd.f32 %v3536, %v3900
      %v4007 = vadd.f32 %v3537, %v3905
      %v4008 = vadd.f32 %v3538, %v3908
      %v4009 = vadd.f32 %v3539, %v3913
      %v4010 = vadd.f32 %v3540, %v3916
      %v4011 = vadd.f32 %v3541, %v3921
      %v4012 = vadd.f32 %v3542, %v3924
      %v4013 = vadd.f32 %v3543, %v3929
      %v4014 = vadd.f32 %v3544, %v3932
      %v4015 = vadd.f32 %v3545, %v3937
      %v4016 = vadd.f32 %v3546, %v3940
      %v4017 = vadd.f32 %v3547, %v3945
      %v4018 = vadd.f32 %v3548, %v3948
      %v4019 = vadd.f32 %v3549, %v3953
      %v4020 = vadd.f32 %v3550, %v3956
      %v4021 = vadd.f32 %v3551, %v3961
      %v4022 = vadd.f32 %v3552, %v3964
      %v4023 = vadd.f32 %v3553, %v3969
      %v4024 = vadd.f32 %v3554, %v3972
      %v4025 = vadd.f32 %v3555, %v3977
      %v4026 = vadd.f32 %v3556, %v3980
      %v4027 = vadd.f32 %v3557, %v3985
      %v4028 = vadd.f32 %v3558, %v3988
      %v4029 = vadd.f32 %v3559, %v3993
      %v4030 = vadd.f32 %v3560, %v3996
      %s4031 = scalar_lea.vmem [#allocation2], 24
      %v4032 = vld [vmem:[%s4031] sm:$0xf]
      %v4033 = vld [vmem:[%s4031 + $0x4] sm:$0xf]
      %v4034 = vld [vmem:[%s4031 + $0xc] sm:$0xf]
      %v4035 = vld [vmem:[%s4031 + $0x10] sm:$0xf]
      %v4036 = vld [vmem:[%s4031 + $0x18] sm:$0xf]
      %v4037 = vld [vmem:[%s4031 + $0x1c] sm:$0xf]
      %v4038 = vld [vmem:[%s4031 + $0x24] sm:$0xf]
      %v4039 = vld [vmem:[%s4031 + $0x28] sm:$0xf]
      %v4040 = vld [vmem:[%s4031 + $0x30] sm:$0xf]
      %v4041 = vld [vmem:[%s4031 + $0x34] sm:$0xf]
      %v4042 = vld [vmem:[%s4031 + $0x3c] sm:$0xf]
      %v4043 = vld [vmem:[%s4031 + $0x40] sm:$0xf]
      %v4044 = vld [vmem:[%s4031 + $0x48] sm:$0xf]
      %v4045 = vld [vmem:[%s4031 + $0x4c] sm:$0xf]
      %v4046 = vld [vmem:[%s4031 + $0x54] sm:$0xf]
      %v4047 = vld [vmem:[%s4031 + $0x58] sm:$0xf]
      %v4048 = vld [vmem:[%s4031 + $0x60] sm:$0xf]
      %v4049 = vld [vmem:[%s4031 + $0x64] sm:$0xf]
      %v4050 = vld [vmem:[%s4031 + $0x6c] sm:$0xf]
      %v4051 = vld [vmem:[%s4031 + $0x70] sm:$0xf]
      %v4052 = vld [vmem:[%s4031 + $0x78] sm:$0xf]
      %v4053 = vld [vmem:[%s4031 + $0x7c] sm:$0xf]
      %v4054 = vld [vmem:[%s4031 + $0x84] sm:$0xf]
      %v4055 = vld [vmem:[%s4031 + $0x88] sm:$0xf]
      %v4056 = vld [vmem:[%s4031 + $0x90] sm:$0xf]
      %v4057 = vld [vmem:[%s4031 + $0x94] sm:$0xf]
      %v4058 = vld [vmem:[%s4031 + $0x9c] sm:$0xf]
      %v4059 = vld [vmem:[%s4031 + $0xa0] sm:$0xf]
      %v4060 = vld [vmem:[%s4031 + $0xa8] sm:$0xf]
      %v4061 = vld [vmem:[%s4031 + $0xac] sm:$0xf]
      %v4062 = vld [vmem:[%s4031 + $0xb4] sm:$0xf]
      %v4063 = vld [vmem:[%s4031 + $0xb8] sm:$0xf]
      %s4064 = scalar_lea.vmem %s3, 24
      %v4065 = vld [vmem:[%s4064] sm:$0xf]
      %v4098 = vunpack.c.l.b16 %v4032
      %v4099 = vunpack.c.l.b16 %v4033
      %v4100 = vunpack.c.l.b16 %v4034
      %v4101 = vunpack.c.l.b16 %v4035
      %v4102 = vunpack.c.l.b16 %v4036
      %v4103 = vunpack.c.l.b16 %v4037
      %v4104 = vunpack.c.l.b16 %v4038
      %v4105 = vunpack.c.l.b16 %v4039
      %v4106 = vunpack.c.l.b16 %v4040
      %v4107 = vunpack.c.l.b16 %v4041
      %v4108 = vunpack.c.l.b16 %v4042
      %v4109 = vunpack.c.l.b16 %v4043
      %v4110 = vunpack.c.l.b16 %v4044
      %v4111 = vunpack.c.l.b16 %v4045
      %v4112 = vunpack.c.l.b16 %v4046
      %v4113 = vunpack.c.l.b16 %v4047
      %v4114 = vunpack.c.l.b16 %v4048
      %v4115 = vunpack.c.l.b16 %v4049
      %v4116 = vunpack.c.l.b16 %v4050
      %v4117 = vunpack.c.l.b16 %v4051
      %v4118 = vunpack.c.l.b16 %v4052
      %v4119 = vunpack.c.l.b16 %v4053
      %v4120 = vunpack.c.l.b16 %v4054
      %v4121 = vunpack.c.l.b16 %v4055
      %v4122 = vunpack.c.l.b16 %v4056
      %v4123 = vunpack.c.l.b16 %v4057
      %v4124 = vunpack.c.l.b16 %v4058
      %v4125 = vunpack.c.l.b16 %v4059
      %v4126 = vunpack.c.l.b16 %v4060
      %v4127 = vunpack.c.l.b16 %v4061
      %v4128 = vunpack.c.l.b16 %v4062
      %v4129 = vunpack.c.l.b16 %v4063
      %v4130 = vpack.c.b16 %v4099, %v4098
      %v4131 = vpack.c.b16 %v4101, %v4100
      %v4132 = vpack.c.b16 %v4103, %v4102
      %v4133 = vpack.c.b16 %v4105, %v4104
      %v4134 = vpack.c.b16 %v4107, %v4106
      %v4135 = vpack.c.b16 %v4109, %v4108
      %v4136 = vpack.c.b16 %v4111, %v4110
      %v4137 = vpack.c.b16 %v4113, %v4112
      %v4138 = vpack.c.b16 %v4115, %v4114
      %v4139 = vpack.c.b16 %v4117, %v4116
      %v4140 = vpack.c.b16 %v4119, %v4118
      %v4141 = vpack.c.b16 %v4121, %v4120
      %v4142 = vpack.c.b16 %v4123, %v4122
      %v4143 = vpack.c.b16 %v4125, %v4124
      %v4144 = vpack.c.b16 %v4127, %v4126
      %v4145 = vpack.c.b16 %v4129, %v4128
      %v4147 = vsel %vm1514, %v4130, 0
      %v4150 = vsel %vm1514, %v4131, 0
      %v4153 = vsel %vm1514, %v4132, 0
      %v4156 = vsel %vm1514, %v4133, 0
      %v4159 = vsel %vm1514, %v4134, 0
      %v4162 = vsel %vm1514, %v4135, 0
      %v4165 = vsel %vm1514, %v4136, 0
      %v4168 = vsel %vm1514, %v4137, 0
      %v4171 = vsel %vm1514, %v4138, 0
      %v4174 = vsel %vm1514, %v4139, 0
      %v4177 = vsel %vm1514, %v4140, 0
      %v4180 = vsel %vm1514, %v4141, 0
      %v4183 = vsel %vm1514, %v4142, 0
      %v4186 = vsel %vm1514, %v4143, 0
      %v4189 = vsel %vm1514, %v4144, 0
      %v4192 = vsel %vm1514, %v4145, 0
      %v4195 = vsel %vm1563, %v4065, 0
      %4197 = vmatprep.subr.bf16.mxu0 0
      %4198 = vmatpush1.bf16.msra.mxu0 %v4195
      %4199 = vmatprep.subr.bf16.mxu0 0
      %4200 = vmatpush1.bf16.msra.mxu0 0
      %4201 = vmatprep.subr.bf16.mxu0 0
      %4202 = vmatpush1.bf16.msra.mxu0 0
      %4203 = vmatprep.subr.bf16.mxu0 0
      %4204 = vmatpush1.bf16.msra.mxu0 0
      %4205 = vmatprep.subr.bf16.mxu0 0
      %4206 = vmatpush1.bf16.msra.mxu0 0
      %4207 = vmatprep.subr.bf16.mxu0 0
      %4208 = vmatpush1.bf16.msra.mxu0 0
      %4209 = vmatprep.subr.bf16.mxu0 0
      %4210 = vmatpush1.bf16.msra.mxu0 0
      %4211 = vmatprep.subr.bf16.mxu0 0
      %4212 = vmatpush1.bf16.msra.mxu0 0
      %4213 = vmatprep.subr.bf16.mxu0 0
      %4214 = vmatpush1.bf16.msra.mxu0 0
      %4215 = vmatprep.subr.bf16.mxu0 0
      %4216 = vmatpush1.bf16.msra.mxu0 0
      %4217 = vmatprep.subr.bf16.mxu0 0
      %4218 = vmatpush1.bf16.msra.mxu0 0
      %4219 = vmatprep.subr.bf16.mxu0 0
      %4220 = vmatpush1.bf16.msra.mxu0 0
      %4221 = vmatprep.subr.bf16.mxu0 0
      %4222 = vmatpush1.bf16.msra.mxu0 0
      %4223 = vmatprep.subr.bf16.mxu0 0
      %4224 = vmatpush1.bf16.msra.mxu0 0
      %4225 = vmatprep.subr.bf16.mxu0 0
      %4226 = vmatpush1.bf16.msra.mxu0 0
      %4227 = vmatprep.subr.bf16.mxu0 0
      %4228 = vmatpush1.bf16.msra.mxu0 0
      %4229 = vmatprep.mubr.bf16.mxu0 0
      %4230 = vmatmul.mubr.bf16.gmra.mrb[0].mxu0 %v4147
      %v4231 = vpop.f32.mrb[0].mxu0
      %v4232 = vadd.f32 0.0, %v4231
      %v4233 = vpop.f32.mrb[0].mxu0
      %v4234 = vpop.f32.mrb[0].mxu0
      %v4235 = vadd.f32 0.0, %v4234
      %v4236 = vpop.f32.mrb[0].mxu0
      %4237 = vmatprep.mubr.bf16.mxu0 0
      %4238 = vmatmul.mubr.bf16.gmra.mrb[0].mxu0 %v4150
      %v4239 = vpop.f32.mrb[0].mxu0
      %v4240 = vadd.f32 0.0, %v4239
      %v4241 = vpop.f32.mrb[0].mxu0
      %v4242 = vpop.f32.mrb[0].mxu0
      %v4243 = vadd.f32 0.0, %v4242
      %v4244 = vpop.f32.mrb[0].mxu0
      %4245 = vmatprep.mubr.bf16.mxu0 0
      %4246 = vmatmul.mubr.bf16.gmra.mrb[0].mxu0 %v4153
      %v4247 = vpop.f32.mrb[0].mxu0
      %v4248 = vadd.f32 0.0, %v4247
      %v4249 = vpop.f32.mrb[0].mxu0
      %v4250 = vpop.f32.mrb[0].mxu0
      %v4251 = vadd.f32 0.0, %v4250
      %v4252 = vpop.f32.mrb[0].mxu0
      %4253 = vmatprep.mubr.bf16.mxu0 0
      %4254 = vmatmul.mubr.bf16.gmra.mrb[0].mxu0 %v4156
      %v4255 = vpop.f32.mrb[0].mxu0
      %v4256 = vadd.f32 0.0, %v4255
      %v4257 = vpop.f32.mrb[0].mxu0
      %v4258 = vpop.f32.mrb[0].mxu0
      %v4259 = vadd.f32 0.0, %v4258
      %v4260 = vpop.f32.mrb[0].mxu0
      %4261 = vmatprep.mubr.bf16.mxu0 0
      %4262 = vmatmul.mubr.bf16.gmra.mrb[0].mxu0 %v4159
      %v4263 = vpop.f32.mrb[0].mxu0
      %v4264 = vadd.f32 0.0, %v4263
      %v4265 = vpop.f32.mrb[0].mxu0
      %v4266 = vpop.f32.mrb[0].mxu0
      %v4267 = vadd.f32 0.0, %v4266
      %v4268 = vpop.f32.mrb[0].mxu0
      %4269 = vmatprep.mubr.bf16.mxu0 0
      %4270 = vmatmul.mubr.bf16.gmra.mrb[0].mxu0 %v4162
      %v4271 = vpop.f32.mrb[0].mxu0
      %v4272 = vadd.f32 0.0, %v4271
      %v4273 = vpop.f32.mrb[0].mxu0
      %v4274 = vpop.f32.mrb[0].mxu0
      %v4275 = vadd.f32 0.0, %v4274
      %v4276 = vpop.f32.mrb[0].mxu0
      %4277 = vmatprep.mubr.bf16.mxu0 0
      %4278 = vmatmul.mubr.bf16.gmra.mrb[0].mxu0 %v4165
      %v4279 = vpop.f32.mrb[0].mxu0
      %v4280 = vadd.f32 0.0, %v4279
      %v4281 = vpop.f32.mrb[0].mxu0
      %v4282 = vpop.f32.mrb[0].mxu0
      %v4283 = vadd.f32 0.0, %v4282
      %v4284 = vpop.f32.mrb[0].mxu0
      %4285 = vmatprep.mubr.bf16.mxu0 0
      %4286 = vmatmul.mubr.bf16.gmra.mrb[0].mxu0 %v4168
      %v4287 = vpop.f32.mrb[0].mxu0
      %v4288 = vadd.f32 0.0, %v4287
      %v4289 = vpop.f32.mrb[0].mxu0
      %v4290 = vpop.f32.mrb[0].mxu0
      %v4291 = vadd.f32 0.0, %v4290
      %v4292 = vpop.f32.mrb[0].mxu0
      %4293 = vmatprep.mubr.bf16.mxu0 0
      %4294 = vmatmul.mubr.bf16.gmra.mrb[0].mxu0 %v4171
      %v4295 = vpop.f32.mrb[0].mxu0
      %v4296 = vadd.f32 0.0, %v4295
      %v4297 = vpop.f32.mrb[0].mxu0
      %v4298 = vpop.f32.mrb[0].mxu0
      %v4299 = vadd.f32 0.0, %v4298
      %v4300 = vpop.f32.mrb[0].mxu0
      %4301 = vmatprep.mubr.bf16.mxu0 0
      %4302 = vmatmul.mubr.bf16.gmra.mrb[0].mxu0 %v4174
      %v4303 = vpop.f32.mrb[0].mxu0
      %v4304 = vadd.f32 0.0, %v4303
      %v4305 = vpop.f32.mrb[0].mxu0
      %v4306 = vpop.f32.mrb[0].mxu0
      %v4307 = vadd.f32 0.0, %v4306
      %v4308 = vpop.f32.mrb[0].mxu0
      %4309 = vmatprep.mubr.bf16.mxu0 0
      %4310 = vmatmul.mubr.bf16.gmra.mrb[0].mxu0 %v4177
      %v4311 = vpop.f32.mrb[0].mxu0
      %v4312 = vadd.f32 0.0, %v4311
      %v4313 = vpop.f32.mrb[0].mxu0
      %v4314 = vpop.f32.mrb[0].mxu0
      %v4315 = vadd.f32 0.0, %v4314
      %v4316 = vpop.f32.mrb[0].mxu0
      %4317 = vmatprep.mubr.bf16.mxu0 0
      %4318 = vmatmul.mubr.bf16.gmra.mrb[0].mxu0 %v4180
      %v4319 = vpop.f32.mrb[0].mxu0
      %v4320 = vadd.f32 0.0, %v4319
      %v4321 = vpop.f32.mrb[0].mxu0
      %v4322 = vpop.f32.mrb[0].mxu0
      %v4323 = vadd.f32 0.0, %v4322
      %v4324 = vpop.f32.mrb[0].mxu0
      %4325 = vmatprep.mubr.bf16.mxu0 0
      %4326 = vmatmul.mubr.bf16.gmra.mrb[0].mxu0 %v4183
      %v4327 = vpop.f32.mrb[0].mxu0
      %v4328 = vadd.f32 0.0, %v4327
      %v4329 = vpop.f32.mrb[0].mxu0
      %v4330 = vpop.f32.mrb[0].mxu0
      %v4331 = vadd.f32 0.0, %v4330
      %v4332 = vpop.f32.mrb[0].mxu0
      %4333 = vmatprep.mubr.bf16.mxu0 0
      %4334 = vmatmul.mubr.bf16.gmra.mrb[0].mxu0 %v4186
      %v4335 = vpop.f32.mrb[0].mxu0
      %v4336 = vadd.f32 0.0, %v4335
      %v4337 = vpop.f32.mrb[0].mxu0
      %v4338 = vpop.f32.mrb[0].mxu0
      %v4339 = vadd.f32 0.0, %v4338
      %v4340 = vpop.f32.mrb[0].mxu0
      %4341 = vmatprep.mubr.bf16.mxu0 0
      %4342 = vmatmul.mubr.bf16.gmra.mrb[0].mxu0 %v4189
      %v4343 = vpop.f32.mrb[0].mxu0
      %v4344 = vadd.f32 0.0, %v4343
      %v4345 = vpop.f32.mrb[0].mxu0
      %v4346 = vpop.f32.mrb[0].mxu0
      %v4347 = vadd.f32 0.0, %v4346
      %v4348 = vpop.f32.mrb[0].mxu0
      %4349 = vmatprep.mubr.bf16.mxu0 0
      %4350 = vmatmul.mubr.bf16.gmra.mrb[0].mxu0 %v4192
      %v4351 = vpop.f32.mrb[0].mxu0
      %v4352 = vadd.f32 0.0, %v4351
      %v4353 = vpop.f32.mrb[0].mxu0
      %v4354 = vpop.f32.mrb[0].mxu0
      %v4355 = vadd.f32 0.0, %v4354
      %v4356 = vpop.f32.mrb[0].mxu0
      %4357 = vdwg.mxu0
      %v4358 = vadd.f32 %v3999, %v4232
      %v4359 = vadd.f32 %v4000, %v4235
      %v4360 = vadd.f32 %v4001, %v4240
      %v4361 = vadd.f32 %v4002, %v4243
      %v4362 = vadd.f32 %v4003, %v4248
      %v4363 = vadd.f32 %v4004, %v4251
      %v4364 = vadd.f32 %v4005, %v4256
      %v4365 = vadd.f32 %v4006, %v4259
      %v4366 = vadd.f32 %v4007, %v4264
      %v4367 = vadd.f32 %v4008, %v4267
      %v4368 = vadd.f32 %v4009, %v4272
      %v4369 = vadd.f32 %v4010, %v4275
      %v4370 = vadd.f32 %v4011, %v4280
      %v4371 = vadd.f32 %v4012, %v4283
      %v4372 = vadd.f32 %v4013, %v4288
      %v4373 = vadd.f32 %v4014, %v4291
      %v4374 = vadd.f32 %v4015, %v4296
      %v4375 = vadd.f32 %v4016, %v4299
      %v4376 = vadd.f32 %v4017, %v4304
      %v4377 = vadd.f32 %v4018, %v4307
      %v4378 = vadd.f32 %v4019, %v4312
      %v4379 = vadd.f32 %v4020, %v4315
      %v4380 = vadd.f32 %v4021, %v4320
      %v4381 = vadd.f32 %v4022, %v4323
      %v4382 = vadd.f32 %v4023, %v4328
      %v4383 = vadd.f32 %v4024, %v4331
      %v4384 = vadd.f32 %v4025, %v4336
      %v4385 = vadd.f32 %v4026, %v4339
      %v4386 = vadd.f32 %v4027, %v4344
      %v4387 = vadd.f32 %v4028, %v4347
      %v4388 = vadd.f32 %v4029, %v4352
      %v4389 = vadd.f32 %v4030, %v4355
      %v4390 = vld [vmem:[%s4031] sm:$0xf]
      %v4391 = vld [vmem:[%s4031 + $0x4] sm:$0xf]
      %v4392 = vld [vmem:[%s4031 + $0x8] sm:$0x1]
      %v4393 = vld [vmem:[%s4031 + $0xc] sm:$0xf]
      %v4394 = vld [vmem:[%s4031 + $0x10] sm:$0xf]
      %v4395 = vld [vmem:[%s4031 + $0x14] sm:$0x1]
      %v4396 = vld [vmem:[%s4031 + $0x18] sm:$0xf]
      %v4397 = vld [vmem:[%s4031 + $0x1c] sm:$0xf]
      %v4398 = vld [vmem:[%s4031 + $0x20] sm:$0x1]
      %v4399 = vld [vmem:[%s4031 + $0x24] sm:$0xf]
      %v4400 = vld [vmem:[%s4031 + $0x28] sm:$0xf]
      %v4401 = vld [vmem:[%s4031 + $0x2c] sm:$0x1]
      %v4402 = vld [vmem:[%s4031 + $0x30] sm:$0xf]
      %v4403 = vld [vmem:[%s4031 + $0x34] sm:$0xf]
      %v4404 = vld [vmem:[%s4031 + $0x38] sm:$0x1]
      %v4405 = vld [vmem:[%s4031 + $0x3c] sm:$0xf]
      %v4406 = vld [vmem:[%s4031 + $0x40] sm:$0xf]
      %v4407 = vld [vmem:[%s4031 + $0x44] sm:$0x1]
      %v4408 = vld [vmem:[%s4031 + $0x48] sm:$0xf]
      %v4409 = vld [vmem:[%s4031 + $0x4c] sm:$0xf]
      %v4410 = vld [vmem:[%s4031 + $0x50] sm:$0x1]
      %v4411 = vld [vmem:[%s4031 + $0x54] sm:$0xf]
      %v4412 = vld [vmem:[%s4031 + $0x58] sm:$0xf]
      %v4413 = vld [vmem:[%s4031 + $0x5c] sm:$0x1]
      %v4414 = vld [vmem:[%s4031 + $0x60] sm:$0xf]
      %v4415 = vld [vmem:[%s4031 + $0x64] sm:$0xf]
      %v4416 = vld [vmem:[%s4031 + $0x68] sm:$0x1]
      %v4417 = vld [vmem:[%s4031 + $0x6c] sm:$0xf]
      %v4418 = vld [vmem:[%s4031 + $0x70] sm:$0xf]
      %v4419 = vld [vmem:[%s4031 + $0x74] sm:$0x1]
      %v4420 = vld [vmem:[%s4031 + $0x78] sm:$0xf]
      %v4421 = vld [vmem:[%s4031 + $0x7c] sm:$0xf]
      %v4422 = vld [vmem:[%s4031 + $0x80] sm:$0x1]
      %v4423 = vld [vmem:[%s4031 + $0x84] sm:$0xf]
      %v4424 = vld [vmem:[%s4031 + $0x88] sm:$0xf]
      %v4425 = vld [vmem:[%s4031 + $0x8c] sm:$0x1]
      %v4426 = vld [vmem:[%s4031 + $0x90] sm:$0xf]
      %v4427 = vld [vmem:[%s4031 + $0x94] sm:$0xf]
      %v4428 = vld [vmem:[%s4031 + $0x98] sm:$0x1]
      %v4429 = vld [vmem:[%s4031 + $0x9c] sm:$0xf]
      %v4430 = vld [vmem:[%s4031 + $0xa0] sm:$0xf]
      %v4431 = vld [vmem:[%s4031 + $0xa4] sm:$0x1]
      %v4432 = vld [vmem:[%s4031 + $0xa8] sm:$0xf]
      %v4433 = vld [vmem:[%s4031 + $0xac] sm:$0xf]
      %v4434 = vld [vmem:[%s4031 + $0xb0] sm:$0x1]
      %v4435 = vld [vmem:[%s4031 + $0xb4] sm:$0xf]
      %v4436 = vld [vmem:[%s4031 + $0xb8] sm:$0xf]
      %v4437 = vld [vmem:[%s4031 + $0xbc] sm:$0x1]
      %v4439 = vshrl.u32 %v4390, 16
      %v4441 = vrot.slane %v4439, 4
      %v4442 = vshll.u32 %v4390, 16
      %v4444 = vrot.slane %v4442, 5
      %v4445 = vor.u32 %v4441, %v4444
      %v4446 = vrot.slane %v4445, 4
      %v4448 = vshll.u32 %v4391, 16
      %v4450 = vrot.slane %v4448, 5
      %v4451 = vsel %vm1079, %v4446, %v4450
      %v4452 = vshrl.u32 %v4391, 16
      %v4454 = vrot.slane %v4452, 4
      %v4455 = vor.u32 %v4454, %v4450
      %v4456 = vrot.slane %v4455, 4
      %v4458 = vshll.u32 %v4392, 16
      %v4460 = vrot.slane %v4458, 5
      %v4461 = vsel %vm1079, %v4456, %v4460
      %v4463 = vshrl.u32 %v4393, 16
      %v4465 = vrot.slane %v4463, 4
      %v4466 = vshll.u32 %v4393, 16
      %v4468 = vrot.slane %v4466, 5
      %v4469 = vor.u32 %v4465, %v4468
      %v4470 = vrot.slane %v4469, 4
      %v4472 = vshll.u32 %v4394, 16
      %v4474 = vrot.slane %v4472, 5
      %v4475 = vsel %vm1079, %v4470, %v4474
      %v4476 = vshrl.u32 %v4394, 16
      %v4478 = vrot.slane %v4476, 4
      %v4479 = vor.u32 %v4478, %v4474
      %v4480 = vrot.slane %v4479, 4
      %v4482 = vshll.u32 %v4395, 16
      %v4484 = vrot.slane %v4482, 5
      %v4485 = vsel %vm1079, %v4480, %v4484
      %v4487 = vshrl.u32 %v4396, 16
      %v4489 = vrot.slane %v4487, 4
      %v4490 = vshll.u32 %v4396, 16
      %v4492 = vrot.slane %v4490, 5
      %v4493 = vor.u32 %v4489, %v4492
      %v4494 = vrot.slane %v4493, 4
      %v4496 = vshll.u32 %v4397, 16
      %v4498 = vrot.slane %v4496, 5
      %v4499 = vsel %vm1079, %v4494, %v4498
      %v4500 = vshrl.u32 %v4397, 16
      %v4502 = vrot.slane %v4500, 4
      %v4503 = vor.u32 %v4502, %v4498
      %v4504 = vrot.slane %v4503, 4
      %v4506 = vshll.u32 %v4398, 16
      %v4508 = vrot.slane %v4506, 5
      %v4509 = vsel %vm1079, %v4504, %v4508
      %v4511 = vshrl.u32 %v4399, 16
      %v4513 = vrot.slane %v4511, 4
      %v4514 = vshll.u32 %v4399, 16
      %v4516 = vrot.slane %v4514, 5
      %v4517 = vor.u32 %v4513, %v4516
      %v4518 = vrot.slane %v4517, 4
      %v4520 = vshll.u32 %v4400, 16
      %v4522 = vrot.slane %v4520, 5
      %v4523 = vsel %vm1079, %v4518, %v4522
      %v4524 = vshrl.u32 %v4400, 16
      %v4526 = vrot.slane %v4524, 4
      %v4527 = vor.u32 %v4526, %v4522
      %v4528 = vrot.slane %v4527, 4
      %v4530 = vshll.u32 %v4401, 16
      %v4532 = vrot.slane %v4530, 5
      %v4533 = vsel %vm1079, %v4528, %v4532
      %v4535 = vshrl.u32 %v4402, 16
      %v4537 = vrot.slane %v4535, 4
      %v4538 = vshll.u32 %v4402, 16
      %v4540 = vrot.slane %v4538, 5
      %v4541 = vor.u32 %v4537, %v4540
      %v4542 = vrot.slane %v4541, 4
      %v4544 = vshll.u32 %v4403, 16
      %v4546 = vrot.slane %v4544, 5
      %v4547 = vsel %vm1079, %v4542, %v4546
      %v4548 = vshrl.u32 %v4403, 16
      %v4550 = vrot.slane %v4548, 4
      %v4551 = vor.u32 %v4550, %v4546
      %v4552 = vrot.slane %v4551, 4
      %v4554 = vshll.u32 %v4404, 16
      %v4556 = vrot.slane %v4554, 5
      %v4557 = vsel %vm1079, %v4552, %v4556
      %v4559 = vshrl.u32 %v4405, 16
      %v4561 = vrot.slane %v4559, 4
      %v4562 = vshll.u32 %v4405, 16
      %v4564 = vrot.slane %v4562, 5
      %v4565 = vor.u32 %v4561, %v4564
      %v4566 = vrot.slane %v4565, 4
      %v4568 = vshll.u32 %v4406, 16
      %v4570 = vrot.slane %v4568, 5
      %v4571 = vsel %vm1079, %v4566, %v4570
      %v4572 = vshrl.u32 %v4406, 16
      %v4574 = vrot.slane %v4572, 4
      %v4575 = vor.u32 %v4574, %v4570
      %v4576 = vrot.slane %v4575, 4
      %v4578 = vshll.u32 %v4407, 16
      %v4580 = vrot.slane %v4578, 5
      %v4581 = vsel %vm1079, %v4576, %v4580
      %v4583 = vshrl.u32 %v4408, 16
      %v4585 = vrot.slane %v4583, 4
      %v4586 = vshll.u32 %v4408, 16
      %v4588 = vrot.slane %v4586, 5
      %v4589 = vor.u32 %v4585, %v4588
      %v4590 = vrot.slane %v4589, 4
      %v4592 = vshll.u32 %v4409, 16
      %v4594 = vrot.slane %v4592, 5
      %v4595 = vsel %vm1079, %v4590, %v4594
      %v4596 = vshrl.u32 %v4409, 16
      %v4598 = vrot.slane %v4596, 4
      %v4599 = vor.u32 %v4598, %v4594
      %v4600 = vrot.slane %v4599, 4
      %v4602 = vshll.u32 %v4410, 16
      %v4604 = vrot.slane %v4602, 5
      %v4605 = vsel %vm1079, %v4600, %v4604
      %v4607 = vshrl.u32 %v4411, 16
      %v4609 = vrot.slane %v4607, 4
      %v4610 = vshll.u32 %v4411, 16
      %v4612 = vrot.slane %v4610, 5
      %v4613 = vor.u32 %v4609, %v4612
      %v4614 = vrot.slane %v4613, 4
      %v4616 = vshll.u32 %v4412, 16
      %v4618 = vrot.slane %v4616, 5
      %v4619 = vsel %vm1079, %v4614, %v4618
      %v4620 = vshrl.u32 %v4412, 16
      %v4622 = vrot.slane %v4620, 4
      %v4623 = vor.u32 %v4622, %v4618
      %v4624 = vrot.slane %v4623, 4
      %v4626 = vshll.u32 %v4413, 16
      %v4628 = vrot.slane %v4626, 5
      %v4629 = vsel %vm1079, %v4624, %v4628
      %v4631 = vshrl.u32 %v4414, 16
      %v4633 = vrot.slane %v4631, 4
      %v4634 = vshll.u32 %v4414, 16
      %v4636 = vrot.slane %v4634, 5
      %v4637 = vor.u32 %v4633, %v4636
      %v4638 = vrot.slane %v4637, 4
      %v4640 = vshll.u32 %v4415, 16
      %v4642 = vrot.slane %v4640, 5
      %v4643 = vsel %vm1079, %v4638, %v4642
      %v4644 = vshrl.u32 %v4415, 16
      %v4646 = vrot.slane %v4644, 4
      %v4647 = vor.u32 %v4646, %v4642
      %v4648 = vrot.slane %v4647, 4
      %v4650 = vshll.u32 %v4416, 16
      %v4652 = vrot.slane %v4650, 5
      %v4653 = vsel %vm1079, %v4648, %v4652
      %v4655 = vshrl.u32 %v4417, 16
      %v4657 = vrot.slane %v4655, 4
      %v4658 = vshll.u32 %v4417, 16
      %v4660 = vrot.slane %v4658, 5
      %v4661 = vor.u32 %v4657, %v4660
      %v4662 = vrot.slane %v4661, 4
      %v4664 = vshll.u32 %v4418, 16
      %v4666 = vrot.slane %v4664, 5
      %v4667 = vsel %vm1079, %v4662, %v4666
      %v4668 = vshrl.u32 %v4418, 16
      %v4670 = vrot.slane %v4668, 4
      %v4671 = vor.u32 %v4670, %v4666
      %v4672 = vrot.slane %v4671, 4
      %v4674 = vshll.u32 %v4419, 16
      %v4676 = vrot.slane %v4674, 5
      %v4677 = vsel %vm1079, %v4672, %v4676
      %v4679 = vshrl.u32 %v4420, 16
      %v4681 = vrot.slane %v4679, 4
      %v4682 = vshll.u32 %v4420, 16
      %v4684 = vrot.slane %v4682, 5
      %v4685 = vor.u32 %v4681, %v4684
      %v4686 = vrot.slane %v4685, 4
      %v4688 = vshll.u32 %v4421, 16
      %v4690 = vrot.slane %v4688, 5
      %v4691 = vsel %vm1079, %v4686, %v4690
      %v4692 = vshrl.u32 %v4421, 16
      %v4694 = vrot.slane %v4692, 4
      %v4695 = vor.u32 %v4694, %v4690
      %v4696 = vrot.slane %v4695, 4
      %v4698 = vshll.u32 %v4422, 16
      %v4700 = vrot.slane %v4698, 5
      %v4701 = vsel %vm1079, %v4696, %v4700
      %v4703 = vshrl.u32 %v4423, 16
      %v4705 = vrot.slane %v4703, 4
      %v4706 = vshll.u32 %v4423, 16
      %v4708 = vrot.slane %v4706, 5
      %v4709 = vor.u32 %v4705, %v4708
      %v4710 = vrot.slane %v4709, 4
      %v4712 = vshll.u32 %v4424, 16
      %v4714 = vrot.slane %v4712, 5
      %v4715 = vsel %vm1079, %v4710, %v4714
      %v4716 = vshrl.u32 %v4424, 16
      %v4718 = vrot.slane %v4716, 4
      %v4719 = vor.u32 %v4718, %v4714
      %v4720 = vrot.slane %v4719, 4
      %v4722 = vshll.u32 %v4425, 16
      %v4724 = vrot.slane %v4722, 5
      %v4725 = vsel %vm1079, %v4720, %v4724
      %v4727 = vshrl.u32 %v4426, 16
      %v4729 = vrot.slane %v4727, 4
      %v4730 = vshll.u32 %v4426, 16
      %v4732 = vrot.slane %v4730, 5
      %v4733 = vor.u32 %v4729, %v4732
      %v4734 = vrot.slane %v4733, 4
      %v4736 = vshll.u32 %v4427, 16
      %v4738 = vrot.slane %v4736, 5
      %v4739 = vsel %vm1079, %v4734, %v4738
      %v4740 = vshrl.u32 %v4427, 16
      %v4742 = vrot.slane %v4740, 4
      %v4743 = vor.u32 %v4742, %v4738
      %v4744 = vrot.slane %v4743, 4
      %v4746 = vshll.u32 %v4428, 16
      %v4748 = vrot.slane %v4746, 5
      %v4749 = vsel %vm1079, %v4744, %v4748
      %v4751 = vshrl.u32 %v4429, 16
      %v4753 = vrot.slane %v4751, 4
      %v4754 = vshll.u32 %v4429, 16
      %v4756 = vrot.slane %v4754, 5
      %v4757 = vor.u32 %v4753, %v4756
      %v4758 = vrot.slane %v4757, 4
      %v4760 = vshll.u32 %v4430, 16
      %v4762 = vrot.slane %v4760, 5
      %v4763 = vsel %vm1079, %v4758, %v4762
      %v4764 = vshrl.u32 %v4430, 16
      %v4766 = vrot.slane %v4764, 4
      %v4767 = vor.u32 %v4766, %v4762
      %v4768 = vrot.slane %v4767, 4
      %v4770 = vshll.u32 %v4431, 16
      %v4772 = vrot.slane %v4770, 5
      %v4773 = vsel %vm1079, %v4768, %v4772
      %v4775 = vshrl.u32 %v4432, 16
      %v4777 = vrot.slane %v4775, 4
      %v4778 = vshll.u32 %v4432, 16
      %v4780 = vrot.slane %v4778, 5
      %v4781 = vor.u32 %v4777, %v4780
      %v4782 = vrot.slane %v4781, 4
      %v4784 = vshll.u32 %v4433, 16
      %v4786 = vrot.slane %v4784, 5
      %v4787 = vsel %vm1079, %v4782, %v4786
      %v4788 = vshrl.u32 %v4433, 16
      %v4790 = vrot.slane %v4788, 4
      %v4791 = vor.u32 %v4790, %v4786
      %v4792 = vrot.slane %v4791, 4
      %v4794 = vshll.u32 %v4434, 16
      %v4796 = vrot.slane %v4794, 5
      %v4797 = vsel %vm1079, %v4792, %v4796
      %v4799 = vshrl.u32 %v4435, 16
      %v4801 = vrot.slane %v4799, 4
      %v4802 = vshll.u32 %v4435, 16
      %v4804 = vrot.slane %v4802, 5
      %v4805 = vor.u32 %v4801, %v4804
      %v4806 = vrot.slane %v4805, 4
      %v4808 = vshll.u32 %v4436, 16
      %v4810 = vrot.slane %v4808, 5
      %v4811 = vsel %vm1079, %v4806, %v4810
      %v4812 = vshrl.u32 %v4436, 16
      %v4814 = vrot.slane %v4812, 4
      %v4815 = vor.u32 %v4814, %v4810
      %v4816 = vrot.slane %v4815, 4
      %v4818 = vshll.u32 %v4437, 16
      %v4820 = vrot.slane %v4818, 5
      %v4821 = vsel %vm1079, %v4816, %v4820
      %s4822 = scalar_lea.vmem %s3, 28
      %v4823 = vld [vmem:[%s4822] sm:$0xf]
      %v4824 = vunpack.c.l.b16 %v4451
      %v4825 = vunpack.c.l.b16 %v4461
      %v4826 = vunpack.c.l.b16 %v4475
      %v4827 = vunpack.c.l.b16 %v4485
      %v4828 = vunpack.c.l.b16 %v4499
      %v4829 = vunpack.c.l.b16 %v4509
      %v4830 = vunpack.c.l.b16 %v4523
      %v4831 = vunpack.c.l.b16 %v4533
      %v4832 = vunpack.c.l.b16 %v4547
      %v4833 = vunpack.c.l.b16 %v4557
      %v4834 = vunpack.c.l.b16 %v4571
      %v4835 = vunpack.c.l.b16 %v4581
      %v4836 = vunpack.c.l.b16 %v4595
      %v4837 = vunpack.c.l.b16 %v4605
      %v4838 = vunpack.c.l.b16 %v4619
      %v4839 = vunpack.c.l.b16 %v4629
      %v4840 = vunpack.c.l.b16 %v4643
      %v4841 = vunpack.c.l.b16 %v4653
      %v4842 = vunpack.c.l.b16 %v4667
      %v4843 = vunpack.c.l.b16 %v4677
      %v4844 = vunpack.c.l.b16 %v4691
      %v4845 = vunpack.c.l.b16 %v4701
      %v4846 = vunpack.c.l.b16 %v4715
      %v4847 = vunpack.c.l.b16 %v4725
      %v4848 = vunpack.c.l.b16 %v4739
      %v4849 = vunpack.c.l.b16 %v4749
      %v4850 = vunpack.c.l.b16 %v4763
      %v4851 = vunpack.c.l.b16 %v4773
      %v4852 = vunpack.c.l.b16 %v4787
      %v4853 = vunpack.c.l.b16 %v4797
      %v4854 = vunpack.c.l.b16 %v4811
      %v4855 = vunpack.c.l.b16 %v4821
      %v4856 = vpack.c.b16 %v4825, %v4824
      %v4857 = vpack.c.b16 %v4827, %v4826
      %v4858 = vpack.c.b16 %v4829, %v4828
      %v4859 = vpack.c.b16 %v4831, %v4830
      %v4860 = vpack.c.b16 %v4833, %v4832
      %v4861 = vpack.c.b16 %v4835, %v4834
      %v4862 = vpack.c.b16 %v4837, %v4836
      %v4863 = vpack.c.b16 %v4839, %v4838
      %v4864 = vpack.c.b16 %v4841, %v4840
      %v4865 = vpack.c.b16 %v4843, %v4842
      %v4866 = vpack.c.b16 %v4845, %v4844
      %v4867 = vpack.c.b16 %v4847, %v4846
      %v4868 = vpack.c.b16 %v4849, %v4848
      %v4869 = vpack.c.b16 %v4851, %v4850
      %v4870 = vpack.c.b16 %v4853, %v4852
      %v4871 = vpack.c.b16 %v4855, %v4854
      %v4873 = vsel %vm1514, %v4856, 0
      %v4876 = vsel %vm1514, %v4857, 0
      %v4879 = vsel %vm1514, %v4858, 0
      %v4882 = vsel %vm1514, %v4859, 0
      %v4885 = vsel %vm1514, %v4860, 0
      %v4888 = vsel %vm1514, %v4861, 0
      %v4891 = vsel %vm1514, %v4862, 0
      %v4894 = vsel %vm1514, %v4863, 0
      %v4897 = vsel %vm1514, %v4864, 0
      %v4900 = vsel %vm1514, %v4865, 0
      %v4903 = vsel %vm1514, %v4866, 0
      %v4906 = vsel %vm1514, %v4867, 0
      %v4909 = vsel %vm1514, %v4868, 0
      %v4912 = vsel %vm1514, %v4869, 0
      %v4915 = vsel %vm1514, %v4870, 0
      %v4918 = vsel %vm1514, %v4871, 0
      %v4921 = vsel %vm1563, %v4823, 0
      %4923 = vmatprep.subr.bf16.mxu0 0
      %4924 = vmatpush1.bf16.msra.mxu0 %v4921
      %4925 = vmatprep.subr.bf16.mxu0 0
      %4926 = vmatpush1.bf16.msra.mxu0 0
      %4927 = vmatprep.subr.bf16.mxu0 0
      %4928 = vmatpush1.bf16.msra.mxu0 0
      %4929 = vmatprep.subr.bf16.mxu0 0
      %4930 = vmatpush1.bf16.msra.mxu0 0
      %4931 = vmatprep.subr.bf16.mxu0 0
      %4932 = vmatpush1.bf16.msra.mxu0 0
      %4933 = vmatprep.subr.bf16.mxu0 0
      %4934 = vmatpush1.bf16.msra.mxu0 0
      %4935 = vmatprep.subr.bf16.mxu0 0
      %4936 = vmatpush1.bf16.msra.mxu0 0
      %4937 = vmatprep.subr.bf16.mxu0 0
      %4938 = vmatpush1.bf16.msra.mxu0 0
      %4939 = vmatprep.subr.bf16.mxu0 0
      %4940 = vmatpush1.bf16.msra.mxu0 0
      %4941 = vmatprep.subr.bf16.mxu0 0
      %4942 = vmatpush1.bf16.msra.mxu0 0
      %4943 = vmatprep.subr.bf16.mxu0 0
      %4944 = vmatpush1.bf16.msra.mxu0 0
      %4945 = vmatprep.subr.bf16.mxu0 0
      %4946 = vmatpush1.bf16.msra.mxu0 0
      %4947 = vmatprep.subr.bf16.mxu0 0
      %4948 = vmatpush1.bf16.msra.mxu0 0
      %4949 = vmatprep.subr.bf16.mxu0 0
      %4950 = vmatpush1.bf16.msra.mxu0 0
      %4951 = vmatprep.subr.bf16.mxu0 0
      %4952 = vmatpush1.bf16.msra.mxu0 0
      %4953 = vmatprep.subr.bf16.mxu0 0
      %4954 = vmatpush1.bf16.msra.mxu0 0
      %4955 = vmatprep.mubr.bf16.mxu0 0
      %4956 = vmatmul.mubr.bf16.gmra.mrb[0].mxu0 %v4873
      %v4957 = vpop.f32.mrb[0].mxu0
      %v4958 = vadd.f32 0.0, %v4957
      %v4959 = vpop.f32.mrb[0].mxu0
      %v4960 = vpop.f32.mrb[0].mxu0
      %v4961 = vadd.f32 0.0, %v4960
      %v4962 = vpop.f32.mrb[0].mxu0
      %4963 = vmatprep.mubr.bf16.mxu0 0
      %4964 = vmatmul.mubr.bf16.gmra.mrb[0].mxu0 %v4876
      %v4965 = vpop.f32.mrb[0].mxu0
      %v4966 = vadd.f32 0.0, %v4965
      %v4967 = vpop.f32.mrb[0].mxu0
      %v4968 = vpop.f32.mrb[0].mxu0
      %v4969 = vadd.f32 0.0, %v4968
      %v4970 = vpop.f32.mrb[0].mxu0
      %4971 = vmatprep.mubr.bf16.mxu0 0
      %4972 = vmatmul.mubr.bf16.gmra.mrb[0].mxu0 %v4879
      %v4973 = vpop.f32.mrb[0].mxu0
      %v4974 = vadd.f32 0.0, %v4973
      %v4975 = vpop.f32.mrb[0].mxu0
      %v4976 = vpop.f32.mrb[0].mxu0
      %v4977 = vadd.f32 0.0, %v4976
      %v4978 = vpop.f32.mrb[0].mxu0
      %4979 = vmatprep.mubr.bf16.mxu0 0
      %4980 = vmatmul.mubr.bf16.gmra.mrb[0].mxu0 %v4882
      %v4981 = vpop.f32.mrb[0].mxu0
      %v4982 = vadd.f32 0.0, %v4981
      %v4983 = vpop.f32.mrb[0].mxu0
      %v4984 = vpop.f32.mrb[0].mxu0
      %v4985 = vadd.f32 0.0, %v4984
      %v4986 = vpop.f32.mrb[0].mxu0
      %4987 = vmatprep.mubr.bf16.mxu0 0
      %4988 = vmatmul.mubr.bf16.gmra.mrb[0].mxu0 %v4885
      %v4989 = vpop.f32.mrb[0].mxu0
      %v4990 = vadd.f32 0.0, %v4989
      %v4991 = vpop.f32.mrb[0].mxu0
      %v4992 = vpop.f32.mrb[0].mxu0
      %v4993 = vadd.f32 0.0, %v4992
      %v4994 = vpop.f32.mrb[0].mxu0
      %4995 = vmatprep.mubr.bf16.mxu0 0
      %4996 = vmatmul.mubr.bf16.gmra.mrb[0].mxu0 %v4888
      %v4997 = vpop.f32.mrb[0].mxu0
      %v4998 = vadd.f32 0.0, %v4997
      %v4999 = vpop.f32.mrb[0].mxu0
      %v5000 = vpop.f32.mrb[0].mxu0
      %v5001 = vadd.f32 0.0, %v5000
      %v5002 = vpop.f32.mrb[0].mxu0
      %5003 = vmatprep.mubr.bf16.mxu0 0
      %5004 = vmatmul.mubr.bf16.gmra.mrb[0].mxu0 %v4891
      %v5005 = vpop.f32.mrb[0].mxu0
      %v5006 = vadd.f32 0.0, %v5005
      %v5007 = vpop.f32.mrb[0].mxu0
      %v5008 = vpop.f32.mrb[0].mxu0
      %v5009 = vadd.f32 0.0, %v5008
      %v5010 = vpop.f32.mrb[0].mxu0
      %5011 = vmatprep.mubr.bf16.mxu0 0
      %5012 = vmatmul.mubr.bf16.gmra.mrb[0].mxu0 %v4894
      %v5013 = vpop.f32.mrb[0].mxu0
      %v5014 = vadd.f32 0.0, %v5013
      %v5015 = vpop.f32.mrb[0].mxu0
      %v5016 = vpop.f32.mrb[0].mxu0
      %v5017 = vadd.f32 0.0, %v5016
      %v5018 = vpop.f32.mrb[0].mxu0
      %5019 = vmatprep.mubr.bf16.mxu0 0
      %5020 = vmatmul.mubr.bf16.gmra.mrb[0].mxu0 %v4897
      %v5021 = vpop.f32.mrb[0].mxu0
      %v5022 = vadd.f32 0.0, %v5021
      %v5023 = vpop.f32.mrb[0].mxu0
      %v5024 = vpop.f32.mrb[0].mxu0
      %v5025 = vadd.f32 0.0, %v5024
      %v5026 = vpop.f32.mrb[0].mxu0
      %5027 = vmatprep.mubr.bf16.mxu0 0
      %5028 = vmatmul.mubr.bf16.gmra.mrb[0].mxu0 %v4900
      %v5029 = vpop.f32.mrb[0].mxu0
      %v5030 = vadd.f32 0.0, %v5029
      %v5031 = vpop.f32.mrb[0].mxu0
      %v5032 = vpop.f32.mrb[0].mxu0
      %v5033 = vadd.f32 0.0, %v5032
      %v5034 = vpop.f32.mrb[0].mxu0
      %5035 = vmatprep.mubr.bf16.mxu0 0
      %5036 = vmatmul.mubr.bf16.gmra.mrb[0].mxu0 %v4903
      %v5037 = vpop.f32.mrb[0].mxu0
      %v5038 = vadd.f32 0.0, %v5037
      %v5039 = vpop.f32.mrb[0].mxu0
      %v5040 = vpop.f32.mrb[0].mxu0
      %v5041 = vadd.f32 0.0, %v5040
      %v5042 = vpop.f32.mrb[0].mxu0
      %5043 = vmatprep.mubr.bf16.mxu0 0
      %5044 = vmatmul.mubr.bf16.gmra.mrb[0].mxu0 %v4906
      %v5045 = vpop.f32.mrb[0].mxu0
      %v5046 = vadd.f32 0.0, %v5045
      %v5047 = vpop.f32.mrb[0].mxu0
      %v5048 = vpop.f32.mrb[0].mxu0
      %v5049 = vadd.f32 0.0, %v5048
      %v5050 = vpop.f32.mrb[0].mxu0
      %5051 = vmatprep.mubr.bf16.mxu0 0
      %5052 = vmatmul.mubr.bf16.gmra.mrb[0].mxu0 %v4909
      %v5053 = vpop.f32.mrb[0].mxu0
      %v5054 = vadd.f32 0.0, %v5053
      %v5055 = vpop.f32.mrb[0].mxu0
      %v5056 = vpop.f32.mrb[0].mxu0
      %v5057 = vadd.f32 0.0, %v5056
      %v5058 = vpop.f32.mrb[0].mxu0
      %5059 = vmatprep.mubr.bf16.mxu0 0
      %5060 = vmatmul.mubr.bf16.gmra.mrb[0].mxu0 %v4912
      %v5061 = vpop.f32.mrb[0].mxu0
      %v5062 = vadd.f32 0.0, %v5061
      %v5063 = vpop.f32.mrb[0].mxu0
      %v5064 = vpop.f32.mrb[0].mxu0
      %v5065 = vadd.f32 0.0, %v5064
      %v5066 = vpop.f32.mrb[0].mxu0
      %5067 = vmatprep.mubr.bf16.mxu0 0
      %5068 = vmatmul.mubr.bf16.gmra.mrb[0].mxu0 %v4915
      %v5069 = vpop.f32.mrb[0].mxu0
      %v5070 = vadd.f32 0.0, %v5069
      %v5071 = vpop.f32.mrb[0].mxu0
      %v5072 = vpop.f32.mrb[0].mxu0
      %v5073 = vadd.f32 0.0, %v5072
      %v5074 = vpop.f32.mrb[0].mxu0
      %5075 = vmatprep.mubr.bf16.mxu0 0
      %5076 = vmatmul.mubr.bf16.gmra.mrb[0].mxu0 %v4918
      %v5077 = vpop.f32.mrb[0].mxu0
      %v5078 = vadd.f32 0.0, %v5077
      %v5079 = vpop.f32.mrb[0].mxu0
      %v5080 = vpop.f32.mrb[0].mxu0
      %v5081 = vadd.f32 0.0, %v5080
      %v5082 = vpop.f32.mrb[0].mxu0
      %5083 = vdwg.mxu0
      %v5084 = vadd.f32 %v4358, %v4958
      %v5085 = vadd.f32 %v4359, %v4961
      %v5086 = vadd.f32 %v4360, %v4966
      %v5087 = vadd.f32 %v4361, %v4969
      %v5088 = vadd.f32 %v4362, %v4974
      %v5089 = vadd.f32 %v4363, %v4977
      %v5090 = vadd.f32 %v4364, %v4982
      %v5091 = vadd.f32 %v4365, %v4985
      %v5092 = vadd.f32 %v4366, %v4990
      %v5093 = vadd.f32 %v4367, %v4993
      %v5094 = vadd.f32 %v4368, %v4998
      %v5095 = vadd.f32 %v4369, %v5001
      %v5096 = vadd.f32 %v4370, %v5006
      %v5097 = vadd.f32 %v4371, %v5009
      %v5098 = vadd.f32 %v4372, %v5014
      %v5099 = vadd.f32 %v4373, %v5017
      %v5100 = vadd.f32 %v4374, %v5022
      %v5101 = vadd.f32 %v4375, %v5025
      %v5102 = vadd.f32 %v4376, %v5030
      %v5103 = vadd.f32 %v4377, %v5033
      %v5104 = vadd.f32 %v4378, %v5038
      %v5105 = vadd.f32 %v4379, %v5041
      %v5106 = vadd.f32 %v4380, %v5046
      %v5107 = vadd.f32 %v4381, %v5049
      %v5108 = vadd.f32 %v4382, %v5054
      %v5109 = vadd.f32 %v4383, %v5057
      %v5110 = vadd.f32 %v4384, %v5062
      %v5111 = vadd.f32 %v4385, %v5065
      %v5112 = vadd.f32 %v4386, %v5070
      %v5113 = vadd.f32 %v4387, %v5073
      %v5114 = vadd.f32 %v4388, %v5078
      %v5115 = vadd.f32 %v4389, %v5081
      %v5116 = vld [vmem:[%s4031] sm:$0xe]
      %v5117 = vld [vmem:[%s4031 + $0xc] sm:$0xe]
      %v5118 = vld [vmem:[%s4031 + $0x18] sm:$0xe]
      %v5119 = vld [vmem:[%s4031 + $0x24] sm:$0xe]
      %v5120 = vld [vmem:[%s4031 + $0x30] sm:$0xe]
      %v5121 = vld [vmem:[%s4031 + $0x3c] sm:$0xe]
      %v5122 = vld [vmem:[%s4031 + $0x48] sm:$0xe]
      %v5123 = vld [vmem:[%s4031 + $0x54] sm:$0xe]
      %v5124 = vld [vmem:[%s4031 + $0x60] sm:$0xe]
      %v5125 = vld [vmem:[%s4031 + $0x6c] sm:$0xe]
      %v5126 = vld [vmem:[%s4031 + $0x78] sm:$0xe]
      %v5127 = vld [vmem:[%s4031 + $0x84] sm:$0xe]
      %v5128 = vld [vmem:[%s4031 + $0x90] sm:$0xe]
      %v5129 = vld [vmem:[%s4031 + $0x9c] sm:$0xe]
      %v5130 = vld [vmem:[%s4031 + $0xa8] sm:$0xe]
      %v5131 = vld [vmem:[%s4031 + $0xb4] sm:$0xe]
      %v5180 = vrot.slane %v5116, 5
      %v5181 = vrot.slane %v5180, 4
      %v5182 = vrot.slane %v4391, 5
      %v5183 = vsel %vm2070, %v5181, %v5182
      %v5184 = vrot.slane %v5182, 4
      %v5185 = vrot.slane %v4392, 5
      %v5186 = vsel %vm2070, %v5184, %v5185
      %v5187 = vrot.slane %v5117, 5
      %v5188 = vrot.slane %v5187, 4
      %v5189 = vrot.slane %v4394, 5
      %v5190 = vsel %vm2070, %v5188, %v5189
      %v5191 = vrot.slane %v5189, 4
      %v5192 = vrot.slane %v4395, 5
      %v5193 = vsel %vm2070, %v5191, %v5192
      %v5194 = vrot.slane %v5118, 5
      %v5195 = vrot.slane %v5194, 4
      %v5196 = vrot.slane %v4397, 5
      %v5197 = vsel %vm2070, %v5195, %v5196
      %v5198 = vrot.slane %v5196, 4
      %v5199 = vrot.slane %v4398, 5
      %v5200 = vsel %vm2070, %v5198, %v5199
      %v5201 = vrot.slane %v5119, 5
      %v5202 = vrot.slane %v5201, 4
      %v5203 = vrot.slane %v4400, 5
      %v5204 = vsel %vm2070, %v5202, %v5203
      %v5205 = vrot.slane %v5203, 4
      %v5206 = vrot.slane %v4401, 5
      %v5207 = vsel %vm2070, %v5205, %v5206
      %v5208 = vrot.slane %v5120, 5
      %v5209 = vrot.slane %v5208, 4
      %v5210 = vrot.slane %v4403, 5
      %v5211 = vsel %vm2070, %v5209, %v5210
      %v5212 = vrot.slane %v5210, 4
      %v5213 = vrot.slane %v4404, 5
      %v5214 = vsel %vm2070, %v5212, %v5213
      %v5215 = vrot.slane %v5121, 5
      %v5216 = vrot.slane %v5215, 4
      %v5217 = vrot.slane %v4406, 5
      %v5218 = vsel %vm2070, %v5216, %v5217
      %v5219 = vrot.slane %v5217, 4
      %v5220 = vrot.slane %v4407, 5
      %v5221 = vsel %vm2070, %v5219, %v5220
      %v5222 = vrot.slane %v5122, 5
      %v5223 = vrot.slane %v5222, 4
      %v5224 = vrot.slane %v4409, 5
      %v5225 = vsel %vm2070, %v5223, %v5224
      %v5226 = vrot.slane %v5224, 4
      %v5227 = vrot.slane %v4410, 5
      %v5228 = vsel %vm2070, %v5226, %v5227
      %v5229 = vrot.slane %v5123, 5
      %v5230 = vrot.slane %v5229, 4
      %v5231 = vrot.slane %v4412, 5
      %v5232 = vsel %vm2070, %v5230, %v5231
      %v5233 = vrot.slane %v5231, 4
      %v5234 = vrot.slane %v4413, 5
      %v5235 = vsel %vm2070, %v5233, %v5234
      %v5236 = vrot.slane %v5124, 5
      %v5237 = vrot.slane %v5236, 4
      %v5238 = vrot.slane %v4415, 5
      %v5239 = vsel %vm2070, %v5237, %v5238
      %v5240 = vrot.slane %v5238, 4
      %v5241 = vrot.slane %v4416, 5
      %v5242 = vsel %vm2070, %v5240, %v5241
      %v5243 = vrot.slane %v5125, 5
      %v5244 = vrot.slane %v5243, 4
      %v5245 = vrot.slane %v4418, 5
      %v5246 = vsel %vm2070, %v5244, %v5245
      %v5247 = vrot.slane %v5245, 4
      %v5248 = vrot.slane %v4419, 5
      %v5249 = vsel %vm2070, %v5247, %v5248
      %v5250 = vrot.slane %v5126, 5
      %v5251 = vrot.slane %v5250, 4
      %v5252 = vrot.slane %v4421, 5
      %v5253 = vsel %vm2070, %v5251, %v5252
      %v5254 = vrot.slane %v5252, 4
      %v5255 = vrot.slane %v4422, 5
      %v5256 = vsel %vm2070, %v5254, %v5255
      %v5257 = vrot.slane %v5127, 5
      %v5258 = vrot.slane %v5257, 4
      %v5259 = vrot.slane %v4424, 5
      %v5260 = vsel %vm2070, %v5258, %v5259
      %v5261 = vrot.slane %v5259, 4
      %v5262 = vrot.slane %v4425, 5
      %v5263 = vsel %vm2070, %v5261, %v5262
      %v5264 = vrot.slane %v5128, 5
      %v5265 = vrot.slane %v5264, 4
      %v5266 = vrot.slane %v4427, 5
      %v5267 = vsel %vm2070, %v5265, %v5266
      %v5268 = vrot.slane %v5266, 4
      %v5269 = vrot.slane %v4428, 5
      %v5270 = vsel %vm2070, %v5268, %v5269
      %v5271 = vrot.slane %v5129, 5
      %v5272 = vrot.slane %v5271, 4
      %v5273 = vrot.slane %v4430, 5
      %v5274 = vsel %vm2070, %v5272, %v5273
      %v5275 = vrot.slane %v5273, 4
      %v5276 = vrot.slane %v4431, 5
      %v5277 = vsel %vm2070, %v5275, %v5276
      %v5278 = vrot.slane %v5130, 5
      %v5279 = vrot.slane %v5278, 4
      %v5280 = vrot.slane %v4433, 5
      %v5281 = vsel %vm2070, %v5279, %v5280
      %v5282 = vrot.slane %v5280, 4
      %v5283 = vrot.slane %v4434, 5
      %v5284 = vsel %vm2070, %v5282, %v5283
      %v5285 = vrot.slane %v5131, 5
      %v5286 = vrot.slane %v5285, 4
      %v5287 = vrot.slane %v4436, 5
      %v5288 = vsel %vm2070, %v5286, %v5287
      %v5289 = vrot.slane %v5287, 4
      %v5290 = vrot.slane %v4437, 5
      %v5291 = vsel %vm2070, %v5289, %v5290
      %s5292 = scalar_lea.vmem %s3, 32
      %v5293 = vld [vmem:[%s5292] sm:$0xf]
      %v5294 = vunpack.c.l.b16 %v5183
      %v5295 = vunpack.c.l.b16 %v5186
      %v5296 = vunpack.c.l.b16 %v5190
      %v5297 = vunpack.c.l.b16 %v5193
      %v5298 = vunpack.c.l.b16 %v5197
      %v5299 = vunpack.c.l.b16 %v5200
      %v5300 = vunpack.c.l.b16 %v5204
      %v5301 = vunpack.c.l.b16 %v5207
      %v5302 = vunpack.c.l.b16 %v5211
      %v5303 = vunpack.c.l.b16 %v5214
      %v5304 = vunpack.c.l.b16 %v5218
      %v5305 = vunpack.c.l.b16 %v5221
      %v5306 = vunpack.c.l.b16 %v5225
      %v5307 = vunpack.c.l.b16 %v5228
      %v5308 = vunpack.c.l.b16 %v5232
      %v5309 = vunpack.c.l.b16 %v5235
      %v5310 = vunpack.c.l.b16 %v5239
      %v5311 = vunpack.c.l.b16 %v5242
      %v5312 = vunpack.c.l.b16 %v5246
      %v5313 = vunpack.c.l.b16 %v5249
      %v5314 = vunpack.c.l.b16 %v5253
      %v5315 = vunpack.c.l.b16 %v5256
      %v5316 = vunpack.c.l.b16 %v5260
      %v5317 = vunpack.c.l.b16 %v5263
      %v5318 = vunpack.c.l.b16 %v5267
      %v5319 = vunpack.c.l.b16 %v5270
      %v5320 = vunpack.c.l.b16 %v5274
      %v5321 = vunpack.c.l.b16 %v5277
      %v5322 = vunpack.c.l.b16 %v5281
      %v5323 = vunpack.c.l.b16 %v5284
      %v5324 = vunpack.c.l.b16 %v5288
      %v5325 = vunpack.c.l.b16 %v5291
      %v5326 = vpack.c.b16 %v5295, %v5294
      %v5327 = vpack.c.b16 %v5297, %v5296
      %v5328 = vpack.c.b16 %v5299, %v5298
      %v5329 = vpack.c.b16 %v5301, %v5300
      %v5330 = vpack.c.b16 %v5303, %v5302
      %v5331 = vpack.c.b16 %v5305, %v5304
      %v5332 = vpack.c.b16 %v5307, %v5306
      %v5333 = vpack.c.b16 %v5309, %v5308
      %v5334 = vpack.c.b16 %v5311, %v5310
      %v5335 = vpack.c.b16 %v5313, %v5312
      %v5336 = vpack.c.b16 %v5315, %v5314
      %v5337 = vpack.c.b16 %v5317, %v5316
      %v5338 = vpack.c.b16 %v5319, %v5318
      %v5339 = vpack.c.b16 %v5321, %v5320
      %v5340 = vpack.c.b16 %v5323, %v5322
      %v5341 = vpack.c.b16 %v5325, %v5324
      %v5343 = vsel %vm1514, %v5326, 0
      %v5346 = vsel %vm1514, %v5327, 0
      %v5349 = vsel %vm1514, %v5328, 0
      %v5352 = vsel %vm1514, %v5329, 0
      %v5355 = vsel %vm1514, %v5330, 0
      %v5358 = vsel %vm1514, %v5331, 0
      %v5361 = vsel %vm1514, %v5332, 0
      %v5364 = vsel %vm1514, %v5333, 0
      %v5367 = vsel %vm1514, %v5334, 0
      %v5370 = vsel %vm1514, %v5335, 0
      %v5373 = vsel %vm1514, %v5336, 0
      %v5376 = vsel %vm1514, %v5337, 0
      %v5379 = vsel %vm1514, %v5338, 0
      %v5382 = vsel %vm1514, %v5339, 0
      %v5385 = vsel %vm1514, %v5340, 0
      %v5388 = vsel %vm1514, %v5341, 0
      %v5391 = vsel %vm1563, %v5293, 0
      %5393 = vmatprep.subr.bf16.mxu0 0
      %5394 = vmatpush1.bf16.msra.mxu0 %v5391
      %5395 = vmatprep.subr.bf16.mxu0 0
      %5396 = vmatpush1.bf16.msra.mxu0 0
      %5397 = vmatprep.subr.bf16.mxu0 0
      %5398 = vmatpush1.bf16.msra.mxu0 0
      %5399 = vmatprep.subr.bf16.mxu0 0
      %5400 = vmatpush1.bf16.msra.mxu0 0
      %5401 = vmatprep.subr.bf16.mxu0 0
      %5402 = vmatpush1.bf16.msra.mxu0 0
      %5403 = vmatprep.subr.bf16.mxu0 0
      %5404 = vmatpush1.bf16.msra.mxu0 0
      %5405 = vmatprep.subr.bf16.mxu0 0
      %5406 = vmatpush1.bf16.msra.mxu0 0
      %5407 = vmatprep.subr.bf16.mxu0 0
      %5408 = vmatpush1.bf16.msra.mxu0 0
      %5409 = vmatprep.subr.bf16.mxu0 0
      %5410 = vmatpush1.bf16.msra.mxu0 0
      %5411 = vmatprep.subr.bf16.mxu0 0
      %5412 = vmatpush1.bf16.msra.mxu0 0
      %5413 = vmatprep.subr.bf16.mxu0 0
      %5414 = vmatpush1.bf16.msra.mxu0 0
      %5415 = vmatprep.subr.bf16.mxu0 0
      %5416 = vmatpush1.bf16.msra.mxu0 0
      %5417 = vmatprep.subr.bf16.mxu0 0
      %5418 = vmatpush1.bf16.msra.mxu0 0
      %5419 = vmatprep.subr.bf16.mxu0 0
      %5420 = vmatpush1.bf16.msra.mxu0 0
      %5421 = vmatprep.subr.bf16.mxu0 0
      %5422 = vmatpush1.bf16.msra.mxu0 0
      %5423 = vmatprep.subr.bf16.mxu0 0
      %5424 = vmatpush1.bf16.msra.mxu0 0
      %5425 = vmatprep.mubr.bf16.mxu0 0
      %5426 = vmatmul.mubr.bf16.gmra.mrb[0].mxu0 %v5343
      %v5427 = vpop.f32.mrb[0].mxu0
      %v5428 = vadd.f32 0.0, %v5427
      %v5429 = vpop.f32.mrb[0].mxu0
      %v5430 = vpop.f32.mrb[0].mxu0
      %v5431 = vadd.f32 0.0, %v5430
      %v5432 = vpop.f32.mrb[0].mxu0
      %5433 = vmatprep.mubr.bf16.mxu0 0
      %5434 = vmatmul.mubr.bf16.gmra.mrb[0].mxu0 %v5346
      %v5435 = vpop.f32.mrb[0].mxu0
      %v5436 = vadd.f32 0.0, %v5435
      %v5437 = vpop.f32.mrb[0].mxu0
      %v5438 = vpop.f32.mrb[0].mxu0
      %v5439 = vadd.f32 0.0, %v5438
      %v5440 = vpop.f32.mrb[0].mxu0
      %5441 = vmatprep.mubr.bf16.mxu0 0
      %5442 = vmatmul.mubr.bf16.gmra.mrb[0].mxu0 %v5349
      %v5443 = vpop.f32.mrb[0].mxu0
      %v5444 = vadd.f32 0.0, %v5443
      %v5445 = vpop.f32.mrb[0].mxu0
      %v5446 = vpop.f32.mrb[0].mxu0
      %v5447 = vadd.f32 0.0, %v5446
      %v5448 = vpop.f32.mrb[0].mxu0
      %5449 = vmatprep.mubr.bf16.mxu0 0
      %5450 = vmatmul.mubr.bf16.gmra.mrb[0].mxu0 %v5352
      %v5451 = vpop.f32.mrb[0].mxu0
      %v5452 = vadd.f32 0.0, %v5451
      %v5453 = vpop.f32.mrb[0].mxu0
      %v5454 = vpop.f32.mrb[0].mxu0
      %v5455 = vadd.f32 0.0, %v5454
      %v5456 = vpop.f32.mrb[0].mxu0
      %5457 = vmatprep.mubr.bf16.mxu0 0
      %5458 = vmatmul.mubr.bf16.gmra.mrb[0].mxu0 %v5355
      %v5459 = vpop.f32.mrb[0].mxu0
      %v5460 = vadd.f32 0.0, %v5459
      %v5461 = vpop.f32.mrb[0].mxu0
      %v5462 = vpop.f32.mrb[0].mxu0
      %v5463 = vadd.f32 0.0, %v5462
      %v5464 = vpop.f32.mrb[0].mxu0
      %5465 = vmatprep.mubr.bf16.mxu0 0
      %5466 = vmatmul.mubr.bf16.gmra.mrb[0].mxu0 %v5358
      %v5467 = vpop.f32.mrb[0].mxu0
      %v5468 = vadd.f32 0.0, %v5467
      %v5469 = vpop.f32.mrb[0].mxu0
      %v5470 = vpop.f32.mrb[0].mxu0
      %v5471 = vadd.f32 0.0, %v5470
      %v5472 = vpop.f32.mrb[0].mxu0
      %5473 = vmatprep.mubr.bf16.mxu0 0
      %5474 = vmatmul.mubr.bf16.gmra.mrb[0].mxu0 %v5361
      %v5475 = vpop.f32.mrb[0].mxu0
      %v5476 = vadd.f32 0.0, %v5475
      %v5477 = vpop.f32.mrb[0].mxu0
      %v5478 = vpop.f32.mrb[0].mxu0
      %v5479 = vadd.f32 0.0, %v5478
      %v5480 = vpop.f32.mrb[0].mxu0
      %5481 = vmatprep.mubr.bf16.mxu0 0
      %5482 = vmatmul.mubr.bf16.gmra.mrb[0].mxu0 %v5364
      %v5483 = vpop.f32.mrb[0].mxu0
      %v5484 = vadd.f32 0.0, %v5483
      %v5485 = vpop.f32.mrb[0].mxu0
      %v5486 = vpop.f32.mrb[0].mxu0
      %v5487 = vadd.f32 0.0, %v5486
      %v5488 = vpop.f32.mrb[0].mxu0
      %5489 = vmatprep.mubr.bf16.mxu0 0
      %5490 = vmatmul.mubr.bf16.gmra.mrb[0].mxu0 %v5367
      %v5491 = vpop.f32.mrb[0].mxu0
      %v5492 = vadd.f32 0.0, %v5491
      %v5493 = vpop.f32.mrb[0].mxu0
      %v5494 = vpop.f32.mrb[0].mxu0
      %v5495 = vadd.f32 0.0, %v5494
      %v5496 = vpop.f32.mrb[0].mxu0
      %5497 = vmatprep.mubr.bf16.mxu0 0
      %5498 = vmatmul.mubr.bf16.gmra.mrb[0].mxu0 %v5370
      %v5499 = vpop.f32.mrb[0].mxu0
      %v5500 = vadd.f32 0.0, %v5499
      %v5501 = vpop.f32.mrb[0].mxu0
      %v5502 = vpop.f32.mrb[0].mxu0
      %v5503 = vadd.f32 0.0, %v5502
      %v5504 = vpop.f32.mrb[0].mxu0
      %5505 = vmatprep.mubr.bf16.mxu0 0
      %5506 = vmatmul.mubr.bf16.gmra.mrb[0].mxu0 %v5373
      %v5507 = vpop.f32.mrb[0].mxu0
      %v5508 = vadd.f32 0.0, %v5507
      %v5509 = vpop.f32.mrb[0].mxu0
      %v5510 = vpop.f32.mrb[0].mxu0
      %v5511 = vadd.f32 0.0, %v5510
      %v5512 = vpop.f32.mrb[0].mxu0
      %5513 = vmatprep.mubr.bf16.mxu0 0
      %5514 = vmatmul.mubr.bf16.gmra.mrb[0].mxu0 %v5376
      %v5515 = vpop.f32.mrb[0].mxu0
      %v5516 = vadd.f32 0.0, %v5515
      %v5517 = vpop.f32.mrb[0].mxu0
      %v5518 = vpop.f32.mrb[0].mxu0
      %v5519 = vadd.f32 0.0, %v5518
      %v5520 = vpop.f32.mrb[0].mxu0
      %5521 = vmatprep.mubr.bf16.mxu0 0
      %5522 = vmatmul.mubr.bf16.gmra.mrb[0].mxu0 %v5379
      %v5523 = vpop.f32.mrb[0].mxu0
      %v5524 = vadd.f32 0.0, %v5523
      %v5525 = vpop.f32.mrb[0].mxu0
      %v5526 = vpop.f32.mrb[0].mxu0
      %v5527 = vadd.f32 0.0, %v5526
      %v5528 = vpop.f32.mrb[0].mxu0
      %5529 = vmatprep.mubr.bf16.mxu0 0
      %5530 = vmatmul.mubr.bf16.gmra.mrb[0].mxu0 %v5382
      %v5531 = vpop.f32.mrb[0].mxu0
      %v5532 = vadd.f32 0.0, %v5531
      %v5533 = vpop.f32.mrb[0].mxu0
      %v5534 = vpop.f32.mrb[0].mxu0
      %v5535 = vadd.f32 0.0, %v5534
      %v5536 = vpop.f32.mrb[0].mxu0
      %5537 = vmatprep.mubr.bf16.mxu0 0
      %5538 = vmatmul.mubr.bf16.gmra.mrb[0].mxu0 %v5385
      %v5539 = vpop.f32.mrb[0].mxu0
      %v5540 = vadd.f32 0.0, %v5539
      %v5541 = vpop.f32.mrb[0].mxu0
      %v5542 = vpop.f32.mrb[0].mxu0
      %v5543 = vadd.f32 0.0, %v5542
      %v5544 = vpop.f32.mrb[0].mxu0
      %5545 = vmatprep.mubr.bf16.mxu0 0
      %5546 = vmatmul.mubr.bf16.gmra.mrb[0].mxu0 %v5388
      %v5547 = vpop.f32.mrb[0].mxu0
      %v5548 = vadd.f32 0.0, %v5547
      %v5549 = vpop.f32.mrb[0].mxu0
      %v5550 = vpop.f32.mrb[0].mxu0
      %v5551 = vadd.f32 0.0, %v5550
      %v5552 = vpop.f32.mrb[0].mxu0
      %5553 = vdwg.mxu0
      %v5554 = vadd.f32 %v5084, %v5428
      %v5555 = vadd.f32 %v5085, %v5431
      %v5556 = vadd.f32 %v5086, %v5436
      %v5557 = vadd.f32 %v5087, %v5439
      %v5558 = vadd.f32 %v5088, %v5444
      %v5559 = vadd.f32 %v5089, %v5447
      %v5560 = vadd.f32 %v5090, %v5452
      %v5561 = vadd.f32 %v5091, %v5455
      %v5562 = vadd.f32 %v5092, %v5460
      %v5563 = vadd.f32 %v5093, %v5463
      %v5564 = vadd.f32 %v5094, %v5468
      %v5565 = vadd.f32 %v5095, %v5471
      %v5566 = vadd.f32 %v5096, %v5476
      %v5567 = vadd.f32 %v5097, %v5479
      %v5568 = vadd.f32 %v5098, %v5484
      %v5569 = vadd.f32 %v5099, %v5487
      %v5570 = vadd.f32 %v5100, %v5492
      %v5571 = vadd.f32 %v5101, %v5495
      %v5572 = vadd.f32 %v5102, %v5500
      %v5573 = vadd.f32 %v5103, %v5503
      %v5574 = vadd.f32 %v5104, %v5508
      %v5575 = vadd.f32 %v5105, %v5511
      %v5576 = vadd.f32 %v5106, %v5516
      %v5577 = vadd.f32 %v5107, %v5519
      %v5578 = vadd.f32 %v5108, %v5524
      %v5579 = vadd.f32 %v5109, %v5527
      %v5580 = vadd.f32 %v5110, %v5532
      %v5581 = vadd.f32 %v5111, %v5535
      %v5582 = vadd.f32 %v5112, %v5540
      %v5583 = vadd.f32 %v5113, %v5543
      %v5584 = vadd.f32 %v5114, %v5548
      %v5585 = vadd.f32 %v5115, %v5551
      %vm5586 = vcmask 31744
      %5587 = vst.msk [vmem:[%s197] sm:$0xff] %vm5586, %v5554
      %5588 = vst.msk [vmem:[%s197 + $0x8] sm:$0xff] %vm5586, %v5555
      %5589 = vst.msk [vmem:[%s197 + $0x10] sm:$0xff] %vm5586, %v5556
      %5590 = vst.msk [vmem:[%s197 + $0x18] sm:$0xff] %vm5586, %v5557
      %5591 = vst.msk [vmem:[%s197 + $0x20] sm:$0xff] %vm5586, %v5558
      %5592 = vst.msk [vmem:[%s197 + $0x28] sm:$0xff] %vm5586, %v5559
      %5593 = vst.msk [vmem:[%s197 + $0x30] sm:$0xff] %vm5586, %v5560
      %5594 = vst.msk [vmem:[%s197 + $0x38] sm:$0xff] %vm5586, %v5561
      %5595 = vst.msk [vmem:[%s197 + $0x40] sm:$0xff] %vm5586, %v5562
      %5596 = vst.msk [vmem:[%s197 + $0x48] sm:$0xff] %vm5586, %v5563
      %5597 = vst.msk [vmem:[%s197 + $0x50] sm:$0xff] %vm5586, %v5564
      %5598 = vst.msk [vmem:[%s197 + $0x58] sm:$0xff] %vm5586, %v5565
      %5599 = vst.msk [vmem:[%s197 + $0x60] sm:$0xff] %vm5586, %v5566
      %5600 = vst.msk [vmem:[%s197 + $0x68] sm:$0xff] %vm5586, %v5567
      %5601 = vst.msk [vmem:[%s197 + $0x70] sm:$0xff] %vm5586, %v5568
      %5602 = vst.msk [vmem:[%s197 + $0x78] sm:$0xff] %vm5586, %v5569
      %5603 = vst.msk [vmem:[%s197 + $0x80] sm:$0xff] %vm5586, %v5570
      %5604 = vst.msk [vmem:[%s197 + $0x88] sm:$0xff] %vm5586, %v5571
      %5605 = vst.msk [vmem:[%s197 + $0x90] sm:$0xff] %vm5586, %v5572
      %5606 = vst.msk [vmem:[%s197 + $0x98] sm:$0xff] %vm5586, %v5573
      %5607 = vst.msk [vmem:[%s197 + $0xa0] sm:$0xff] %vm5586, %v5574
      %5608 = vst.msk [vmem:[%s197 + $0xa8] sm:$0xff] %vm5586, %v5575
      %5609 = vst.msk [vmem:[%s197 + $0xb0] sm:$0xff] %vm5586, %v5576
      %5610 = vst.msk [vmem:[%s197 + $0xb8] sm:$0xff] %vm5586, %v5577
      %5611 = vst.msk [vmem:[%s197 + $0xc0] sm:$0xff] %vm5586, %v5578
      %5612 = vst.msk [vmem:[%s197 + $0xc8] sm:$0xff] %vm5586, %v5579
      %5613 = vst.msk [vmem:[%s197 + $0xd0] sm:$0xff] %vm5586, %v5580
      %5614 = vst.msk [vmem:[%s197 + $0xd8] sm:$0xff] %vm5586, %v5581
      %5615 = vst.msk [vmem:[%s197 + $0xe0] sm:$0xff] %vm5586, %v5582
      %5616 = vst.msk [vmem:[%s197 + $0xe8] sm:$0xff] %vm5586, %v5583
      %5617 = vst.msk [vmem:[%s197 + $0xf0] sm:$0xff] %vm5586, %v5584
      %5618 = vst.msk [vmem:[%s197 + $0xf8] sm:$0xff] %vm5586, %v5585
      %p5619 = scmp.lt.s32.totalorder %s15, 1
      %s5620 = scalar_select %p5619, %s15, 1
      %s5621 = smul.addr %s5620, 32
      %s5622 = smul.addr %s5621, 8
      %s5623 = scalar_lea.vmem %s4, %s5622
      // Predicated region
      $region37: #{dense_layer_forward.3} parent=35 // pred_check
        %p5624 = pneg %p122
      $region38: #{dense_layer_forward.3} parent=35 // pred_check_branch
        %5626 = sbr.rel (%p5624) target = $region40
      $region39: #{dense_layer_forward.3} parent=35 // pred_region
        _
      $region40: #{dense_layer_forward.3} parent=35 // pred_fallthru
        _
    $region36: #{dense_layer_forward.3} parent=5 // pred_fallthru
      _
    %p5627 = scmp.le.s32.totalorder 2, %s10
    // Predicated region
    $region41: #{dense_layer_forward.3} parent=5 // pred_check
      %p5628 = pneg %p5627
    $region42: #{dense_layer_forward.3} parent=5 // pred_check_branch
      %5630 = sbr.rel (%p5628) target = $region44
    $region43: #{dense_layer_forward.3} parent=5 // pred_region
      %s5631 = ssub.s32 %s10, 2
      // Predicated region
      $region45: #{dense_layer_forward.3} parent=43 // pred_check
        %p5632 = pneg %p128
      $region46: #{dense_layer_forward.3} parent=43 // pred_check_branch
        %5634 = sbr.rel (%p5632) target = $region48
      $region47: #{dense_layer_forward.3} parent=43 // pred_region
        %p5635 = scmp.lt.s32.totalorder %s16, 1
        %s5636 = scalar_select %p5635, %s16, 1
        %s5637 = smul.addr %s5636, 32
        %s5638 = smul.addr %s5637, 8
        %s5639 = scalar_lea.vmem %s4, %s5638
      $region48: #{dense_layer_forward.3} parent=43 // pred_fallthru
        _
    $region44: #{dense_layer_forward.3} parent=5 // pred_fallthru
      _
  $region6: #{dense_layer_forward.3} parent=0 // loop_footer
    %s14 = sadd.s32 1, %s10
  $region7: #{dense_layer_forward.3} parent=0 // loop_footer_branch
    %9 = sbr.rel target = $region3
  $region8: #{dense_layer_forward.3} parent=0 // loop_exit
    _

</llo_original>
